<compile_context>
chip_gen: v7x
topology: tpu7x:2x2x1
jax: 0.10.0
libtpu: 0.0.40
codegen_flags: <defaults>
</compile_context>

<pallas_src>
import functools

import jax
import jax.numpy as jnp
from jax.experimental import pallas as pl
from jax.experimental.pallas import tpu as pltpu

LEAKY_SLOPE = 0.01   # PyTorch nn.LeakyReLU default negative_slope
OUT_PAD = 128        # lane-dense padded readout width
TILE_H = 8           # conv-output rows computed per grid step (multiple of 8 sublanes)


# ----------------------------------------------------------------------------
# Fused Pallas kernel: backbone (3x3 conv + ReLU + global avg pool) + MLP head
# ----------------------------------------------------------------------------
def _cnn_only_kernel(x_ref, cw_ref, cb_ref, w1_ref, b1_ref, w2_ref, b2_ref,
                     w3_ref, b3_ref, out_ref, acc_ref, *, tile_h, h, w):
    """Grid = (B, H // tile_h).

    x_ref:   (H+2, W+2, Cin) bf16  padded NHWC image of batch b (resident across t)
    cw_ref:  (9, Cin, Cout)  bf16  conv weight, tap-major (dh, dw)
    cb_ref:  (1, Cout)       f32   conv bias
    w*/b*:   class-head weights (in, out) bf16 / biases (1, out) f32;
             w3/b3 are zero-padded to OUT_PAD lanes
    out_ref: (1, OUT_PAD)    f32   padded head output for batch b
    acc_ref: (1, Cout)       f32   resident global-avg-pool sum accumulator
    """
    t = pl.program_id(1)
    n_t = pl.num_programs(1)
    tile_hw = tile_h * w
    cout = cw_ref.shape[-1]

    @pl.when(t == 0)
    def _():
        acc_ref[...] = jnp.zeros_like(acc_ref)

    # 3x3 conv for this row tile: 9 shifted-window matmuls accumulated in f32
    # (bf16 operands, f32 MXU accumulation).  No im2col in HBM.
    row0 = pl.multiple_of(t * tile_h, tile_h)
    conv = jnp.zeros((tile_hw, cout), jnp.float32)
    for tap in range(9):                                  # static unroll, 9 taps
        dh, dw = tap // 3, tap % 3
        win = x_ref[pl.ds(row0 + dh, tile_h), pl.ds(dw, w), :]   # (tile_h, W, Cin)
        conv = conv + jnp.dot(win.reshape(tile_hw, -1), cw_ref[tap],
                              preferred_element_type=jnp.float32)
    conv = jnp.maximum(conv + cb_ref[...], 0.0)           # bias + ReLU (f32)

    # Partial global average pool: row-sum via a ones-row MXU matmul, summed
    # into the resident f32 accumulator; the 1/(H*W) scale is applied once.
    ones_row = jnp.ones((1, tile_hw), jnp.float32)
    acc_ref[...] += jnp.dot(ones_row, conv, preferred_element_type=jnp.float32)

    # Last H-tile: finish the pool and run the fused 3-layer class head.
    @pl.when(t == n_t - 1)
    def _():
        z = acc_ref[...] * (1.0 / float(h * w))           # (1, Cout) f32
        hid = jnp.dot(z.astype(jnp.bfloat16), w1_ref[...],
                      preferred_element_type=jnp.float32) + b1_ref[...]
        hid = jnp.where(hid > 0, hid, LEAKY_SLOPE * hid)  # LeakyReLU
        hid = jnp.dot(hid.astype(jnp.bfloat16), w2_ref[...],
                      preferred_element_type=jnp.float32) + b2_ref[...]
        hid = jnp.where(hid > 0, hid, LEAKY_SLOPE * hid)  # LeakyReLU
        out = jnp.dot(hid.astype(jnp.bfloat16), w3_ref[...],
                      preferred_element_type=jnp.float32) + b3_ref[...]
        out_ref[...] = out.astype(out_ref.dtype)          # lane-dense (1, 128) store


def _build_grid_spec(B, H, W, cin, cout, fc1, fc, tile_h):
    def full(shape):
        return pl.BlockSpec(shape, lambda b, t, _s=shape: (0,) * len(_s))

    in_specs = [
        # Padded image of batch b; block index ignores t -> DMA'd once per b,
        # stays VMEM-resident while the H-tiles accumulate.
        pl.BlockSpec((None, H + 2, W + 2, cin), lambda b, t: (b, 0, 0, 0)),
        full((9, cin, cout)),      # conv weight
        full((1, cout)),           # conv bias
        full((cout, fc1)),         # head w1
        full((1, fc1)),            # head b1
        full((fc1, fc)),           # head w2
        full((1, fc)),             # head b2
        full((fc, OUT_PAD)),       # head w3 (lane-padded)
        full((1, OUT_PAD)),        # head b3 (lane-padded)
    ]
    # Output block index ignores t -> resident accumulator-style output,
    # written only on the last H-tile (t axis is "arbitrary").
    out_specs = pl.BlockSpec((None, 1, OUT_PAD), lambda b, t: (b, 0, 0))
    return pltpu.PrefetchScalarGridSpec(
        num_scalar_prefetch=0,
        grid=(B, H // tile_h),
        in_specs=in_specs,
        out_specs=out_specs,
        scratch_shapes=[pltpu.VMEM((1, cout), jnp.float32)],
    )


# ----------------------------------------------------------------------------
# JAX wrapper
# ----------------------------------------------------------------------------
@functools.partial(jax.jit, static_argnames=("readout_size", "tile_h"))
def cnn_only_forward(x_nchw, params, *, readout_size, tile_h=TILE_H):
    """CNN_Only.forward: z = backbone(x); z = z.view(B, -1); out = class_head(z)."""
    # Layout prep (NCHW -> NHWC, pad=1 for the 3x3 conv, cast to bf16).
    # TODO(synk): a real input pipeline should feed channels-last frames directly.
    x = jnp.transpose(x_nchw, (0, 2, 3, 1)).astype(jnp.bfloat16)
    xp = jnp.pad(x, ((0, 0), (1, 1), (1, 1), (0, 0)))
    B, Hp, Wp, cin = xp.shape
    H, W = Hp - 2, Wp - 2
    assert H % tile_h == 0, "H must be divisible by tile_h"

    cout = params["conv_w"].shape[-1]
    fc1 = params["w1"].shape[-1]
    fc = params["w2"].shape[-1]

    kernel = functools.partial(_cnn_only_kernel, tile_h=tile_h, h=H, w=W)
    out_padded = pl.pallas_call(
        kernel,
        grid_spec=_build_grid_spec(B, H, W, cin, cout, fc1, fc, tile_h),
        out_shape=jax.ShapeDtypeStruct((B, 1, OUT_PAD), jnp.float32),
        compiler_params=pltpu.CompilerParams(
            dimension_semantics=("parallel", "arbitrary")),
    )(xp, params["conv_w"], params["conv_b"],
      params["w1"], params["b1"], params["w2"], params["b2"],
      params["w3"], params["b3"])
    return out_padded.reshape(B, OUT_PAD)[:, :readout_size]


# ----------------------------------------------------------------------------
# Deterministic parameter init (xavier_uniform Linear weights, zero biases,
# matching CNN_Only.__init__weights).  Matmul weights stored bf16 (f32 accum
# in-kernel); biases f32.  w3/b3 are zero-padded to OUT_PAD lanes.
# ----------------------------------------------------------------------------
def _xavier_uniform(key, fan_in, fan_out, dtype=jnp.bfloat16):
    bound = float(jnp.sqrt(6.0 / (fan_in + fan_out)))
    w = jax.random.uniform(key, (fan_in, fan_out), jnp.float32, -bound, bound)
    return w.astype(dtype)


def init_params(key, cin, backbone_dim, fc1_size, fc_size, readout_size):
    k_conv, k1, k2, k3 = jax.random.split(key, 4)
    conv_w = _xavier_uniform(k_conv, 9 * cin, backbone_dim)
    conv_w = conv_w.reshape(9, cin, backbone_dim)          # tap-major (dh, dw), Cin minor
    w3 = _xavier_uniform(k3, fc_size, readout_size)
    w3 = jnp.pad(w3, ((0, 0), (0, OUT_PAD - readout_size)))  # lane-dense output
    return {
        "conv_w": conv_w,                                   # (9, Cin, Cout) bf16
        "conv_b": jnp.zeros((1, backbone_dim), jnp.float32),
        "w1": _xavier_uniform(k1, backbone_dim, fc1_size),
        "b1": jnp.zeros((1, fc1_size), jnp.float32),
        "w2": _xavier_uniform(k2, fc1_size, fc_size),
        "b2": jnp.zeros((1, fc_size), jnp.float32),
        "w3": w3,                                           # (fc, OUT_PAD) bf16
        "b3": jnp.zeros((1, OUT_PAD), jnp.float32),
    }


# ----------------------------------------------------------------------------
# Pure-JAX reference (mirrors the kernel's dtype handling) for a sanity check.
# ----------------------------------------------------------------------------
def _reference_forward(x_nchw, params, readout_size):
    x = jnp.transpose(x_nchw, (0, 2, 3, 1)).astype(jnp.bfloat16)
    xp = jnp.pad(x, ((0, 0), (1, 1), (1, 1), (0, 0)))
    B, Hp, Wp, _ = xp.shape
    H, W = Hp - 2, Wp - 2
    cout = params["conv_w"].shape[-1]
    conv = jnp.zeros((B, H, W, cout), jnp.float32)
    for tap in range(9):
        dh, dw = tap // 3, tap % 3
        win = xp[:, dh:dh + H, dw:dw + W, :]
        conv = conv + jnp.einsum("bhwc,co->bhwo", win, params["conv_w"][tap],
                                 preferred_element_type=jnp.float32)
    conv = jnp.maximum(conv + params["conv_b"][0], 0.0)
    z = conv.reshape(B, H * W, cout).mean(axis=1)
    h = jnp.dot(z.astype(jnp.bfloat16), params["w1"],
                preferred_element_type=jnp.float32) + params["b1"]
    h = jnp.where(h > 0, h, LEAKY_SLOPE * h)
    h = jnp.dot(h.astype(jnp.bfloat16), params["w2"],
                preferred_element_type=jnp.float32) + params["b2"]
    h = jnp.where(h > 0, h, LEAKY_SLOPE * h)
    out = jnp.dot(h.astype(jnp.bfloat16), params["w3"],
                  preferred_element_type=jnp.float32) + params["b3"]
    return out[:, :readout_size]


if __name__ == "__main__":
    # Small shapes consistent with the module.
    B, Cin, H, W = 2, 4, 16, 16
    backbone_dim = 32
    fc1_size, fc_size = 128, 64
    readout_size = 7  # cholec80 surgical phases

    root = jax.random.PRNGKey(0)
    kx, kp = jax.random.split(root)
    x = jax.random.normal(kx, (B, Cin, H, W), jnp.float32)   # NCHW, PyTorch style
    params = init_params(kp, Cin, backbone_dim, fc1_size, fc_size, readout_size)

    out = cnn_only_forward(x, params, readout_size=readout_size)
    out = jax.block_until_ready(out)
    assert out.shape == (B, readout_size), out.shape
    assert out.dtype == jnp.float32, out.dtype

    ref = jax.block_until_ready(_reference_forward(x, params, readout_size))
    assert jnp.allclose(out, ref, rtol=2e-2, atol=2e-2), (out, ref)
    print("KERNEL_OK")
</pallas_src>

<mosaic_0001>
module attributes {stable_mosaic.version = 11 : i64} {
  func.func @_cnn_only_kernel(%arg0: i32, %arg1: i32, %arg2: memref<1x18x18x4xbf16, #tpu.memory_space<vmem>>, %arg3: memref<9x4x32xbf16, #tpu.memory_space<vmem>>, %arg4: memref<1x32xf32, #tpu.memory_space<vmem>>, %arg5: memref<32x128xbf16, #tpu.memory_space<vmem>>, %arg6: memref<1x128xf32, #tpu.memory_space<vmem>>, %arg7: memref<128x64xbf16, #tpu.memory_space<vmem>>, %arg8: memref<1x64xf32, #tpu.memory_space<vmem>>, %arg9: memref<64x128xbf16, #tpu.memory_space<vmem>>, %arg10: memref<1x128xf32, #tpu.memory_space<vmem>>, %arg11: memref<1x1x128xf32, #tpu.memory_space<vmem>>, %arg12: memref<1x32xf32, #tpu.memory_space<vmem>>) attributes {dimension_semantics = [#tpu.dimension_semantics<parallel>, #tpu.dimension_semantics<arbitrary>], iteration_bounds = array<i64: 2, 2>, scalar_prefetch = 0 : i64, scratch_operands = 1 : i64, tpu.core_type = #tpu.core_type<tc>, window_params = [{transform_indices = @transform_0, window_bounds = array<i64: 1, 18, 18, 4>}, {pipeline_mode = #tpu.pipeline_mode<synchronous>, transform_indices = @transform_1, window_bounds = array<i64: 9, 4, 32>}, {pipeline_mode = #tpu.pipeline_mode<synchronous>, transform_indices = @transform_2, window_bounds = array<i64: 1, 32>}, {pipeline_mode = #tpu.pipeline_mode<synchronous>, transform_indices = @transform_3, window_bounds = array<i64: 32, 128>}, {pipeline_mode = #tpu.pipeline_mode<synchronous>, transform_indices = @transform_4, window_bounds = array<i64: 1, 128>}, {pipeline_mode = #tpu.pipeline_mode<synchronous>, transform_indices = @transform_5, window_bounds = array<i64: 128, 64>}, {pipeline_mode = #tpu.pipeline_mode<synchronous>, transform_indices = @transform_6, window_bounds = array<i64: 1, 64>}, {pipeline_mode = #tpu.pipeline_mode<synchronous>, transform_indices = @transform_7, window_bounds = array<i64: 64, 128>}, {pipeline_mode = #tpu.pipeline_mode<synchronous>, transform_indices = @transform_8, window_bounds = array<i64: 1, 128>}, {transform_indices = @transform_9, window_bounds = array<i64: 1, 1, 128>}]} {
    %c0_i32 = arith.constant 0 : i32
    %0 = arith.cmpi eq, %arg1, %c0_i32 : i32
    %1 = arith.extui %0 : i1 to i32
    %c0_i32_0 = arith.constant 0 : i32
    %2 = arith.cmpi ne, %1, %c0_i32_0 : i32
    scf.if %2 {
      %cst_73 = arith.constant 0.000000e+00 : f32
      %100 = vector.broadcast %cst_73 : f32 to vector<1x32xf32>
      %c0_74 = arith.constant 0 : index
      %c0_75 = arith.constant 0 : index
      %101 = vector.load %arg12[%c0_74, %c0_75] : memref<1x32xf32, #tpu.memory_space<vmem>>, vector<1x32xf32>
      tpu.vector_store %arg12[%c0_74, %c0_75], %100 {strides = array<i32>} : memref<1x32xf32, #tpu.memory_space<vmem>>, vector<1x32xf32>,
    } else {
    }
    %c8_i32 = arith.constant 8 : i32
    %3 = arith.muli %arg1, %c8_i32 : i32
    %4 = tpu.assume_multiple %3, 8 : i32
    %cst = arith.constant 0.000000e+00 : f32
    %5 = vector.broadcast %cst : f32 to vector<128x32xf32>
    %c0_i32_1 = arith.constant 0 : i32
    %6 = arith.addi %4, %c0_i32_1 : i32
    %c0 = arith.constant 0 : index
    %7 = arith.index_cast %6 : i32 to index
    %c0_2 = arith.constant 0 : index
    %c0_3 = arith.constant 0 : index
    %8 = vector.load %arg2[%c0, %7, %c0_2, %c0_3] : memref<1x18x18x4xbf16, #tpu.memory_space<vmem>>, vector<1x8x16x4xbf16>
    %9 = vector.shape_cast %8 : vector<1x8x16x4xbf16> to vector<8x16x4xbf16>
    %10 = vector.shape_cast %9 : vector<8x16x4xbf16> to vector<128x4xbf16>
    %c0_4 = arith.constant 0 : index
    %c0_5 = arith.constant 0 : index
    %c0_6 = arith.constant 0 : index
    %11 = vector.load %arg3[%c0_4, %c0_5, %c0_6] : memref<9x4x32xbf16, #tpu.memory_space<vmem>>, vector<1x4x32xbf16>
    %12 = vector.shape_cast %11 : vector<1x4x32xbf16> to vector<4x32xbf16>
    %cst_7 = arith.constant dense<0.000000e+00> : vector<128x32xf32>
    %13 = tpu.matmul %10, %12, %cst_7 {dimension_numbers = #tpu.dot_dimension_numbers<[1], [0], [0], [1], [0, 0, 1, 1], [], []>} : vector<128x4xbf16>, vector<4x32xbf16>, vector<128x32xf32> -> vector<128x32xf32>
    %14 = arith.addf %5, %13 : vector<128x32xf32>
    %c0_i32_8 = arith.constant 0 : i32
    %15 = arith.addi %4, %c0_i32_8 : i32
    %c0_9 = arith.constant 0 : index
    %16 = arith.index_cast %15 : i32 to index
    %c1 = arith.constant 1 : index
    %c0_10 = arith.constant 0 : index
    %17 = vector.load %arg2[%c0_9, %16, %c1, %c0_10] : memref<1x18x18x4xbf16, #tpu.memory_space<vmem>>, vector<1x8x16x4xbf16>
    %18 = vector.shape_cast %17 : vector<1x8x16x4xbf16> to vector<8x16x4xbf16>
    %19 = vector.shape_cast %18 : vector<8x16x4xbf16> to vector<128x4xbf16>
    %c1_11 = arith.constant 1 : index
    %c0_12 = arith.constant 0 : index
    %c0_13 = arith.constant 0 : index
    %20 = vector.load %arg3[%c1_11, %c0_12, %c0_13] : memref<9x4x32xbf16, #tpu.memory_space<vmem>>, vector<1x4x32xbf16>
    %21 = vector.shape_cast %20 : vector<1x4x32xbf16> to vector<4x32xbf16>
    %cst_14 = arith.constant dense<0.000000e+00> : vector<128x32xf32>
    %22 = tpu.matmul %19, %21, %cst_14 {dimension_numbers = #tpu.dot_dimension_numbers<[1], [0], [0], [1], [0, 0, 1, 1], [], []>} : vector<128x4xbf16>, vector<4x32xbf16>, vector<128x32xf32> -> vector<128x32xf32>
    %23 = arith.addf %14, %22 : vector<128x32xf32>
    %c0_i32_15 = arith.constant 0 : i32
    %24 = arith.addi %4, %c0_i32_15 : i32
    %c0_16 = arith.constant 0 : index
    %25 = arith.index_cast %24 : i32 to index
    %c2 = arith.constant 2 : index
    %c0_17 = arith.constant 0 : index
    %26 = vector.load %arg2[%c0_16, %25, %c2, %c0_17] : memref<1x18x18x4xbf16, #tpu.memory_space<vmem>>, vector<1x8x16x4xbf16>
    %27 = vector.shape_cast %26 : vector<1x8x16x4xbf16> to vector<8x16x4xbf16>
    %28 = vector.shape_cast %27 : vector<8x16x4xbf16> to vector<128x4xbf16>
    %c2_18 = arith.constant 2 : index
    %c0_19 = arith.constant 0 : index
    %c0_20 = arith.constant 0 : index
    %29 = vector.load %arg3[%c2_18, %c0_19, %c0_20] : memref<9x4x32xbf16, #tpu.memory_space<vmem>>, vector<1x4x32xbf16>
    %30 = vector.shape_cast %29 : vector<1x4x32xbf16> to vector<4x32xbf16>
    %cst_21 = arith.constant dense<0.000000e+00> : vector<128x32xf32>
    %31 = tpu.matmul %28, %30, %cst_21 {dimension_numbers = #tpu.dot_dimension_numbers<[1], [0], [0], [1], [0, 0, 1, 1], [], []>} : vector<128x4xbf16>, vector<4x32xbf16>, vector<128x32xf32> -> vector<128x32xf32>
    %32 = arith.addf %23, %31 : vector<128x32xf32>
    %c1_i32 = arith.constant 1 : i32
    %33 = arith.addi %4, %c1_i32 : i32
    %c0_22 = arith.constant 0 : index
    %34 = arith.index_cast %33 : i32 to index
    %c0_23 = arith.constant 0 : index
    %c0_24 = arith.constant 0 : index
    %35 = vector.load %arg2[%c0_22, %34, %c0_23, %c0_24] : memref<1x18x18x4xbf16, #tpu.memory_space<vmem>>, vector<1x8x16x4xbf16>
    %36 = vector.shape_cast %35 : vector<1x8x16x4xbf16> to vector<8x16x4xbf16>
    %37 = vector.shape_cast %36 : vector<8x16x4xbf16> to vector<128x4xbf16>
    %c3 = arith.constant 3 : index
    %c0_25 = arith.constant 0 : index
    %c0_26 = arith.constant 0 : index
    %38 = vector.load %arg3[%c3, %c0_25, %c0_26] : memref<9x4x32xbf16, #tpu.memory_space<vmem>>, vector<1x4x32xbf16>
    %39 = vector.shape_cast %38 : vector<1x4x32xbf16> to vector<4x32xbf16>
    %cst_27 = arith.constant dense<0.000000e+00> : vector<128x32xf32>
    %40 = tpu.matmul %37, %39, %cst_27 {dimension_numbers = #tpu.dot_dimension_numbers<[1], [0], [0], [1], [0, 0, 1, 1], [], []>} : vector<128x4xbf16>, vector<4x32xbf16>, vector<128x32xf32> -> vector<128x32xf32>
    %41 = arith.addf %32, %40 : vector<128x32xf32>
    %c1_i32_28 = arith.constant 1 : i32
    %42 = arith.addi %4, %c1_i32_28 : i32
    %c0_29 = arith.constant 0 : index
    %43 = arith.index_cast %42 : i32 to index
    %c1_30 = arith.constant 1 : index
    %c0_31 = arith.constant 0 : index
    %44 = vector.load %arg2[%c0_29, %43, %c1_30, %c0_31] : memref<1x18x18x4xbf16, #tpu.memory_space<vmem>>, vector<1x8x16x4xbf16>
    %45 = vector.shape_cast %44 : vector<1x8x16x4xbf16> to vector<8x16x4xbf16>
    %46 = vector.shape_cast %45 : vector<8x16x4xbf16> to vector<128x4xbf16>
    %c4 = arith.constant 4 : index
    %c0_32 = arith.constant 0 : index
    %c0_33 = arith.constant 0 : index
    %47 = vector.load %arg3[%c4, %c0_32, %c0_33] : memref<9x4x32xbf16, #tpu.memory_space<vmem>>, vector<1x4x32xbf16>
    %48 = vector.shape_cast %47 : vector<1x4x32xbf16> to vector<4x32xbf16>
    %cst_34 = arith.constant dense<0.000000e+00> : vector<128x32xf32>
    %49 = tpu.matmul %46, %48, %cst_34 {dimension_numbers = #tpu.dot_dimension_numbers<[1], [0], [0], [1], [0, 0, 1, 1], [], []>} : vector<128x4xbf16>, vector<4x32xbf16>, vector<128x32xf32> -> vector<128x32xf32>
    %50 = arith.addf %41, %49 : vector<128x32xf32>
    %c1_i32_35 = arith.constant 1 : i32
    %51 = arith.addi %4, %c1_i32_35 : i32
    %c0_36 = arith.constant 0 : index
    %52 = arith.index_cast %51 : i32 to index
    %c2_37 = arith.constant 2 : index
    %c0_38 = arith.constant 0 : index
    %53 = vector.load %arg2[%c0_36, %52, %c2_37, %c0_38] : memref<1x18x18x4xbf16, #tpu.memory_space<vmem>>, vector<1x8x16x4xbf16>
    %54 = vector.shape_cast %53 : vector<1x8x16x4xbf16> to vector<8x16x4xbf16>
    %55 = vector.shape_cast %54 : vector<8x16x4xbf16> to vector<128x4xbf16>
    %c5 = arith.constant 5 : index
    %c0_39 = arith.constant 0 : index
    %c0_40 = arith.constant 0 : index
    %56 = vector.load %arg3[%c5, %c0_39, %c0_40] : memref<9x4x32xbf16, #tpu.memory_space<vmem>>, vector<1x4x32xbf16>
    %57 = vector.shape_cast %56 : vector<1x4x32xbf16> to vector<4x32xbf16>
    %cst_41 = arith.constant dense<0.000000e+00> : vector<128x32xf32>
    %58 = tpu.matmul %55, %57, %cst_41 {dimension_numbers = #tpu.dot_dimension_numbers<[1], [0], [0], [1], [0, 0, 1, 1], [], []>} : vector<128x4xbf16>, vector<4x32xbf16>, vector<128x32xf32> -> vector<128x32xf32>
    %59 = arith.addf %50, %58 : vector<128x32xf32>
    %c2_i32 = arith.constant 2 : i32
    %60 = arith.addi %4, %c2_i32 : i32
    %c0_42 = arith.constant 0 : index
    %61 = arith.index_cast %60 : i32 to index
    %c0_43 = arith.constant 0 : index
    %c0_44 = arith.constant 0 : index
    %62 = vector.load %arg2[%c0_42, %61, %c0_43, %c0_44] : memref<1x18x18x4xbf16, #tpu.memory_space<vmem>>, vector<1x8x16x4xbf16>
    %63 = vector.shape_cast %62 : vector<1x8x16x4xbf16> to vector<8x16x4xbf16>
    %64 = vector.shape_cast %63 : vector<8x16x4xbf16> to vector<128x4xbf16>
    %c6 = arith.constant 6 : index
    %c0_45 = arith.constant 0 : index
    %c0_46 = arith.constant 0 : index
    %65 = vector.load %arg3[%c6, %c0_45, %c0_46] : memref<9x4x32xbf16, #tpu.memory_space<vmem>>, vector<1x4x32xbf16>
    %66 = vector.shape_cast %65 : vector<1x4x32xbf16> to vector<4x32xbf16>
    %cst_47 = arith.constant dense<0.000000e+00> : vector<128x32xf32>
    %67 = tpu.matmul %64, %66, %cst_47 {dimension_numbers = #tpu.dot_dimension_numbers<[1], [0], [0], [1], [0, 0, 1, 1], [], []>} : vector<128x4xbf16>, vector<4x32xbf16>, vector<128x32xf32> -> vector<128x32xf32>
    %68 = arith.addf %59, %67 : vector<128x32xf32>
    %c2_i32_48 = arith.constant 2 : i32
    %69 = arith.addi %4, %c2_i32_48 : i32
    %c0_49 = arith.constant 0 : index
    %70 = arith.index_cast %69 : i32 to index
    %c1_50 = arith.constant 1 : index
    %c0_51 = arith.constant 0 : index
    %71 = vector.load %arg2[%c0_49, %70, %c1_50, %c0_51] : memref<1x18x18x4xbf16, #tpu.memory_space<vmem>>, vector<1x8x16x4xbf16>
    %72 = vector.shape_cast %71 : vector<1x8x16x4xbf16> to vector<8x16x4xbf16>
    %73 = vector.shape_cast %72 : vector<8x16x4xbf16> to vector<128x4xbf16>
    %c7 = arith.constant 7 : index
    %c0_52 = arith.constant 0 : index
    %c0_53 = arith.constant 0 : index
    %74 = vector.load %arg3[%c7, %c0_52, %c0_53] : memref<9x4x32xbf16, #tpu.memory_space<vmem>>, vector<1x4x32xbf16>
    %75 = vector.shape_cast %74 : vector<1x4x32xbf16> to vector<4x32xbf16>
    %cst_54 = arith.constant dense<0.000000e+00> : vector<128x32xf32>
    %76 = tpu.matmul %73, %75, %cst_54 {dimension_numbers = #tpu.dot_dimension_numbers<[1], [0], [0], [1], [0, 0, 1, 1], [], []>} : vector<128x4xbf16>, vector<4x32xbf16>, vector<128x32xf32> -> vector<128x32xf32>
    %77 = arith.addf %68, %76 : vector<128x32xf32>
    %c2_i32_55 = arith.constant 2 : i32
    %78 = arith.addi %4, %c2_i32_55 : i32
    %c0_56 = arith.constant 0 : index
    %79 = arith.index_cast %78 : i32 to index
    %c2_57 = arith.constant 2 : index
    %c0_58 = arith.constant 0 : index
    %80 = vector.load %arg2[%c0_56, %79, %c2_57, %c0_58] : memref<1x18x18x4xbf16, #tpu.memory_space<vmem>>, vector<1x8x16x4xbf16>
    %81 = vector.shape_cast %80 : vector<1x8x16x4xbf16> to vector<8x16x4xbf16>
    %82 = vector.shape_cast %81 : vector<8x16x4xbf16> to vector<128x4xbf16>
    %c8 = arith.constant 8 : index
    %c0_59 = arith.constant 0 : index
    %c0_60 = arith.constant 0 : index
    %83 = vector.load %arg3[%c8, %c0_59, %c0_60] : memref<9x4x32xbf16, #tpu.memory_space<vmem>>, vector<1x4x32xbf16>
    %84 = vector.shape_cast %83 : vector<1x4x32xbf16> to vector<4x32xbf16>
    %cst_61 = arith.constant dense<0.000000e+00> : vector<128x32xf32>
    %85 = tpu.matmul %82, %84, %cst_61 {dimension_numbers = #tpu.dot_dimension_numbers<[1], [0], [0], [1], [0, 0, 1, 1], [], []>} : vector<128x4xbf16>, vector<4x32xbf16>, vector<128x32xf32> -> vector<128x32xf32>
    %86 = arith.addf %77, %85 : vector<128x32xf32>
    %c0_62 = arith.constant 0 : index
    %c0_63 = arith.constant 0 : index
    %87 = vector.load %arg4[%c0_62, %c0_63] : memref<1x32xf32, #tpu.memory_space<vmem>>, vector<1x32xf32>
    %88 = vector.broadcast %87 : vector<1x32xf32> to vector<128x32xf32>
    %89 = arith.addf %86, %88 : vector<128x32xf32>
    %cst_64 = arith.constant 0.000000e+00 : f32
    %90 = vector.broadcast %cst_64 : f32 to vector<128x32xf32>
    %91 = arith.maximumf %89, %90 : vector<128x32xf32>
    %cst_65 = arith.constant 1.000000e+00 : f32
    %92 = vector.broadcast %cst_65 : f32 to vector<1x128xf32>
    %c0_66 = arith.constant 0 : index
    %c0_67 = arith.constant 0 : index
    %93 = vector.load %arg12[%c0_66, %c0_67] : memref<1x32xf32, #tpu.memory_space<vmem>>, vector<1x32xf32>
    %cst_68 = arith.constant dense<0.000000e+00> : vector<1x32xf32>
    %94 = tpu.matmul %92, %91, %cst_68 {dimension_numbers = #tpu.dot_dimension_numbers<[1], [0], [0], [1], [0, 0, 1, 1], [], []>} : vector<1x128xf32>, vector<128x32xf32>, vector<1x32xf32> -> vector<1x32xf32>
    %95 = arith.addf %93, %94 : vector<1x32xf32>
    %c0_69 = arith.constant 0 : index
    %c0_70 = arith.constant 0 : index
    %96 = vector.load %arg12[%c0_69, %c0_70] : memref<1x32xf32, #tpu.memory_space<vmem>>, vector<1x32xf32>
    tpu.vector_store %arg12[%c0_69, %c0_70], %95 {strides = array<i32>} : memref<1x32xf32, #tpu.memory_space<vmem>>, vector<1x32xf32>,
    %c1_i32_71 = arith.constant 1 : i32
    %97 = arith.cmpi eq, %arg1, %c1_i32_71 : i32
    %98 = arith.extui %97 : i1 to i32
    %c0_i32_72 = arith.constant 0 : i32
    %99 = arith.cmpi ne, %98, %c0_i32_72 : i32
    scf.if %99 {
      %c0_73 = arith.constant 0 : index
      %c0_74 = arith.constant 0 : index
      %100 = vector.load %arg12[%c0_73, %c0_74] : memref<1x32xf32, #tpu.memory_space<vmem>>, vector<1x32xf32>
      %cst_75 = arith.constant 3.906250e-03 : f32
      %101 = vector.broadcast %cst_75 : f32 to vector<1x32xf32>
      %102 = arith.mulf %100, %101 : vector<1x32xf32>
      %103 = arith.truncf %102 : vector<1x32xf32> to vector<1x32xbf16>
      %c0_76 = arith.constant 0 : index
      %c0_77 = arith.constant 0 : index
      %104 = vector.load %arg5[%c0_76, %c0_77] : memref<32x128xbf16, #tpu.memory_space<vmem>>, vector<32x128xbf16>
      %cst_78 = arith.constant dense<0.000000e+00> : vector<1x128xf32>
      %105 = tpu.matmul %103, %104, %cst_78 {dimension_numbers = #tpu.dot_dimension_numbers<[1], [0], [0], [1], [0, 0, 1, 1], [], []>} : vector<1x32xbf16>, vector<32x128xbf16>, vector<1x128xf32> -> vector<1x128xf32>
      %c0_79 = arith.constant 0 : index
      %c0_80 = arith.constant 0 : index
      %106 = vector.load %arg6[%c0_79, %c0_80] : memref<1x128xf32, #tpu.memory_space<vmem>>, vector<1x128xf32>
      %107 = arith.addf %105, %106 : vector<1x128xf32>
      %cst_81 = arith.constant 0.000000e+00 : f32
      %108 = vector.broadcast %cst_81 : f32 to vector<1x128xf32>
      %109 = arith.cmpf ogt, %107, %108 : vector<1x128xf32>
      %cst_82 = arith.constant 0.00999999977 : f32
      %110 = vector.broadcast %cst_82 : f32 to vector<1x128xf32>
      %111 = arith.mulf %110, %107 : vector<1x128xf32>
      %112 = arith.select %109, %107, %111 : vector<1x128xi1>, vector<1x128xf32>
      %113 = arith.truncf %112 : vector<1x128xf32> to vector<1x128xbf16>
      %c0_83 = arith.constant 0 : index
      %c0_84 = arith.constant 0 : index
      %114 = vector.load %arg7[%c0_83, %c0_84] : memref<128x64xbf16, #tpu.memory_space<vmem>>, vector<128x64xbf16>
      %cst_85 = arith.constant dense<0.000000e+00> : vector<1x64xf32>
      %115 = tpu.matmul %113, %114, %cst_85 {dimension_numbers = #tpu.dot_dimension_numbers<[1], [0], [0], [1], [0, 0, 1, 1], [], []>} : vector<1x128xbf16>, vector<128x64xbf16>, vector<1x64xf32> -> vector<1x64xf32>
      %c0_86 = arith.constant 0 : index
      %c0_87 = arith.constant 0 : index
      %116 = vector.load %arg8[%c0_86, %c0_87] : memref<1x64xf32, #tpu.memory_space<vmem>>, vector<1x64xf32>
      %117 = arith.addf %115, %116 : vector<1x64xf32>
      %cst_88 = arith.constant 0.000000e+00 : f32
      %118 = vector.broadcast %cst_88 : f32 to vector<1x64xf32>
      %119 = arith.cmpf ogt, %117, %118 : vector<1x64xf32>
      %cst_89 = arith.constant 0.00999999977 : f32
      %120 = vector.broadcast %cst_89 : f32 to vector<1x64xf32>
      %121 = arith.mulf %120, %117 : vector<1x64xf32>
      %122 = arith.select %119, %117, %121 : vector<1x64xi1>, vector<1x64xf32>
      %123 = arith.truncf %122 : vector<1x64xf32> to vector<1x64xbf16>
      %c0_90 = arith.constant 0 : index
      %c0_91 = arith.constant 0 : index
      %124 = vector.load %arg9[%c0_90, %c0_91] : memref<64x128xbf16, #tpu.memory_space<vmem>>, vector<64x128xbf16>
      %cst_92 = arith.constant dense<0.000000e+00> : vector<1x128xf32>
      %125 = tpu.matmul %123, %124, %cst_92 {dimension_numbers = #tpu.dot_dimension_numbers<[1], [0], [0], [1], [0, 0, 1, 1], [], []>} : vector<1x64xbf16>, vector<64x128xbf16>, vector<1x128xf32> -> vector<1x128xf32>
      %c0_93 = arith.constant 0 : index
      %c0_94 = arith.constant 0 : index
      %126 = vector.load %arg10[%c0_93, %c0_94] : memref<1x128xf32, #tpu.memory_space<vmem>>, vector<1x128xf32>
      %127 = arith.addf %125, %126 : vector<1x128xf32>
      %c0_95 = arith.constant 0 : index
      %c0_96 = arith.constant 0 : index
      %c0_97 = arith.constant 0 : index
      %128 = vector.load %arg11[%c0_95, %c0_96, %c0_97] : memref<1x1x128xf32, #tpu.memory_space<vmem>>, vector<1x1x128xf32>
      %129 = vector.shape_cast %128 : vector<1x1x128xf32> to vector<1x128xf32>
      %130 = vector.shape_cast %127 : vector<1x128xf32> to vector<1x1x128xf32>
      tpu.vector_store %arg11[%c0_95, %c0_96, %c0_97], %130 {strides = array<i32>} : memref<1x1x128xf32, #tpu.memory_space<vmem>>, vector<1x1x128xf32>,
    } else {
    }
    return
  }
  func.func @transform_0(%arg0: i32, %arg1: i32) -> (i32, i32, i32, i32) {
    %c0_i32 = arith.constant 0 : i32
    %c0_i32_0 = arith.constant 0 : i32
    %c0_i32_1 = arith.constant 0 : i32
    %c0_i32_2 = arith.constant 0 : i32
    return %arg0, %c0_i32, %c0_i32_0, %c0_i32_1 : i32, i32, i32, i32
  }
  func.func @transform_1(%arg0: i32, %arg1: i32) -> (i32, i32, i32) {
    %c0_i32 = arith.constant 0 : i32
    %c0_i32_0 = arith.constant 0 : i32
    %c0_i32_1 = arith.constant 0 : i32
    %c0_i32_2 = arith.constant 0 : i32
    return %c0_i32, %c0_i32_0, %c0_i32_1 : i32, i32, i32
  }
  func.func @transform_2(%arg0: i32, %arg1: i32) -> (i32, i32) {
    %c0_i32 = arith.constant 0 : i32
    %c0_i32_0 = arith.constant 0 : i32
    %c0_i32_1 = arith.constant 0 : i32
    return %c0_i32, %c0_i32_0 : i32, i32
  }
  func.func @transform_3(%arg0: i32, %arg1: i32) -> (i32, i32) {
    %c0_i32 = arith.constant 0 : i32
    %c0_i32_0 = arith.constant 0 : i32
    %c0_i32_1 = arith.constant 0 : i32
    return %c0_i32, %c0_i32_0 : i32, i32
  }
  func.func @transform_4(%arg0: i32, %arg1: i32) -> (i32, i32) {
    %c0_i32 = arith.constant 0 : i32
    %c0_i32_0 = arith.constant 0 : i32
    %c0_i32_1 = arith.constant 0 : i32
    return %c0_i32, %c0_i32_0 : i32, i32
  }
  func.func @transform_5(%arg0: i32, %arg1: i32) -> (i32, i32) {
    %c0_i32 = arith.constant 0 : i32
    %c0_i32_0 = arith.constant 0 : i32
    %c0_i32_1 = arith.constant 0 : i32
    return %c0_i32, %c0_i32_0 : i32, i32
  }
  func.func @transform_6(%arg0: i32, %arg1: i32) -> (i32, i32) {
    %c0_i32 = arith.constant 0 : i32
    %c0_i32_0 = arith.constant 0 : i32
    %c0_i32_1 = arith.constant 0 : i32
    return %c0_i32, %c0_i32_0 : i32, i32
  }
  func.func @transform_7(%arg0: i32, %arg1: i32) -> (i32, i32) {
    %c0_i32 = arith.constant 0 : i32
    %c0_i32_0 = arith.constant 0 : i32
    %c0_i32_1 = arith.constant 0 : i32
    return %c0_i32, %c0_i32_0 : i32, i32
  }
  func.func @transform_8(%arg0: i32, %arg1: i32) -> (i32, i32) {
    %c0_i32 = arith.constant 0 : i32
    %c0_i32_0 = arith.constant 0 : i32
    %c0_i32_1 = arith.constant 0 : i32
    return %c0_i32, %c0_i32_0 : i32, i32
  }
  func.func @transform_9(%arg0: i32, %arg1: i32) -> (i32, i32, i32) {
    %c0_i32 = arith.constant 0 : i32
    %c0_i32_0 = arith.constant 0 : i32
    %c0_i32_1 = arith.constant 0 : i32
    return %arg0, %c0_i32, %c0_i32_0 : i32, i32, i32
  }
}

</mosaic_0001>

<llo_original>
// kernel: cnn_only_forward.1
$region0: #{cnn_only_forward.1}
  #allocation0 [shape = 'u32[]', space=smem, size = 0x4, offset = 0x4, fixed_abs, tag = 'smem constant byte address 0x4 - core index']
  #allocation1 [shape = 'u32[144,128]{1,0:T(1,128)}', space=vmem, size = 0x12000, scoped, tag = 'internal scratch']
  #allocation2 [shape = 'f32[1,32]{1,0:T(1,128)}', space=vmem, size = 0x200, scoped, tag = 'scratch operand']
  %s0 = inlined_call_operand.vmem [shape: bf16[2,18,18,4], index: 0, kind: input, shape index: {}]
  %s1 = inlined_call_operand.vmem [shape: bf16[9,4,32], index: 1, kind: input, shape index: {}]
  %s2 = inlined_call_operand.vmem [shape: f32[1,32], index: 2, kind: input, shape index: {}]
  %s3 = inlined_call_operand.vmem [shape: bf16[32,128], index: 3, kind: input, shape index: {}]
  %s4 = inlined_call_operand.vmem [shape: f32[1,128], index: 4, kind: input, shape index: {}]
  %s5 = inlined_call_operand.vmem [shape: bf16[128,64], index: 5, kind: input, shape index: {}]
  %s6 = inlined_call_operand.vmem [shape: f32[1,64], index: 6, kind: input, shape index: {}]
  %s7 = inlined_call_operand.vmem [shape: bf16[64,128], index: 7, kind: input, shape index: {}]
  %s8 = inlined_call_operand.vmem [shape: f32[1,128], index: 8, kind: input, shape index: {}]
  %s9 = inlined_call_operand.hbm [shape: f32[2,1,128], index: 9, kind: output, shape index: {}]
  %s10 = sld [smem:[#allocation0]]
  $region77: #{cnn_only_forward.1} parent=0
    _
  %s12 = ssub.s32 1, %s10
  %s13 = scalar_select 0, %s12, %s10
  $region1: #{cnn_only_forward.1} parent=0
    #allocation3 [shape = 'u8[1024]{0}', space=vmem, size = 0x400, scoped, tag = 'output window, operand 0']
    #allocation4 [shape = 's32[2]{0}', space=sflag, size = 0x8, scoped, tag = 'scoped memory for cnn_only_forward.1']
    %14 = vsyncpa [#allocation4], 0
    %s15 = scalar_lea.sflag [#allocation4], 1
    %16 = vsyncpa %s15, 0
    loop: start=0, step=1, limit=6
    $region2: #{cnn_only_forward.1} parent=1 // loop_pre_header
      _
    $region3: #{cnn_only_forward.1} parent=1 // loop_header
      %s18 = sphi 0, %s22
      %p19 = scmp.ge.s32.totalorder %s18, 6
      %s25 = sphi 0, %s37
      %s26 = sphi 0, %s33
      %s27 = sphi 0, %s25
      %s28 = sphi 0, %s26
      %s29 = sphi 0, %s27
      %s30 = sphi 0, %s28
      %s40 = sphi 0, %s42
      %s43 = sphi 0, %s40
      %s44 = sphi 0, %s43
      %s60 = sphi 0, %s44
      %s64 = sphi 0, %s64
      %s66 = sphi 0, %s64
      %s67 = sphi 0, %s66
      %s81 = sphi 0, %s67
      %s85 = sphi 0, %s85
      %s87 = sphi 0, %s85
      %s88 = sphi 0, %s87
      %s102 = sphi 0, %s88
      %s106 = sphi 0, %s106
      %s108 = sphi 0, %s106
      %s109 = sphi 0, %s108
      %s123 = sphi 0, %s109
      %s127 = sphi 0, %s127
      %s129 = sphi 0, %s127
      %s130 = sphi 0, %s129
      %s144 = sphi 0, %s130
      %s148 = sphi 0, %s148
      %s150 = sphi 0, %s148
      %s151 = sphi 0, %s150
      %s165 = sphi 0, %s151
      %s169 = sphi 0, %s169
      %s171 = sphi 0, %s169
      %s172 = sphi 0, %s171
      %s186 = sphi 0, %s172
      %s190 = sphi 0, %s190
      %s192 = sphi 0, %s190
      %s193 = sphi 0, %s192
      %s207 = sphi 0, %s193
      %s211 = sphi 0, %s211
      %s213 = sphi 0, %s211
      %s214 = sphi 0, %s213
      %s228 = sphi 0, %s214
      %s234 = sphi 0, %s236
      %s237 = sphi 0, %s234
      %s238 = sphi 0, %s237
      %s254 = sphi 0, %s238
    $region4: #{cnn_only_forward.1} parent=1 // loop_header_branch
      %21 = sbr.rel (%p19) target = $region8
    $region5: #{cnn_only_forward.1} parent=1 // loop_body
      %s23 = ssub.s32 %s18, 1
      %s24 = ssub.s32 %s18, 2
      %s31 = sadd.s32 1, %s26
      %p32 = scmp.ge.s32.totalorder %s31, 2
      %s33 = scalar_select %p32, 0, %s31
      %s34 = sadd.s32 1, %s25
      %s35 = scalar_select %p32, %s34, %s25
      %p36 = scmp.ge.s32.totalorder %s35, 2
      %s37 = scalar_select %p36, 0, %s35
      %s38 = ssub.s32 %s25, %s37
      %p39 = scmp.eq.s32.totalorder %s38, 0
      %s41 = sadd.s32 %s40, 1
      %s42 = scalar_select %p39, %s40, %s41
      %p45 = pneg %p39
      %p46 = scmp.eq.s32.totalorder %s18, 3
      %p47 = por %p45, %p46
      %p48 = scmp.ne.s32.totalorder %s40, %s43
      %p49 = scmp.eq.s32.totalorder %s18, 0
      %p50 = por %p48, %p49
      %p51 = scmp.ne.s32.totalorder %s40, %s43
      %p52 = scmp.eq.s32.totalorder %s23, 3
      %p53 = por %p51, %p52
      %p54 = scmp.ne.s32.totalorder %s43, %s44
      %p55 = scmp.eq.s32.totalorder %s23, 0
      %p56 = por %p54, %p55
      %p57 = scmp.ne.s32.totalorder %s43, %s44
      %p58 = scmp.eq.s32.totalorder %s24, 3
      %p59 = por %p57, %p58
      %p61 = scmp.ne.s32.totalorder %s44, %s60
      %p62 = scmp.eq.s32.totalorder %s24, 0
      %p63 = por %p61, %p62
      %s65 = sadd.s32 %s64, 1
      %p68 = scmp.eq.s32.totalorder %s18, 3
      %p69 = scmp.ne.s32.totalorder %s64, %s66
      %p70 = scmp.eq.s32.totalorder %s18, 0
      %p71 = por %p69, %p70
      %p72 = scmp.ne.s32.totalorder %s64, %s66
      %p73 = scmp.eq.s32.totalorder %s23, 3
      %p74 = por %p72, %p73
      %p75 = scmp.ne.s32.totalorder %s66, %s67
      %p76 = scmp.eq.s32.totalorder %s23, 0
      %p77 = por %p75, %p76
      %p78 = scmp.ne.s32.totalorder %s66, %s67
      %p79 = scmp.eq.s32.totalorder %s24, 3
      %p80 = por %p78, %p79
      %p82 = scmp.ne.s32.totalorder %s67, %s81
      %p83 = scmp.eq.s32.totalorder %s24, 0
      %p84 = por %p82, %p83
      %s86 = sadd.s32 %s85, 1
      %p89 = scmp.eq.s32.totalorder %s18, 3
      %p90 = scmp.ne.s32.totalorder %s85, %s87
      %p91 = scmp.eq.s32.totalorder %s18, 0
      %p92 = por %p90, %p91
      %p93 = scmp.ne.s32.totalorder %s85, %s87
      %p94 = scmp.eq.s32.totalorder %s23, 3
      %p95 = por %p93, %p94
      %p96 = scmp.ne.s32.totalorder %s87, %s88
      %p97 = scmp.eq.s32.totalorder %s23, 0
      %p98 = por %p96, %p97
      %p99 = scmp.ne.s32.totalorder %s87, %s88
      %p100 = scmp.eq.s32.totalorder %s24, 3
      %p101 = por %p99, %p100
      %p103 = scmp.ne.s32.totalorder %s88, %s102
      %p104 = scmp.eq.s32.totalorder %s24, 0
      %p105 = por %p103, %p104
      %s107 = sadd.s32 %s106, 1
      %p110 = scmp.eq.s32.totalorder %s18, 3
      %p111 = scmp.ne.s32.totalorder %s106, %s108
      %p112 = scmp.eq.s32.totalorder %s18, 0
      %p113 = por %p111, %p112
      %p114 = scmp.ne.s32.totalorder %s106, %s108
      %p115 = scmp.eq.s32.totalorder %s23, 3
      %p116 = por %p114, %p115
      %p117 = scmp.ne.s32.totalorder %s108, %s109
      %p118 = scmp.eq.s32.totalorder %s23, 0
      %p119 = por %p117, %p118
      %p120 = scmp.ne.s32.totalorder %s108, %s109
      %p121 = scmp.eq.s32.totalorder %s24, 3
      %p122 = por %p120, %p121
      %p124 = scmp.ne.s32.totalorder %s109, %s123
      %p125 = scmp.eq.s32.totalorder %s24, 0
      %p126 = por %p124, %p125
      %s128 = sadd.s32 %s127, 1
      %p131 = scmp.eq.s32.totalorder %s18, 3
      %p132 = scmp.ne.s32.totalorder %s127, %s129
      %p133 = scmp.eq.s32.totalorder %s18, 0
      %p134 = por %p132, %p133
      %p135 = scmp.ne.s32.totalorder %s127, %s129
      %p136 = scmp.eq.s32.totalorder %s23, 3
      %p137 = por %p135, %p136
      %p138 = scmp.ne.s32.totalorder %s129, %s130
      %p139 = scmp.eq.s32.totalorder %s23, 0
      %p140 = por %p138, %p139
      %p141 = scmp.ne.s32.totalorder %s129, %s130
      %p142 = scmp.eq.s32.totalorder %s24, 3
      %p143 = por %p141, %p142
      %p145 = scmp.ne.s32.totalorder %s130, %s144
      %p146 = scmp.eq.s32.totalorder %s24, 0
      %p147 = por %p145, %p146
      %s149 = sadd.s32 %s148, 1
      %p152 = scmp.eq.s32.totalorder %s18, 3
      %p153 = scmp.ne.s32.totalorder %s148, %s150
      %p154 = scmp.eq.s32.totalorder %s18, 0
      %p155 = por %p153, %p154
      %p156 = scmp.ne.s32.totalorder %s148, %s150
      %p157 = scmp.eq.s32.totalorder %s23, 3
      %p158 = por %p156, %p157
      %p159 = scmp.ne.s32.totalorder %s150, %s151
      %p160 = scmp.eq.s32.totalorder %s23, 0
      %p161 = por %p159, %p160
      %p162 = scmp.ne.s32.totalorder %s150, %s151
      %p163 = scmp.eq.s32.totalorder %s24, 3
      %p164 = por %p162, %p163
      %p166 = scmp.ne.s32.totalorder %s151, %s165
      %p167 = scmp.eq.s32.totalorder %s24, 0
      %p168 = por %p166, %p167
      %s170 = sadd.s32 %s169, 1
      %p173 = scmp.eq.s32.totalorder %s18, 3
      %p174 = scmp.ne.s32.totalorder %s169, %s171
      %p175 = scmp.eq.s32.totalorder %s18, 0
      %p176 = por %p174, %p175
      %p177 = scmp.ne.s32.totalorder %s169, %s171
      %p178 = scmp.eq.s32.totalorder %s23, 3
      %p179 = por %p177, %p178
      %p180 = scmp.ne.s32.totalorder %s171, %s172
      %p181 = scmp.eq.s32.totalorder %s23, 0
      %p182 = por %p180, %p181
      %p183 = scmp.ne.s32.totalorder %s171, %s172
      %p184 = scmp.eq.s32.totalorder %s24, 3
      %p185 = por %p183, %p184
      %p187 = scmp.ne.s32.totalorder %s172, %s186
      %p188 = scmp.eq.s32.totalorder %s24, 0
      %p189 = por %p187, %p188
      %s191 = sadd.s32 %s190, 1
      %p194 = scmp.eq.s32.totalorder %s18, 3
      %p195 = scmp.ne.s32.totalorder %s190, %s192
      %p196 = scmp.eq.s32.totalorder %s18, 0
      %p197 = por %p195, %p196
      %p198 = scmp.ne.s32.totalorder %s190, %s192
      %p199 = scmp.eq.s32.totalorder %s23, 3
      %p200 = por %p198, %p199
      %p201 = scmp.ne.s32.totalorder %s192, %s193
      %p202 = scmp.eq.s32.totalorder %s23, 0
      %p203 = por %p201, %p202
      %p204 = scmp.ne.s32.totalorder %s192, %s193
      %p205 = scmp.eq.s32.totalorder %s24, 3
      %p206 = por %p204, %p205
      %p208 = scmp.ne.s32.totalorder %s193, %s207
      %p209 = scmp.eq.s32.totalorder %s24, 0
      %p210 = por %p208, %p209
      %s212 = sadd.s32 %s211, 1
      %p215 = scmp.eq.s32.totalorder %s18, 3
      %p216 = scmp.ne.s32.totalorder %s211, %s213
      %p217 = scmp.eq.s32.totalorder %s18, 0
      %p218 = por %p216, %p217
      %p219 = scmp.ne.s32.totalorder %s211, %s213
      %p220 = scmp.eq.s32.totalorder %s23, 3
      %p221 = por %p219, %p220
      %p222 = scmp.ne.s32.totalorder %s213, %s214
      %p223 = scmp.eq.s32.totalorder %s23, 0
      %p224 = por %p222, %p223
      %p225 = scmp.ne.s32.totalorder %s213, %s214
      %p226 = scmp.eq.s32.totalorder %s24, 3
      %p227 = por %p225, %p226
      %p229 = scmp.ne.s32.totalorder %s214, %s228
      %p230 = scmp.eq.s32.totalorder %s24, 0
      %p231 = por %p229, %p230
      %s232 = ssub.s32 %s25, %s37
      %p233 = scmp.eq.s32.totalorder %s232, 0
      %s235 = sadd.s32 %s234, 1
      %s236 = scalar_select %p233, %s234, %s235
      %p239 = pneg %p233
      %p240 = scmp.eq.s32.totalorder %s18, 3
      %p241 = por %p239, %p240
      %p242 = scmp.ne.s32.totalorder %s234, %s237
      %p243 = scmp.eq.s32.totalorder %s18, 0
      %p244 = por %p242, %p243
      %p245 = scmp.ne.s32.totalorder %s234, %s237
      %p246 = scmp.eq.s32.totalorder %s23, 3
      %p247 = por %p245, %p246
      %p248 = scmp.ne.s32.totalorder %s237, %s238
      %p249 = scmp.eq.s32.totalorder %s23, 0
      %p250 = por %p248, %p249
      %p251 = scmp.ne.s32.totalorder %s237, %s238
      %p252 = scmp.eq.s32.totalorder %s24, 3
      %p253 = por %p251, %p252
      %p255 = scmp.ne.s32.totalorder %s238, %s254
      %p256 = scmp.eq.s32.totalorder %s24, 0
      %p257 = por %p255, %p256
      %p258 = scmp.le.s32.totalorder 1, %s18
      %p259 = scmp.lt.s32.totalorder %s18, 5
      %p260 = pnand %p258, %p259
      %p261 = pneg %p260
      // Predicated region
      $region9: #{cnn_only_forward.1} parent=5 // pred_check
        _
      $region10: #{cnn_only_forward.1} parent=5 // pred_check_branch
        %263 = sbr.rel (%p260) target = $region12
      $region11: #{cnn_only_forward.1} parent=5 // pred_region
        %s264 = ssub.s32 %s18, 1
        // Predicated region
        $region13: #{cnn_only_forward.1} parent=11 // pred_check
          %p265 = pneg %p77
        $region14: #{cnn_only_forward.1} parent=11 // pred_check_branch
          %267 = sbr.rel (%p265) target = $region16
        $region15: #{cnn_only_forward.1} parent=11 // pred_region
          _
        $region16: #{cnn_only_forward.1} parent=11 // pred_fallthru
          _
        // Predicated region
        $region17: #{cnn_only_forward.1} parent=11 // pred_check
          %p268 = pneg %p98
        $region18: #{cnn_only_forward.1} parent=11 // pred_check_branch
          %270 = sbr.rel (%p268) target = $region20
        $region19: #{cnn_only_forward.1} parent=11 // pred_region
          _
        $region20: #{cnn_only_forward.1} parent=11 // pred_fallthru
          _
        // Predicated region
        $region21: #{cnn_only_forward.1} parent=11 // pred_check
          %p271 = pneg %p119
        $region22: #{cnn_only_forward.1} parent=11 // pred_check_branch
          %273 = sbr.rel (%p271) target = $region24
        $region23: #{cnn_only_forward.1} parent=11 // pred_region
          _
        $region24: #{cnn_only_forward.1} parent=11 // pred_fallthru
          _
        // Predicated region
        $region25: #{cnn_only_forward.1} parent=11 // pred_check
          %p274 = pneg %p140
        $region26: #{cnn_only_forward.1} parent=11 // pred_check_branch
          %276 = sbr.rel (%p274) target = $region28
        $region27: #{cnn_only_forward.1} parent=11 // pred_region
          _
        $region28: #{cnn_only_forward.1} parent=11 // pred_fallthru
          _
        // Predicated region
        $region29: #{cnn_only_forward.1} parent=11 // pred_check
          %p277 = pneg %p161
        $region30: #{cnn_only_forward.1} parent=11 // pred_check_branch
          %279 = sbr.rel (%p277) target = $region32
        $region31: #{cnn_only_forward.1} parent=11 // pred_region
          _
        $region32: #{cnn_only_forward.1} parent=11 // pred_fallthru
          _
        // Predicated region
        $region33: #{cnn_only_forward.1} parent=11 // pred_check
          %p280 = pneg %p182
        $region34: #{cnn_only_forward.1} parent=11 // pred_check_branch
          %282 = sbr.rel (%p280) target = $region36
        $region35: #{cnn_only_forward.1} parent=11 // pred_region
          _
        $region36: #{cnn_only_forward.1} parent=11 // pred_fallthru
          _
        // Predicated region
        $region37: #{cnn_only_forward.1} parent=11 // pred_check
          %p283 = pneg %p203
        $region38: #{cnn_only_forward.1} parent=11 // pred_check_branch
          %285 = sbr.rel (%p283) target = $region40
        $region39: #{cnn_only_forward.1} parent=11 // pred_region
          _
        $region40: #{cnn_only_forward.1} parent=11 // pred_fallthru
          _
        // Predicated region
        $region41: #{cnn_only_forward.1} parent=11 // pred_check
          %p286 = pneg %p224
        $region42: #{cnn_only_forward.1} parent=11 // pred_check_branch
          %288 = sbr.rel (%p286) target = $region44
        $region43: #{cnn_only_forward.1} parent=11 // pred_region
          _
        $region44: #{cnn_only_forward.1} parent=11 // pred_fallthru
          _
      $region12: #{cnn_only_forward.1} parent=5 // pred_fallthru
        _
      %p289 = scmp.lt.s32.totalorder %s18, 4
      // Predicated region
      $region45: #{cnn_only_forward.1} parent=5 // pred_check
        %p290 = pneg %p289
      $region46: #{cnn_only_forward.1} parent=5 // pred_check_branch
        %292 = sbr.rel (%p290) target = $region48
      $region47: #{cnn_only_forward.1} parent=5 // pred_region
        // Predicated region
        $region49: #{cnn_only_forward.1} parent=47 // pred_check
          %p293 = pneg %p50
        $region50: #{cnn_only_forward.1} parent=47 // pred_check_branch
          %295 = sbr.rel (%p293) target = $region52
        $region51: #{cnn_only_forward.1} parent=47 // pred_region
          %p296 = scmp.lt.s32.totalorder %s25, 1
          %s297 = scalar_select %p296, %s25, 1
          %s298 = smul.addr %s297, 54
          %s299 = smul.addr %s298, 4
          %s300 = scalar_lea.vmem %s0, %s299
        $region52: #{cnn_only_forward.1} parent=47 // pred_fallthru
          _
      $region48: #{cnn_only_forward.1} parent=5 // pred_fallthru
        _
      %p301 = scmp.le.s32.totalorder 1, %s18
      %p302 = scmp.lt.s32.totalorder %s18, 5
      %p303 = pnand %p301, %p302
      %p304 = pneg %p303
      // Predicated region
      $region53: #{cnn_only_forward.1} parent=5 // pred_check
        _
      $region54: #{cnn_only_forward.1} parent=5 // pred_check_branch
        %306 = sbr.rel (%p303) target = $region56
      $region55: #{cnn_only_forward.1} parent=5 // pred_region
        %s307 = ssub.s32 %s18, 1
        %p308 = scmp.lt.s32.totalorder %s27, 1
        %s309 = scalar_select %p308, %s27, 1
        %s310 = smul.addr %s309, 54
        %s311 = smul.addr %s310, 4
        %s312 = scalar_lea.vmem %s0, %s311
        %p313 = pneg %p56
        %p314 = pneg %p53
        %p315 = pneg %p77
        %p316 = pneg %p74
        %p317 = pneg %p98
        %p318 = pneg %p95
        %p319 = pneg %p119
        %p320 = pneg %p116
        %p321 = pneg %p140
        %p322 = pneg %p137
        %p323 = pneg %p161
        %p324 = pneg %p158
        %p325 = pneg %p182
        %p326 = pneg %p179
        %p327 = pneg %p203
        %p328 = pneg %p200
        %p329 = pneg %p224
        %p330 = pneg %p221
        %p331 = pneg %p250
        %p332 = pneg %p247
        %s333 = sand.u32 %s237, 1
        %s334 = scalar_lea.sflag [#allocation4], %s333
        %s335 = sand.u32 %s237, 1
        %s336 = scalar_lea.vmem [#allocation3], %s335
        %p337 = scmp.lt.s32.totalorder %s27, 1
        %s338 = scalar_select %p337, %s27, 1
        %s339 = smul.addr %s338, 54
        %s340 = smul.addr %s339, 4
        %s341 = scalar_lea.vmem %s0, %s340
        %p343 = scmp.eq.s32.totalorder %s28, 0
        // Predicated region
        $region57: #{cnn_only_forward.1} parent=55 // pred_check
          %p344 = pneg %p343
        $region58: #{cnn_only_forward.1} parent=55 // pred_check_branch
          %346 = sbr.rel (%p344) target = $region60
        $region59: #{cnn_only_forward.1} parent=55 // pred_region
          %vm347 = vcmask 253952
          %348 = vst.msk [vmem:[#allocation2] sm:$0x1] %vm347, 0.0
        $region60: #{cnn_only_forward.1} parent=55 // pred_fallthru
          _
        %s349 = smul.u32 %s28, 8
        %s350 = smul.u32 %s349, 3
        %s351 = smul.addr %s350, 4
        %s352 = scalar_lea.vmem %s341, %s351
        %v353 = vld [vmem:[%s352] sm:$0xf]
        %v354 = vld [vmem:[%s352 + $0x4] sm:$0xf]
        %v355 = vld [vmem:[%s352 + $0xc] sm:$0xf]
        %v356 = vld [vmem:[%s352 + $0x10] sm:$0xf]
        %v357 = vld [vmem:[%s352 + $0x18] sm:$0xf]
        %v358 = vld [vmem:[%s352 + $0x1c] sm:$0xf]
        %v359 = vld [vmem:[%s352 + $0x24] sm:$0xf]
        %v360 = vld [vmem:[%s352 + $0x28] sm:$0xf]
        %v361 = vld [vmem:[%s352 + $0x30] sm:$0xf]
        %v362 = vld [vmem:[%s352 + $0x34] sm:$0xf]
        %v363 = vld [vmem:[%s352 + $0x3c] sm:$0xf]
        %v364 = vld [vmem:[%s352 + $0x40] sm:$0xf]
        %v365 = vld [vmem:[%s352 + $0x48] sm:$0xf]
        %v366 = vld [vmem:[%s352 + $0x4c] sm:$0xf]
        %v367 = vld [vmem:[%s352 + $0x54] sm:$0xf]
        %v368 = vld [vmem:[%s352 + $0x58] sm:$0xf]
        %v369 = vld [vmem:[%s1] sm:$0x3]
        %v370 = vld [vmem:[%s352 + $0x8] sm:$0x1]
        %v371 = vld [vmem:[%s352 + $0x14] sm:$0x1]
        %v372 = vld [vmem:[%s352 + $0x20] sm:$0x1]
        %v373 = vld [vmem:[%s352 + $0x2c] sm:$0x1]
        %v374 = vld [vmem:[%s352 + $0x38] sm:$0x1]
        %v375 = vld [vmem:[%s352 + $0x44] sm:$0x1]
        %v376 = vld [vmem:[%s352 + $0x50] sm:$0x1]
        %v377 = vld [vmem:[%s352 + $0x5c] sm:$0x1]
        %vm378 = vsmask.f32 3328
        %vm379 = vsmask.f32 7440
        %vm380 = vmor %vm378, %vm379
        %v382 = vshrl.u32 %v353, 16
        %v384 = vrot.slane %v382, 4
        %v385 = vshll.u32 %v353, 16
        %v387 = vrot.slane %v385, 5
        %v388 = vor.u32 %v384, %v387
        %v389 = vrot.slane %v388, 4
        %v391 = vshll.u32 %v354, 16
        %v393 = vrot.slane %v391, 5
        %v394 = vsel %vm380, %v389, %v393
        %v395 = vshrl.u32 %v354, 16
        %v397 = vrot.slane %v395, 4
        %v398 = vor.u32 %v397, %v393
        %v399 = vrot.slane %v398, 4
        %v401 = vshll.u32 %v370, 16
        %v403 = vrot.slane %v401, 5
        %v404 = vsel %vm380, %v399, %v403
        %v406 = vshrl.u32 %v355, 16
        %v408 = vrot.slane %v406, 4
        %v409 = vshll.u32 %v355, 16
        %v411 = vrot.slane %v409, 5
        %v412 = vor.u32 %v408, %v411
        %v413 = vrot.slane %v412, 4
        %v415 = vshll.u32 %v356, 16
        %v417 = vrot.slane %v415, 5
        %v418 = vsel %vm380, %v413, %v417
        %v419 = vshrl.u32 %v356, 16
        %v421 = vrot.slane %v419, 4
        %v422 = vor.u32 %v421, %v417
        %v423 = vrot.slane %v422, 4
        %v425 = vshll.u32 %v371, 16
        %v427 = vrot.slane %v425, 5
        %v428 = vsel %vm380, %v423, %v427
        %v430 = vshrl.u32 %v357, 16
        %v432 = vrot.slane %v430, 4
        %v433 = vshll.u32 %v357, 16
        %v435 = vrot.slane %v433, 5
        %v436 = vor.u32 %v432, %v435
        %v437 = vrot.slane %v436, 4
        %v439 = vshll.u32 %v358, 16
        %v441 = vrot.slane %v439, 5
        %v442 = vsel %vm380, %v437, %v441
        %v443 = vshrl.u32 %v358, 16
        %v445 = vrot.slane %v443, 4
        %v446 = vor.u32 %v445, %v441
        %v447 = vrot.slane %v446, 4
        %v449 = vshll.u32 %v372, 16
        %v451 = vrot.slane %v449, 5
        %v452 = vsel %vm380, %v447, %v451
        %v454 = vshrl.u32 %v359, 16
        %v456 = vrot.slane %v454, 4
        %v457 = vshll.u32 %v359, 16
        %v459 = vrot.slane %v457, 5
        %v460 = vor.u32 %v456, %v459
        %v461 = vrot.slane %v460, 4
        %v463 = vshll.u32 %v360, 16
        %v465 = vrot.slane %v463, 5
        %v466 = vsel %vm380, %v461, %v465
        %v467 = vshrl.u32 %v360, 16
        %v469 = vrot.slane %v467, 4
        %v470 = vor.u32 %v469, %v465
        %v471 = vrot.slane %v470, 4
        %v473 = vshll.u32 %v373, 16
        %v475 = vrot.slane %v473, 5
        %v476 = vsel %vm380, %v471, %v475
        %v478 = vshrl.u32 %v361, 16
        %v480 = vrot.slane %v478, 4
        %v481 = vshll.u32 %v361, 16
        %v483 = vrot.slane %v481, 5
        %v484 = vor.u32 %v480, %v483
        %v485 = vrot.slane %v484, 4
        %v487 = vshll.u32 %v362, 16
        %v489 = vrot.slane %v487, 5
        %v490 = vsel %vm380, %v485, %v489
        %v491 = vshrl.u32 %v362, 16
        %v493 = vrot.slane %v491, 4
        %v494 = vor.u32 %v493, %v489
        %v495 = vrot.slane %v494, 4
        %v497 = vshll.u32 %v374, 16
        %v499 = vrot.slane %v497, 5
        %v500 = vsel %vm380, %v495, %v499
        %v502 = vshrl.u32 %v363, 16
        %v504 = vrot.slane %v502, 4
        %v505 = vshll.u32 %v363, 16
        %v507 = vrot.slane %v505, 5
        %v508 = vor.u32 %v504, %v507
        %v509 = vrot.slane %v508, 4
        %v511 = vshll.u32 %v364, 16
        %v513 = vrot.slane %v511, 5
        %v514 = vsel %vm380, %v509, %v513
        %v515 = vshrl.u32 %v364, 16
        %v517 = vrot.slane %v515, 4
        %v518 = vor.u32 %v517, %v513
        %v519 = vrot.slane %v518, 4
        %v521 = vshll.u32 %v375, 16
        %v523 = vrot.slane %v521, 5
        %v524 = vsel %vm380, %v519, %v523
        %v526 = vshrl.u32 %v365, 16
        %v528 = vrot.slane %v526, 4
        %v529 = vshll.u32 %v365, 16
        %v531 = vrot.slane %v529, 5
        %v532 = vor.u32 %v528, %v531
        %v533 = vrot.slane %v532, 4
        %v535 = vshll.u32 %v366, 16
        %v537 = vrot.slane %v535, 5
        %v538 = vsel %vm380, %v533, %v537
        %v539 = vshrl.u32 %v366, 16
        %v541 = vrot.slane %v539, 4
        %v542 = vor.u32 %v541, %v537
        %v543 = vrot.slane %v542, 4
        %v545 = vshll.u32 %v376, 16
        %v547 = vrot.slane %v545, 5
        %v548 = vsel %vm380, %v543, %v547
        %v550 = vshrl.u32 %v367, 16
        %v552 = vrot.slane %v550, 4
        %v553 = vshll.u32 %v367, 16
        %v555 = vrot.slane %v553, 5
        %v556 = vor.u32 %v552, %v555
        %v557 = vrot.slane %v556, 4
        %v559 = vshll.u32 %v368, 16
        %v561 = vrot.slane %v559, 5
        %v562 = vsel %vm380, %v557, %v561
        %v563 = vshrl.u32 %v368, 16
        %v565 = vrot.slane %v563, 4
        %v566 = vor.u32 %v565, %v561
        %v567 = vrot.slane %v566, 4
        %v569 = vshll.u32 %v377, 16
        %v571 = vrot.slane %v569, 5
        %v572 = vsel %vm380, %v567, %v571
        %s573 = scalar_lea.vmem %s1, 2
        %v574 = vld [vmem:[%s573] sm:$0x3]
        %v575 = vunpack.c.l.b16 %v394
        %v576 = vunpack.c.l.b16 %v404
        %v577 = vunpack.c.l.b16 %v418
        %v578 = vunpack.c.l.b16 %v428
        %v579 = vunpack.c.l.b16 %v442
        %v580 = vunpack.c.l.b16 %v452
        %v581 = vunpack.c.l.b16 %v466
        %v582 = vunpack.c.l.b16 %v476
        %v583 = vunpack.c.l.b16 %v490
        %v584 = vunpack.c.l.b16 %v500
        %v585 = vunpack.c.l.b16 %v514
        %v586 = vunpack.c.l.b16 %v524
        %v587 = vunpack.c.l.b16 %v538
        %v588 = vunpack.c.l.b16 %v548
        %v589 = vunpack.c.l.b16 %v562
        %v590 = vunpack.c.l.b16 %v572
        %v591 = vpack.c.b16 %v576, %v575
        %v592 = vpack.c.b16 %v578, %v577
        %v593 = vpack.c.b16 %v580, %v579
        %v594 = vpack.c.b16 %v582, %v581
        %v595 = vpack.c.b16 %v584, %v583
        %v596 = vpack.c.b16 %v586, %v585
        %v597 = vpack.c.b16 %v588, %v587
        %v598 = vpack.c.b16 %v590, %v589
        %vm599 = vcmask 31744
        %v601 = vsel %vm599, %v591, 0
        %v604 = vsel %vm599, %v592, 0
        %v607 = vsel %vm599, %v593, 0
        %v610 = vsel %vm599, %v594, 0
        %v613 = vsel %vm599, %v595, 0
        %v616 = vsel %vm599, %v596, 0
        %v619 = vsel %vm599, %v597, 0
        %v622 = vsel %vm599, %v598, 0
        %vm624 = vcmask 1041408
        %v626 = vsel %vm624, %v574, 0
        %628 = vmatprep.subr.bf16.mxu0 0
        %629 = vmatpush1.bf16.msra.mxu0 %v626
        %630 = vmatprep.subr.bf16.mxu0 0
        %631 = vmatpush1.bf16.msra.mxu0 0
        %632 = vmatprep.subr.bf16.mxu0 0
        %633 = vmatpush1.bf16.msra.mxu0 0
        %634 = vmatprep.subr.bf16.mxu0 0
        %635 = vmatpush1.bf16.msra.mxu0 0
        %636 = vmatprep.subr.bf16.mxu0 0
        %637 = vmatpush1.bf16.msra.mxu0 0
        %638 = vmatprep.subr.bf16.mxu0 0
        %639 = vmatpush1.bf16.msra.mxu0 0
        %640 = vmatprep.subr.bf16.mxu0 0
        %641 = vmatpush1.bf16.msra.mxu0 0
        %642 = vmatprep.subr.bf16.mxu0 0
        %643 = vmatpush1.bf16.msra.mxu0 0
        %644 = vmatprep.subr.bf16.mxu0 0
        %645 = vmatpush1.bf16.msra.mxu0 0
        %646 = vmatprep.subr.bf16.mxu0 0
        %647 = vmatpush1.bf16.msra.mxu0 0
        %648 = vmatprep.subr.bf16.mxu0 0
        %649 = vmatpush1.bf16.msra.mxu0 0
        %650 = vmatprep.subr.bf16.mxu0 0
        %651 = vmatpush1.bf16.msra.mxu0 0
        %652 = vmatprep.subr.bf16.mxu0 0
        %653 = vmatpush1.bf16.msra.mxu0 0
        %654 = vmatprep.subr.bf16.mxu0 0
        %655 = vmatpush1.bf16.msra.mxu0 0
        %656 = vmatprep.subr.bf16.mxu0 0
        %657 = vmatpush1.bf16.msra.mxu0 0
        %658 = vmatprep.subr.bf16.mxu0 0
        %659 = vmatpush1.bf16.msra.mxu0 0
        %660 = vmatprep.mubr.bf16.mxu0 0
        %661 = vmatmul.mubr.bf16.gmra.mrb[0].mxu0 %v601
        %v662 = vpop.f32.mrb[0].mxu0
        %v663 = vadd.f32 0.0, %v662
        %v664 = vpop.f32.mrb[0].mxu0
        %v665 = vpop.f32.mrb[0].mxu0
        %v666 = vadd.f32 0.0, %v665
        %v667 = vpop.f32.mrb[0].mxu0
        %668 = vmatprep.mubr.bf16.mxu0 0
        %669 = vmatmul.mubr.bf16.gmra.mrb[0].mxu0 %v604
        %v670 = vpop.f32.mrb[0].mxu0
        %v671 = vadd.f32 0.0, %v670
        %v672 = vpop.f32.mrb[0].mxu0
        %v673 = vpop.f32.mrb[0].mxu0
        %v674 = vadd.f32 0.0, %v673
        %v675 = vpop.f32.mrb[0].mxu0
        %676 = vmatprep.mubr.bf16.mxu0 0
        %677 = vmatmul.mubr.bf16.gmra.mrb[0].mxu0 %v607
        %v678 = vpop.f32.mrb[0].mxu0
        %v679 = vadd.f32 0.0, %v678
        %v680 = vpop.f32.mrb[0].mxu0
        %v681 = vpop.f32.mrb[0].mxu0
        %v682 = vadd.f32 0.0, %v681
        %v683 = vpop.f32.mrb[0].mxu0
        %684 = vmatprep.mubr.bf16.mxu0 0
        %685 = vmatmul.mubr.bf16.gmra.mrb[0].mxu0 %v610
        %v686 = vpop.f32.mrb[0].mxu0
        %v687 = vadd.f32 0.0, %v686
        %v688 = vpop.f32.mrb[0].mxu0
        %v689 = vpop.f32.mrb[0].mxu0
        %v690 = vadd.f32 0.0, %v689
        %v691 = vpop.f32.mrb[0].mxu0
        %692 = vmatprep.mubr.bf16.mxu0 0
        %693 = vmatmul.mubr.bf16.gmra.mrb[0].mxu0 %v613
        %v694 = vpop.f32.mrb[0].mxu0
        %v695 = vadd.f32 0.0, %v694
        %v696 = vpop.f32.mrb[0].mxu0
        %v697 = vpop.f32.mrb[0].mxu0
        %v698 = vadd.f32 0.0, %v697
        %v699 = vpop.f32.mrb[0].mxu0
        %700 = vmatprep.mubr.bf16.mxu0 0
        %701 = vmatmul.mubr.bf16.gmra.mrb[0].mxu0 %v616
        %v702 = vpop.f32.mrb[0].mxu0
        %v703 = vadd.f32 0.0, %v702
        %v704 = vpop.f32.mrb[0].mxu0
        %v705 = vpop.f32.mrb[0].mxu0
        %v706 = vadd.f32 0.0, %v705
        %v707 = vpop.f32.mrb[0].mxu0
        %708 = vmatprep.mubr.bf16.mxu0 0
        %709 = vmatmul.mubr.bf16.gmra.mrb[0].mxu0 %v619
        %v710 = vpop.f32.mrb[0].mxu0
        %v711 = vadd.f32 0.0, %v710
        %v712 = vpop.f32.mrb[0].mxu0
        %v713 = vpop.f32.mrb[0].mxu0
        %v714 = vadd.f32 0.0, %v713
        %v715 = vpop.f32.mrb[0].mxu0
        %716 = vmatprep.mubr.bf16.mxu0 0
        %717 = vmatmul.mubr.bf16.gmra.mrb[0].mxu0 %v622
        %v718 = vpop.f32.mrb[0].mxu0
        %v719 = vadd.f32 0.0, %v718
        %v720 = vpop.f32.mrb[0].mxu0
        %v721 = vpop.f32.mrb[0].mxu0
        %v722 = vadd.f32 0.0, %v721
        %v723 = vpop.f32.mrb[0].mxu0
        %724 = vdwg.mxu0
        %v741 = vunpack.c.l.b16 %v353
        %v742 = vunpack.c.l.b16 %v354
        %v743 = vunpack.c.l.b16 %v355
        %v744 = vunpack.c.l.b16 %v356
        %v745 = vunpack.c.l.b16 %v357
        %v746 = vunpack.c.l.b16 %v358
        %v747 = vunpack.c.l.b16 %v359
        %v748 = vunpack.c.l.b16 %v360
        %v749 = vunpack.c.l.b16 %v361
        %v750 = vunpack.c.l.b16 %v362
        %v751 = vunpack.c.l.b16 %v363
        %v752 = vunpack.c.l.b16 %v364
        %v753 = vunpack.c.l.b16 %v365
        %v754 = vunpack.c.l.b16 %v366
        %v755 = vunpack.c.l.b16 %v367
        %v756 = vunpack.c.l.b16 %v368
        %v757 = vpack.c.b16 %v742, %v741
        %v758 = vpack.c.b16 %v744, %v743
        %v759 = vpack.c.b16 %v746, %v745
        %v760 = vpack.c.b16 %v748, %v747
        %v761 = vpack.c.b16 %v750, %v749
        %v762 = vpack.c.b16 %v752, %v751
        %v763 = vpack.c.b16 %v754, %v753
        %v764 = vpack.c.b16 %v756, %v755
        %v766 = vsel %vm599, %v757, 0
        %v769 = vsel %vm599, %v758, 0
        %v772 = vsel %vm599, %v759, 0
        %v775 = vsel %vm599, %v760, 0
        %v778 = vsel %vm599, %v761, 0
        %v781 = vsel %vm599, %v762, 0
        %v784 = vsel %vm599, %v763, 0
        %v787 = vsel %vm599, %v764, 0
        %v790 = vsel %vm624, %v369, 0
        %792 = vmatprep.subr.bf16.mxu0 0
        %793 = vmatpush1.bf16.msra.mxu0 %v790
        %794 = vmatprep.subr.bf16.mxu0 0
        %795 = vmatpush1.bf16.msra.mxu0 0
        %796 = vmatprep.subr.bf16.mxu0 0
        %797 = vmatpush1.bf16.msra.mxu0 0
        %798 = vmatprep.subr.bf16.mxu0 0
        %799 = vmatpush1.bf16.msra.mxu0 0
        %800 = vmatprep.subr.bf16.mxu0 0
        %801 = vmatpush1.bf16.msra.mxu0 0
        %802 = vmatprep.subr.bf16.mxu0 0
        %803 = vmatpush1.bf16.msra.mxu0 0
        %804 = vmatprep.subr.bf16.mxu0 0
        %805 = vmatpush1.bf16.msra.mxu0 0
        %806 = vmatprep.subr.bf16.mxu0 0
        %807 = vmatpush1.bf16.msra.mxu0 0
        %808 = vmatprep.subr.bf16.mxu0 0
        %809 = vmatpush1.bf16.msra.mxu0 0
        %810 = vmatprep.subr.bf16.mxu0 0
        %811 = vmatpush1.bf16.msra.mxu0 0
        %812 = vmatprep.subr.bf16.mxu0 0
        %813 = vmatpush1.bf16.msra.mxu0 0
        %814 = vmatprep.subr.bf16.mxu0 0
        %815 = vmatpush1.bf16.msra.mxu0 0
        %816 = vmatprep.subr.bf16.mxu0 0
        %817 = vmatpush1.bf16.msra.mxu0 0
        %818 = vmatprep.subr.bf16.mxu0 0
        %819 = vmatpush1.bf16.msra.mxu0 0
        %820 = vmatprep.subr.bf16.mxu0 0
        %821 = vmatpush1.bf16.msra.mxu0 0
        %822 = vmatprep.subr.bf16.mxu0 0
        %823 = vmatpush1.bf16.msra.mxu0 0
        %824 = vmatprep.mubr.bf16.mxu0 0
        %825 = vmatmul.mubr.bf16.gmra.mrb[0].mxu0 %v766
        %v826 = vpop.f32.mrb[0].mxu0
        %v827 = vadd.f32 %v663, %v826
        %v828 = vpop.f32.mrb[0].mxu0
        %v829 = vpop.f32.mrb[0].mxu0
        %v830 = vadd.f32 %v666, %v829
        %v831 = vpop.f32.mrb[0].mxu0
        %832 = vmatprep.mubr.bf16.mxu0 0
        %833 = vmatmul.mubr.bf16.gmra.mrb[0].mxu0 %v769
        %v834 = vpop.f32.mrb[0].mxu0
        %v835 = vadd.f32 %v671, %v834
        %v836 = vpop.f32.mrb[0].mxu0
        %v837 = vpop.f32.mrb[0].mxu0
        %v838 = vadd.f32 %v674, %v837
        %v839 = vpop.f32.mrb[0].mxu0
        %840 = vmatprep.mubr.bf16.mxu0 0
        %841 = vmatmul.mubr.bf16.gmra.mrb[0].mxu0 %v772
        %v842 = vpop.f32.mrb[0].mxu0
        %v843 = vadd.f32 %v679, %v842
        %v844 = vpop.f32.mrb[0].mxu0
        %v845 = vpop.f32.mrb[0].mxu0
        %v846 = vadd.f32 %v682, %v845
        %v847 = vpop.f32.mrb[0].mxu0
        %848 = vmatprep.mubr.bf16.mxu0 0
        %849 = vmatmul.mubr.bf16.gmra.mrb[0].mxu0 %v775
        %v850 = vpop.f32.mrb[0].mxu0
        %v851 = vadd.f32 %v687, %v850
        %v852 = vpop.f32.mrb[0].mxu0
        %v853 = vpop.f32.mrb[0].mxu0
        %v854 = vadd.f32 %v690, %v853
        %v855 = vpop.f32.mrb[0].mxu0
        %856 = vmatprep.mubr.bf16.mxu0 0
        %857 = vmatmul.mubr.bf16.gmra.mrb[0].mxu0 %v778
        %v858 = vpop.f32.mrb[0].mxu0
        %v859 = vadd.f32 %v695, %v858
        %v860 = vpop.f32.mrb[0].mxu0
        %v861 = vpop.f32.mrb[0].mxu0
        %v862 = vadd.f32 %v698, %v861
        %v863 = vpop.f32.mrb[0].mxu0
        %864 = vmatprep.mubr.bf16.mxu0 0
        %865 = vmatmul.mubr.bf16.gmra.mrb[0].mxu0 %v781
        %v866 = vpop.f32.mrb[0].mxu0
        %v867 = vadd.f32 %v703, %v866
        %v868 = vpop.f32.mrb[0].mxu0
        %v869 = vpop.f32.mrb[0].mxu0
        %v870 = vadd.f32 %v706, %v869
        %v871 = vpop.f32.mrb[0].mxu0
        %872 = vmatprep.mubr.bf16.mxu0 0
        %873 = vmatmul.mubr.bf16.gmra.mrb[0].mxu0 %v784
        %v874 = vpop.f32.mrb[0].mxu0
        %v875 = vadd.f32 %v711, %v874
        %v876 = vpop.f32.mrb[0].mxu0
        %v877 = vpop.f32.mrb[0].mxu0
        %v878 = vadd.f32 %v714, %v877
        %v879 = vpop.f32.mrb[0].mxu0
        %880 = vmatprep.mubr.bf16.mxu0 0
        %881 = vmatmul.mubr.bf16.gmra.mrb[0].mxu0 %v787
        %v882 = vpop.f32.mrb[0].mxu0
        %v883 = vadd.f32 %v719, %v882
        %v884 = vpop.f32.mrb[0].mxu0
        %v885 = vpop.f32.mrb[0].mxu0
        %v886 = vadd.f32 %v722, %v885
        %v887 = vpop.f32.mrb[0].mxu0
        %888 = vdwg.mxu0
        %v889 = vld [vmem:[%s352] sm:$0xe]
        %v890 = vld [vmem:[%s352 + $0xc] sm:$0xe]
        %v891 = vld [vmem:[%s352 + $0x18] sm:$0xe]
        %v892 = vld [vmem:[%s352 + $0x24] sm:$0xe]
        %v893 = vld [vmem:[%s352 + $0x30] sm:$0xe]
        %v894 = vld [vmem:[%s352 + $0x3c] sm:$0xe]
        %v895 = vld [vmem:[%s352 + $0x48] sm:$0xe]
        %v896 = vld [vmem:[%s352 + $0x54] sm:$0xe]
        %vm913 = vcmask 1042432
        %vm914 = vcmask 1046532
        %vm915 = vmor %vm913, %vm914
        %v916 = vrot.slane %v889, 5
        %v917 = vrot.slane %v916, 4
        %v918 = vrot.slane %v354, 5
        %v919 = vsel %vm915, %v917, %v918
        %v920 = vrot.slane %v918, 4
        %v921 = vrot.slane %v370, 5
        %v922 = vsel %vm915, %v920, %v921
        %v923 = vrot.slane %v890, 5
        %v924 = vrot.slane %v923, 4
        %v925 = vrot.slane %v356, 5
        %v926 = vsel %vm915, %v924, %v925
        %v927 = vrot.slane %v925, 4
        %v928 = vrot.slane %v371, 5
        %v929 = vsel %vm915, %v927, %v928
        %v930 = vrot.slane %v891, 5
        %v931 = vrot.slane %v930, 4
        %v932 = vrot.slane %v358, 5
        %v933 = vsel %vm915, %v931, %v932
        %v934 = vrot.slane %v932, 4
        %v935 = vrot.slane %v372, 5
        %v936 = vsel %vm915, %v934, %v935
        %v937 = vrot.slane %v892, 5
        %v938 = vrot.slane %v937, 4
        %v939 = vrot.slane %v360, 5
        %v940 = vsel %vm915, %v938, %v939
        %v941 = vrot.slane %v939, 4
        %v942 = vrot.slane %v373, 5
        %v943 = vsel %vm915, %v941, %v942
        %v944 = vrot.slane %v893, 5
        %v945 = vrot.slane %v944, 4
        %v946 = vrot.slane %v362, 5
        %v947 = vsel %vm915, %v945, %v946
        %v948 = vrot.slane %v946, 4
        %v949 = vrot.slane %v374, 5
        %v950 = vsel %vm915, %v948, %v949
        %v951 = vrot.slane %v894, 5
        %v952 = vrot.slane %v951, 4
        %v953 = vrot.slane %v364, 5
        %v954 = vsel %vm915, %v952, %v953
        %v955 = vrot.slane %v953, 4
        %v956 = vrot.slane %v375, 5
        %v957 = vsel %vm915, %v955, %v956
        %v958 = vrot.slane %v895, 5
        %v959 = vrot.slane %v958, 4
        %v960 = vrot.slane %v366, 5
        %v961 = vsel %vm915, %v959, %v960
        %v962 = vrot.slane %v960, 4
        %v963 = vrot.slane %v376, 5
        %v964 = vsel %vm915, %v962, %v963
        %v965 = vrot.slane %v896, 5
        %v966 = vrot.slane %v965, 4
        %v967 = vrot.slane %v368, 5
        %v968 = vsel %vm915, %v966, %v967
        %v969 = vrot.slane %v967, 4
        %v970 = vrot.slane %v377, 5
        %v971 = vsel %vm915, %v969, %v970
        %s972 = scalar_lea.vmem %s1, 4
        %v973 = vld [vmem:[%s972] sm:$0x3]
        %v974 = vunpack.c.l.b16 %v919
        %v975 = vunpack.c.l.b16 %v922
        %v976 = vunpack.c.l.b16 %v926
        %v977 = vunpack.c.l.b16 %v929
        %v978 = vunpack.c.l.b16 %v933
        %v979 = vunpack.c.l.b16 %v936
        %v980 = vunpack.c.l.b16 %v940
        %v981 = vunpack.c.l.b16 %v943
        %v982 = vunpack.c.l.b16 %v947
        %v983 = vunpack.c.l.b16 %v950
        %v984 = vunpack.c.l.b16 %v954
        %v985 = vunpack.c.l.b16 %v957
        %v986 = vunpack.c.l.b16 %v961
        %v987 = vunpack.c.l.b16 %v964
        %v988 = vunpack.c.l.b16 %v968
        %v989 = vunpack.c.l.b16 %v971
        %v990 = vpack.c.b16 %v975, %v974
        %v991 = vpack.c.b16 %v977, %v976
        %v992 = vpack.c.b16 %v979, %v978
        %v993 = vpack.c.b16 %v981, %v980
        %v994 = vpack.c.b16 %v983, %v982
        %v995 = vpack.c.b16 %v985, %v984
        %v996 = vpack.c.b16 %v987, %v986
        %v997 = vpack.c.b16 %v989, %v988
        %v999 = vsel %vm599, %v990, 0
        %v1002 = vsel %vm599, %v991, 0
        %v1005 = vsel %vm599, %v992, 0
        %v1008 = vsel %vm599, %v993, 0
        %v1011 = vsel %vm599, %v994, 0
        %v1014 = vsel %vm599, %v995, 0
        %v1017 = vsel %vm599, %v996, 0
        %v1020 = vsel %vm599, %v997, 0
        %v1023 = vsel %vm624, %v973, 0
        %1025 = vmatprep.subr.bf16.mxu0 0
        %1026 = vmatpush1.bf16.msra.mxu0 %v1023
        %1027 = vmatprep.subr.bf16.mxu0 0
        %1028 = vmatpush1.bf16.msra.mxu0 0
        %1029 = vmatprep.subr.bf16.mxu0 0
        %1030 = vmatpush1.bf16.msra.mxu0 0
        %1031 = vmatprep.subr.bf16.mxu0 0
        %1032 = vmatpush1.bf16.msra.mxu0 0
        %1033 = vmatprep.subr.bf16.mxu0 0
        %1034 = vmatpush1.bf16.msra.mxu0 0
        %1035 = vmatprep.subr.bf16.mxu0 0
        %1036 = vmatpush1.bf16.msra.mxu0 0
        %1037 = vmatprep.subr.bf16.mxu0 0
        %1038 = vmatpush1.bf16.msra.mxu0 0
        %1039 = vmatprep.subr.bf16.mxu0 0
        %1040 = vmatpush1.bf16.msra.mxu0 0
        %1041 = vmatprep.subr.bf16.mxu0 0
        %1042 = vmatpush1.bf16.msra.mxu0 0
        %1043 = vmatprep.subr.bf16.mxu0 0
        %1044 = vmatpush1.bf16.msra.mxu0 0
        %1045 = vmatprep.subr.bf16.mxu0 0
        %1046 = vmatpush1.bf16.msra.mxu0 0
        %1047 = vmatprep.subr.bf16.mxu0 0
        %1048 = vmatpush1.bf16.msra.mxu0 0
        %1049 = vmatprep.subr.bf16.mxu0 0
        %1050 = vmatpush1.bf16.msra.mxu0 0
        %1051 = vmatprep.subr.bf16.mxu0 0
        %1052 = vmatpush1.bf16.msra.mxu0 0
        %1053 = vmatprep.subr.bf16.mxu0 0
        %1054 = vmatpush1.bf16.msra.mxu0 0
        %1055 = vmatprep.subr.bf16.mxu0 0
        %1056 = vmatpush1.bf16.msra.mxu0 0
        %1057 = vmatprep.mubr.bf16.mxu0 0
        %1058 = vmatmul.mubr.bf16.gmra.mrb[0].mxu0 %v999
        %v1059 = vpop.f32.mrb[0].mxu0
        %v1060 = vadd.f32 0.0, %v1059
        %v1061 = vpop.f32.mrb[0].mxu0
        %v1062 = vpop.f32.mrb[0].mxu0
        %v1063 = vadd.f32 0.0, %v1062
        %v1064 = vpop.f32.mrb[0].mxu0
        %1065 = vmatprep.mubr.bf16.mxu0 0
        %1066 = vmatmul.mubr.bf16.gmra.mrb[0].mxu0 %v1002
        %v1067 = vpop.f32.mrb[0].mxu0
        %v1068 = vadd.f32 0.0, %v1067
        %v1069 = vpop.f32.mrb[0].mxu0
        %v1070 = vpop.f32.mrb[0].mxu0
        %v1071 = vadd.f32 0.0, %v1070
        %v1072 = vpop.f32.mrb[0].mxu0
        %1073 = vmatprep.mubr.bf16.mxu0 0
        %1074 = vmatmul.mubr.bf16.gmra.mrb[0].mxu0 %v1005
        %v1075 = vpop.f32.mrb[0].mxu0
        %v1076 = vadd.f32 0.0, %v1075
        %v1077 = vpop.f32.mrb[0].mxu0
        %v1078 = vpop.f32.mrb[0].mxu0
        %v1079 = vadd.f32 0.0, %v1078
        %v1080 = vpop.f32.mrb[0].mxu0
        %1081 = vmatprep.mubr.bf16.mxu0 0
        %1082 = vmatmul.mubr.bf16.gmra.mrb[0].mxu0 %v1008
        %v1083 = vpop.f32.mrb[0].mxu0
        %v1084 = vadd.f32 0.0, %v1083
        %v1085 = vpop.f32.mrb[0].mxu0
        %v1086 = vpop.f32.mrb[0].mxu0
        %v1087 = vadd.f32 0.0, %v1086
        %v1088 = vpop.f32.mrb[0].mxu0
        %1089 = vmatprep.mubr.bf16.mxu0 0
        %1090 = vmatmul.mubr.bf16.gmra.mrb[0].mxu0 %v1011
        %v1091 = vpop.f32.mrb[0].mxu0
        %v1092 = vadd.f32 0.0, %v1091
        %v1093 = vpop.f32.mrb[0].mxu0
        %v1094 = vpop.f32.mrb[0].mxu0
        %v1095 = vadd.f32 0.0, %v1094
        %v1096 = vpop.f32.mrb[0].mxu0
        %1097 = vmatprep.mubr.bf16.mxu0 0
        %1098 = vmatmul.mubr.bf16.gmra.mrb[0].mxu0 %v1014
        %v1099 = vpop.f32.mrb[0].mxu0
        %v1100 = vadd.f32 0.0, %v1099
        %v1101 = vpop.f32.mrb[0].mxu0
        %v1102 = vpop.f32.mrb[0].mxu0
        %v1103 = vadd.f32 0.0, %v1102
        %v1104 = vpop.f32.mrb[0].mxu0
        %1105 = vmatprep.mubr.bf16.mxu0 0
        %1106 = vmatmul.mubr.bf16.gmra.mrb[0].mxu0 %v1017
        %v1107 = vpop.f32.mrb[0].mxu0
        %v1108 = vadd.f32 0.0, %v1107
        %v1109 = vpop.f32.mrb[0].mxu0
        %v1110 = vpop.f32.mrb[0].mxu0
        %v1111 = vadd.f32 0.0, %v1110
        %v1112 = vpop.f32.mrb[0].mxu0
        %1113 = vmatprep.mubr.bf16.mxu0 0
        %1114 = vmatmul.mubr.bf16.gmra.mrb[0].mxu0 %v1020
        %v1115 = vpop.f32.mrb[0].mxu0
        %v1116 = vadd.f32 0.0, %v1115
        %v1117 = vpop.f32.mrb[0].mxu0
        %v1118 = vpop.f32.mrb[0].mxu0
        %v1119 = vadd.f32 0.0, %v1118
        %v1120 = vpop.f32.mrb[0].mxu0
        %1121 = vdwg.mxu0
        %v1122 = vadd.f32 %v827, %v1060
        %v1123 = vadd.f32 %v830, %v1063
        %v1124 = vadd.f32 %v835, %v1068
        %v1125 = vadd.f32 %v838, %v1071
        %v1126 = vadd.f32 %v843, %v1076
        %v1127 = vadd.f32 %v846, %v1079
        %v1128 = vadd.f32 %v851, %v1084
        %v1129 = vadd.f32 %v854, %v1087
        %v1130 = vadd.f32 %v859, %v1092
        %v1131 = vadd.f32 %v862, %v1095
        %v1132 = vadd.f32 %v867, %v1100
        %v1133 = vadd.f32 %v870, %v1103
        %v1134 = vadd.f32 %v875, %v1108
        %v1135 = vadd.f32 %v878, %v1111
        %v1136 = vadd.f32 %v883, %v1116
        %v1137 = vadd.f32 %v886, %v1119
        %s1138 = sadd.s32 %s349, 1
        %s1139 = smul.u32 %s1138, 3
        %s1140 = smul.addr %s1139, 4
        %s1141 = scalar_lea.vmem %s341, %s1140
        %v1142 = vld [vmem:[%s1141] sm:$0xf]
        %v1143 = vld [vmem:[%s1141 + $0x4] sm:$0xf]
        %v1144 = vld [vmem:[%s1141 + $0xc] sm:$0xf]
        %v1145 = vld [vmem:[%s1141 + $0x10] sm:$0xf]
        %v1146 = vld [vmem:[%s1141 + $0x18] sm:$0xf]
        %v1147 = vld [vmem:[%s1141 + $0x1c] sm:$0xf]
        %v1148 = vld [vmem:[%s1141 + $0x24] sm:$0xf]
        %v1149 = vld [vmem:[%s1141 + $0x28] sm:$0xf]
        %v1150 = vld [vmem:[%s1141 + $0x30] sm:$0xf]
        %v1151 = vld [vmem:[%s1141 + $0x34] sm:$0xf]
        %v1152 = vld [vmem:[%s1141 + $0x3c] sm:$0xf]
        %v1153 = vld [vmem:[%s1141 + $0x40] sm:$0xf]
        %v1154 = vld [vmem:[%s1141 + $0x48] sm:$0xf]
        %v1155 = vld [vmem:[%s1141 + $0x4c] sm:$0xf]
        %v1156 = vld [vmem:[%s1141 + $0x54] sm:$0xf]
        %v1157 = vld [vmem:[%s1141 + $0x58] sm:$0xf]
        %s1158 = scalar_lea.vmem %s1, 6
        %v1159 = vld [vmem:[%s1158] sm:$0x3]
        %v1176 = vunpack.c.l.b16 %v1142
        %v1177 = vunpack.c.l.b16 %v1143
        %v1178 = vunpack.c.l.b16 %v1144
        %v1179 = vunpack.c.l.b16 %v1145
        %v1180 = vunpack.c.l.b16 %v1146
        %v1181 = vunpack.c.l.b16 %v1147
        %v1182 = vunpack.c.l.b16 %v1148
        %v1183 = vunpack.c.l.b16 %v1149
        %v1184 = vunpack.c.l.b16 %v1150
        %v1185 = vunpack.c.l.b16 %v1151
        %v1186 = vunpack.c.l.b16 %v1152
        %v1187 = vunpack.c.l.b16 %v1153
        %v1188 = vunpack.c.l.b16 %v1154
        %v1189 = vunpack.c.l.b16 %v1155
        %v1190 = vunpack.c.l.b16 %v1156
        %v1191 = vunpack.c.l.b16 %v1157
        %v1192 = vpack.c.b16 %v1177, %v1176
        %v1193 = vpack.c.b16 %v1179, %v1178
        %v1194 = vpack.c.b16 %v1181, %v1180
        %v1195 = vpack.c.b16 %v1183, %v1182
        %v1196 = vpack.c.b16 %v1185, %v1184
        %v1197 = vpack.c.b16 %v1187, %v1186
        %v1198 = vpack.c.b16 %v1189, %v1188
        %v1199 = vpack.c.b16 %v1191, %v1190
        %v1201 = vsel %vm599, %v1192, 0
        %v1204 = vsel %vm599, %v1193, 0
        %v1207 = vsel %vm599, %v1194, 0
        %v1210 = vsel %vm599, %v1195, 0
        %v1213 = vsel %vm599, %v1196, 0
        %v1216 = vsel %vm599, %v1197, 0
        %v1219 = vsel %vm599, %v1198, 0
        %v1222 = vsel %vm599, %v1199, 0
        %v1225 = vsel %vm624, %v1159, 0
        %1227 = vmatprep.subr.bf16.mxu0 0
        %1228 = vmatpush1.bf16.msra.mxu0 %v1225
        %1229 = vmatprep.subr.bf16.mxu0 0
        %1230 = vmatpush1.bf16.msra.mxu0 0
        %1231 = vmatprep.subr.bf16.mxu0 0
        %1232 = vmatpush1.bf16.msra.mxu0 0
        %1233 = vmatprep.subr.bf16.mxu0 0
        %1234 = vmatpush1.bf16.msra.mxu0 0
        %1235 = vmatprep.subr.bf16.mxu0 0
        %1236 = vmatpush1.bf16.msra.mxu0 0
        %1237 = vmatprep.subr.bf16.mxu0 0
        %1238 = vmatpush1.bf16.msra.mxu0 0
        %1239 = vmatprep.subr.bf16.mxu0 0
        %1240 = vmatpush1.bf16.msra.mxu0 0
        %1241 = vmatprep.subr.bf16.mxu0 0
        %1242 = vmatpush1.bf16.msra.mxu0 0
        %1243 = vmatprep.subr.bf16.mxu0 0
        %1244 = vmatpush1.bf16.msra.mxu0 0
        %1245 = vmatprep.subr.bf16.mxu0 0
        %1246 = vmatpush1.bf16.msra.mxu0 0
        %1247 = vmatprep.subr.bf16.mxu0 0
        %1248 = vmatpush1.bf16.msra.mxu0 0
        %1249 = vmatprep.subr.bf16.mxu0 0
        %1250 = vmatpush1.bf16.msra.mxu0 0
        %1251 = vmatprep.subr.bf16.mxu0 0
        %1252 = vmatpush1.bf16.msra.mxu0 0
        %1253 = vmatprep.subr.bf16.mxu0 0
        %1254 = vmatpush1.bf16.msra.mxu0 0
        %1255 = vmatprep.subr.bf16.mxu0 0
        %1256 = vmatpush1.bf16.msra.mxu0 0
        %1257 = vmatprep.subr.bf16.mxu0 0
        %1258 = vmatpush1.bf16.msra.mxu0 0
        %1259 = vmatprep.mubr.bf16.mxu0 0
        %1260 = vmatmul.mubr.bf16.gmra.mrb[0].mxu0 %v1201
        %v1261 = vpop.f32.mrb[0].mxu0
        %v1262 = vadd.f32 0.0, %v1261
        %v1263 = vpop.f32.mrb[0].mxu0
        %v1264 = vpop.f32.mrb[0].mxu0
        %v1265 = vadd.f32 0.0, %v1264
        %v1266 = vpop.f32.mrb[0].mxu0
        %1267 = vmatprep.mubr.bf16.mxu0 0
        %1268 = vmatmul.mubr.bf16.gmra.mrb[0].mxu0 %v1204
        %v1269 = vpop.f32.mrb[0].mxu0
        %v1270 = vadd.f32 0.0, %v1269
        %v1271 = vpop.f32.mrb[0].mxu0
        %v1272 = vpop.f32.mrb[0].mxu0
        %v1273 = vadd.f32 0.0, %v1272
        %v1274 = vpop.f32.mrb[0].mxu0
        %1275 = vmatprep.mubr.bf16.mxu0 0
        %1276 = vmatmul.mubr.bf16.gmra.mrb[0].mxu0 %v1207
        %v1277 = vpop.f32.mrb[0].mxu0
        %v1278 = vadd.f32 0.0, %v1277
        %v1279 = vpop.f32.mrb[0].mxu0
        %v1280 = vpop.f32.mrb[0].mxu0
        %v1281 = vadd.f32 0.0, %v1280
        %v1282 = vpop.f32.mrb[0].mxu0
        %1283 = vmatprep.mubr.bf16.mxu0 0
        %1284 = vmatmul.mubr.bf16.gmra.mrb[0].mxu0 %v1210
        %v1285 = vpop.f32.mrb[0].mxu0
        %v1286 = vadd.f32 0.0, %v1285
        %v1287 = vpop.f32.mrb[0].mxu0
        %v1288 = vpop.f32.mrb[0].mxu0
        %v1289 = vadd.f32 0.0, %v1288
        %v1290 = vpop.f32.mrb[0].mxu0
        %1291 = vmatprep.mubr.bf16.mxu0 0
        %1292 = vmatmul.mubr.bf16.gmra.mrb[0].mxu0 %v1213
        %v1293 = vpop.f32.mrb[0].mxu0
        %v1294 = vadd.f32 0.0, %v1293
        %v1295 = vpop.f32.mrb[0].mxu0
        %v1296 = vpop.f32.mrb[0].mxu0
        %v1297 = vadd.f32 0.0, %v1296
        %v1298 = vpop.f32.mrb[0].mxu0
        %1299 = vmatprep.mubr.bf16.mxu0 0
        %1300 = vmatmul.mubr.bf16.gmra.mrb[0].mxu0 %v1216
        %v1301 = vpop.f32.mrb[0].mxu0
        %v1302 = vadd.f32 0.0, %v1301
        %v1303 = vpop.f32.mrb[0].mxu0
        %v1304 = vpop.f32.mrb[0].mxu0
        %v1305 = vadd.f32 0.0, %v1304
        %v1306 = vpop.f32.mrb[0].mxu0
        %1307 = vmatprep.mubr.bf16.mxu0 0
        %1308 = vmatmul.mubr.bf16.gmra.mrb[0].mxu0 %v1219
        %v1309 = vpop.f32.mrb[0].mxu0
        %v1310 = vadd.f32 0.0, %v1309
        %v1311 = vpop.f32.mrb[0].mxu0
        %v1312 = vpop.f32.mrb[0].mxu0
        %v1313 = vadd.f32 0.0, %v1312
        %v1314 = vpop.f32.mrb[0].mxu0
        %1315 = vmatprep.mubr.bf16.mxu0 0
        %1316 = vmatmul.mubr.bf16.gmra.mrb[0].mxu0 %v1222
        %v1317 = vpop.f32.mrb[0].mxu0
        %v1318 = vadd.f32 0.0, %v1317
        %v1319 = vpop.f32.mrb[0].mxu0
        %v1320 = vpop.f32.mrb[0].mxu0
        %v1321 = vadd.f32 0.0, %v1320
        %v1322 = vpop.f32.mrb[0].mxu0
        %1323 = vdwg.mxu0
        %v1324 = vadd.f32 %v1122, %v1262
        %v1325 = vadd.f32 %v1123, %v1265
        %v1326 = vadd.f32 %v1124, %v1270
        %v1327 = vadd.f32 %v1125, %v1273
        %v1328 = vadd.f32 %v1126, %v1278
        %v1329 = vadd.f32 %v1127, %v1281
        %v1330 = vadd.f32 %v1128, %v1286
        %v1331 = vadd.f32 %v1129, %v1289
        %v1332 = vadd.f32 %v1130, %v1294
        %v1333 = vadd.f32 %v1131, %v1297
        %v1334 = vadd.f32 %v1132, %v1302
        %v1335 = vadd.f32 %v1133, %v1305
        %v1336 = vadd.f32 %v1134, %v1310
        %v1337 = vadd.f32 %v1135, %v1313
        %v1338 = vadd.f32 %v1136, %v1318
        %v1339 = vadd.f32 %v1137, %v1321
        %v1340 = vld [vmem:[%s1141] sm:$0xf]
        %v1341 = vld [vmem:[%s1141 + $0x4] sm:$0xf]
        %v1342 = vld [vmem:[%s1141 + $0x8] sm:$0x1]
        %v1343 = vld [vmem:[%s1141 + $0xc] sm:$0xf]
        %v1344 = vld [vmem:[%s1141 + $0x10] sm:$0xf]
        %v1345 = vld [vmem:[%s1141 + $0x14] sm:$0x1]
        %v1346 = vld [vmem:[%s1141 + $0x18] sm:$0xf]
        %v1347 = vld [vmem:[%s1141 + $0x1c] sm:$0xf]
        %v1348 = vld [vmem:[%s1141 + $0x20] sm:$0x1]
        %v1349 = vld [vmem:[%s1141 + $0x24] sm:$0xf]
        %v1350 = vld [vmem:[%s1141 + $0x28] sm:$0xf]
        %v1351 = vld [vmem:[%s1141 + $0x2c] sm:$0x1]
        %v1352 = vld [vmem:[%s1141 + $0x30] sm:$0xf]
        %v1353 = vld [vmem:[%s1141 + $0x34] sm:$0xf]
        %v1354 = vld [vmem:[%s1141 + $0x38] sm:$0x1]
        %v1355 = vld [vmem:[%s1141 + $0x3c] sm:$0xf]
        %v1356 = vld [vmem:[%s1141 + $0x40] sm:$0xf]
        %v1357 = vld [vmem:[%s1141 + $0x44] sm:$0x1]
        %v1358 = vld [vmem:[%s1141 + $0x48] sm:$0xf]
        %v1359 = vld [vmem:[%s1141 + $0x4c] sm:$0xf]
        %v1360 = vld [vmem:[%s1141 + $0x50] sm:$0x1]
        %v1361 = vld [vmem:[%s1141 + $0x54] sm:$0xf]
        %v1362 = vld [vmem:[%s1141 + $0x58] sm:$0xf]
        %v1363 = vld [vmem:[%s1141 + $0x5c] sm:$0x1]
        %v1365 = vshrl.u32 %v1340, 16
        %v1367 = vrot.slane %v1365, 4
        %v1368 = vshll.u32 %v1340, 16
        %v1370 = vrot.slane %v1368, 5
        %v1371 = vor.u32 %v1367, %v1370
        %v1372 = vrot.slane %v1371, 4
        %v1374 = vshll.u32 %v1341, 16
        %v1376 = vrot.slane %v1374, 5
        %v1377 = vsel %vm380, %v1372, %v1376
        %v1378 = vshrl.u32 %v1341, 16
        %v1380 = vrot.slane %v1378, 4
        %v1381 = vor.u32 %v1380, %v1376
        %v1382 = vrot.slane %v1381, 4
        %v1384 = vshll.u32 %v1342, 16
        %v1386 = vrot.slane %v1384, 5
        %v1387 = vsel %vm380, %v1382, %v1386
        %v1389 = vshrl.u32 %v1343, 16
        %v1391 = vrot.slane %v1389, 4
        %v1392 = vshll.u32 %v1343, 16
        %v1394 = vrot.slane %v1392, 5
        %v1395 = vor.u32 %v1391, %v1394
        %v1396 = vrot.slane %v1395, 4
        %v1398 = vshll.u32 %v1344, 16
        %v1400 = vrot.slane %v1398, 5
        %v1401 = vsel %vm380, %v1396, %v1400
        %v1402 = vshrl.u32 %v1344, 16
        %v1404 = vrot.slane %v1402, 4
        %v1405 = vor.u32 %v1404, %v1400
        %v1406 = vrot.slane %v1405, 4
        %v1408 = vshll.u32 %v1345, 16
        %v1410 = vrot.slane %v1408, 5
        %v1411 = vsel %vm380, %v1406, %v1410
        %v1413 = vshrl.u32 %v1346, 16
        %v1415 = vrot.slane %v1413, 4
        %v1416 = vshll.u32 %v1346, 16
        %v1418 = vrot.slane %v1416, 5
        %v1419 = vor.u32 %v1415, %v1418
        %v1420 = vrot.slane %v1419, 4
        %v1422 = vshll.u32 %v1347, 16
        %v1424 = vrot.slane %v1422, 5
        %v1425 = vsel %vm380, %v1420, %v1424
        %v1426 = vshrl.u32 %v1347, 16
        %v1428 = vrot.slane %v1426, 4
        %v1429 = vor.u32 %v1428, %v1424
        %v1430 = vrot.slane %v1429, 4
        %v1432 = vshll.u32 %v1348, 16
        %v1434 = vrot.slane %v1432, 5
        %v1435 = vsel %vm380, %v1430, %v1434
        %v1437 = vshrl.u32 %v1349, 16
        %v1439 = vrot.slane %v1437, 4
        %v1440 = vshll.u32 %v1349, 16
        %v1442 = vrot.slane %v1440, 5
        %v1443 = vor.u32 %v1439, %v1442
        %v1444 = vrot.slane %v1443, 4
        %v1446 = vshll.u32 %v1350, 16
        %v1448 = vrot.slane %v1446, 5
        %v1449 = vsel %vm380, %v1444, %v1448
        %v1450 = vshrl.u32 %v1350, 16
        %v1452 = vrot.slane %v1450, 4
        %v1453 = vor.u32 %v1452, %v1448
        %v1454 = vrot.slane %v1453, 4
        %v1456 = vshll.u32 %v1351, 16
        %v1458 = vrot.slane %v1456, 5
        %v1459 = vsel %vm380, %v1454, %v1458
        %v1461 = vshrl.u32 %v1352, 16
        %v1463 = vrot.slane %v1461, 4
        %v1464 = vshll.u32 %v1352, 16
        %v1466 = vrot.slane %v1464, 5
        %v1467 = vor.u32 %v1463, %v1466
        %v1468 = vrot.slane %v1467, 4
        %v1470 = vshll.u32 %v1353, 16
        %v1472 = vrot.slane %v1470, 5
        %v1473 = vsel %vm380, %v1468, %v1472
        %v1474 = vshrl.u32 %v1353, 16
        %v1476 = vrot.slane %v1474, 4
        %v1477 = vor.u32 %v1476, %v1472
        %v1478 = vrot.slane %v1477, 4
        %v1480 = vshll.u32 %v1354, 16
        %v1482 = vrot.slane %v1480, 5
        %v1483 = vsel %vm380, %v1478, %v1482
        %v1485 = vshrl.u32 %v1355, 16
        %v1487 = vrot.slane %v1485, 4
        %v1488 = vshll.u32 %v1355, 16
        %v1490 = vrot.slane %v1488, 5
        %v1491 = vor.u32 %v1487, %v1490
        %v1492 = vrot.slane %v1491, 4
        %v1494 = vshll.u32 %v1356, 16
        %v1496 = vrot.slane %v1494, 5
        %v1497 = vsel %vm380, %v1492, %v1496
        %v1498 = vshrl.u32 %v1356, 16
        %v1500 = vrot.slane %v1498, 4
        %v1501 = vor.u32 %v1500, %v1496
        %v1502 = vrot.slane %v1501, 4
        %v1504 = vshll.u32 %v1357, 16
        %v1506 = vrot.slane %v1504, 5
        %v1507 = vsel %vm380, %v1502, %v1506
        %v1509 = vshrl.u32 %v1358, 16
        %v1511 = vrot.slane %v1509, 4
        %v1512 = vshll.u32 %v1358, 16
        %v1514 = vrot.slane %v1512, 5
        %v1515 = vor.u32 %v1511, %v1514
        %v1516 = vrot.slane %v1515, 4
        %v1518 = vshll.u32 %v1359, 16
        %v1520 = vrot.slane %v1518, 5
        %v1521 = vsel %vm380, %v1516, %v1520
        %v1522 = vshrl.u32 %v1359, 16
        %v1524 = vrot.slane %v1522, 4
        %v1525 = vor.u32 %v1524, %v1520
        %v1526 = vrot.slane %v1525, 4
        %v1528 = vshll.u32 %v1360, 16
        %v1530 = vrot.slane %v1528, 5
        %v1531 = vsel %vm380, %v1526, %v1530
        %v1533 = vshrl.u32 %v1361, 16
        %v1535 = vrot.slane %v1533, 4
        %v1536 = vshll.u32 %v1361, 16
        %v1538 = vrot.slane %v1536, 5
        %v1539 = vor.u32 %v1535, %v1538
        %v1540 = vrot.slane %v1539, 4
        %v1542 = vshll.u32 %v1362, 16
        %v1544 = vrot.slane %v1542, 5
        %v1545 = vsel %vm380, %v1540, %v1544
        %v1546 = vshrl.u32 %v1362, 16
        %v1548 = vrot.slane %v1546, 4
        %v1549 = vor.u32 %v1548, %v1544
        %v1550 = vrot.slane %v1549, 4
        %v1552 = vshll.u32 %v1363, 16
        %v1554 = vrot.slane %v1552, 5
        %v1555 = vsel %vm380, %v1550, %v1554
        %s1556 = scalar_lea.vmem %s1, 8
        %v1557 = vld [vmem:[%s1556] sm:$0x3]
        %v1558 = vunpack.c.l.b16 %v1377
        %v1559 = vunpack.c.l.b16 %v1387
        %v1560 = vunpack.c.l.b16 %v1401
        %v1561 = vunpack.c.l.b16 %v1411
        %v1562 = vunpack.c.l.b16 %v1425
        %v1563 = vunpack.c.l.b16 %v1435
        %v1564 = vunpack.c.l.b16 %v1449
        %v1565 = vunpack.c.l.b16 %v1459
        %v1566 = vunpack.c.l.b16 %v1473
        %v1567 = vunpack.c.l.b16 %v1483
        %v1568 = vunpack.c.l.b16 %v1497
        %v1569 = vunpack.c.l.b16 %v1507
        %v1570 = vunpack.c.l.b16 %v1521
        %v1571 = vunpack.c.l.b16 %v1531
        %v1572 = vunpack.c.l.b16 %v1545
        %v1573 = vunpack.c.l.b16 %v1555
        %v1574 = vpack.c.b16 %v1559, %v1558
        %v1575 = vpack.c.b16 %v1561, %v1560
        %v1576 = vpack.c.b16 %v1563, %v1562
        %v1577 = vpack.c.b16 %v1565, %v1564
        %v1578 = vpack.c.b16 %v1567, %v1566
        %v1579 = vpack.c.b16 %v1569, %v1568
        %v1580 = vpack.c.b16 %v1571, %v1570
        %v1581 = vpack.c.b16 %v1573, %v1572
        %v1583 = vsel %vm599, %v1574, 0
        %v1586 = vsel %vm599, %v1575, 0
        %v1589 = vsel %vm599, %v1576, 0
        %v1592 = vsel %vm599, %v1577, 0
        %v1595 = vsel %vm599, %v1578, 0
        %v1598 = vsel %vm599, %v1579, 0
        %v1601 = vsel %vm599, %v1580, 0
        %v1604 = vsel %vm599, %v1581, 0
        %v1607 = vsel %vm624, %v1557, 0
        %1609 = vmatprep.subr.bf16.mxu0 0
        %1610 = vmatpush1.bf16.msra.mxu0 %v1607
        %1611 = vmatprep.subr.bf16.mxu0 0
        %1612 = vmatpush1.bf16.msra.mxu0 0
        %1613 = vmatprep.subr.bf16.mxu0 0
        %1614 = vmatpush1.bf16.msra.mxu0 0
        %1615 = vmatprep.subr.bf16.mxu0 0
        %1616 = vmatpush1.bf16.msra.mxu0 0
        %1617 = vmatprep.subr.bf16.mxu0 0
        %1618 = vmatpush1.bf16.msra.mxu0 0
        %1619 = vmatprep.subr.bf16.mxu0 0
        %1620 = vmatpush1.bf16.msra.mxu0 0
        %1621 = vmatprep.subr.bf16.mxu0 0
        %1622 = vmatpush1.bf16.msra.mxu0 0
        %1623 = vmatprep.subr.bf16.mxu0 0
        %1624 = vmatpush1.bf16.msra.mxu0 0
        %1625 = vmatprep.subr.bf16.mxu0 0
        %1626 = vmatpush1.bf16.msra.mxu0 0
        %1627 = vmatprep.subr.bf16.mxu0 0
        %1628 = vmatpush1.bf16.msra.mxu0 0
        %1629 = vmatprep.subr.bf16.mxu0 0
        %1630 = vmatpush1.bf16.msra.mxu0 0
        %1631 = vmatprep.subr.bf16.mxu0 0
        %1632 = vmatpush1.bf16.msra.mxu0 0
        %1633 = vmatprep.subr.bf16.mxu0 0
        %1634 = vmatpush1.bf16.msra.mxu0 0
        %1635 = vmatprep.subr.bf16.mxu0 0
        %1636 = vmatpush1.bf16.msra.mxu0 0
        %1637 = vmatprep.subr.bf16.mxu0 0
        %1638 = vmatpush1.bf16.msra.mxu0 0
        %1639 = vmatprep.subr.bf16.mxu0 0
        %1640 = vmatpush1.bf16.msra.mxu0 0
        %1641 = vmatprep.mubr.bf16.mxu0 0
        %1642 = vmatmul.mubr.bf16.gmra.mrb[0].mxu0 %v1583
        %v1643 = vpop.f32.mrb[0].mxu0
        %v1644 = vadd.f32 0.0, %v1643
        %v1645 = vpop.f32.mrb[0].mxu0
        %v1646 = vpop.f32.mrb[0].mxu0
        %v1647 = vadd.f32 0.0, %v1646
        %v1648 = vpop.f32.mrb[0].mxu0
        %1649 = vmatprep.mubr.bf16.mxu0 0
        %1650 = vmatmul.mubr.bf16.gmra.mrb[0].mxu0 %v1586
        %v1651 = vpop.f32.mrb[0].mxu0
        %v1652 = vadd.f32 0.0, %v1651
        %v1653 = vpop.f32.mrb[0].mxu0
        %v1654 = vpop.f32.mrb[0].mxu0
        %v1655 = vadd.f32 0.0, %v1654
        %v1656 = vpop.f32.mrb[0].mxu0
        %1657 = vmatprep.mubr.bf16.mxu0 0
        %1658 = vmatmul.mubr.bf16.gmra.mrb[0].mxu0 %v1589
        %v1659 = vpop.f32.mrb[0].mxu0
        %v1660 = vadd.f32 0.0, %v1659
        %v1661 = vpop.f32.mrb[0].mxu0
        %v1662 = vpop.f32.mrb[0].mxu0
        %v1663 = vadd.f32 0.0, %v1662
        %v1664 = vpop.f32.mrb[0].mxu0
        %1665 = vmatprep.mubr.bf16.mxu0 0
        %1666 = vmatmul.mubr.bf16.gmra.mrb[0].mxu0 %v1592
        %v1667 = vpop.f32.mrb[0].mxu0
        %v1668 = vadd.f32 0.0, %v1667
        %v1669 = vpop.f32.mrb[0].mxu0
        %v1670 = vpop.f32.mrb[0].mxu0
        %v1671 = vadd.f32 0.0, %v1670
        %v1672 = vpop.f32.mrb[0].mxu0
        %1673 = vmatprep.mubr.bf16.mxu0 0
        %1674 = vmatmul.mubr.bf16.gmra.mrb[0].mxu0 %v1595
        %v1675 = vpop.f32.mrb[0].mxu0
        %v1676 = vadd.f32 0.0, %v1675
        %v1677 = vpop.f32.mrb[0].mxu0
        %v1678 = vpop.f32.mrb[0].mxu0
        %v1679 = vadd.f32 0.0, %v1678
        %v1680 = vpop.f32.mrb[0].mxu0
        %1681 = vmatprep.mubr.bf16.mxu0 0
        %1682 = vmatmul.mubr.bf16.gmra.mrb[0].mxu0 %v1598
        %v1683 = vpop.f32.mrb[0].mxu0
        %v1684 = vadd.f32 0.0, %v1683
        %v1685 = vpop.f32.mrb[0].mxu0
        %v1686 = vpop.f32.mrb[0].mxu0
        %v1687 = vadd.f32 0.0, %v1686
        %v1688 = vpop.f32.mrb[0].mxu0
        %1689 = vmatprep.mubr.bf16.mxu0 0
        %1690 = vmatmul.mubr.bf16.gmra.mrb[0].mxu0 %v1601
        %v1691 = vpop.f32.mrb[0].mxu0
        %v1692 = vadd.f32 0.0, %v1691
        %v1693 = vpop.f32.mrb[0].mxu0
        %v1694 = vpop.f32.mrb[0].mxu0
        %v1695 = vadd.f32 0.0, %v1694
        %v1696 = vpop.f32.mrb[0].mxu0
        %1697 = vmatprep.mubr.bf16.mxu0 0
        %1698 = vmatmul.mubr.bf16.gmra.mrb[0].mxu0 %v1604
        %v1699 = vpop.f32.mrb[0].mxu0
        %v1700 = vadd.f32 0.0, %v1699
        %v1701 = vpop.f32.mrb[0].mxu0
        %v1702 = vpop.f32.mrb[0].mxu0
        %v1703 = vadd.f32 0.0, %v1702
        %v1704 = vpop.f32.mrb[0].mxu0
        %1705 = vdwg.mxu0
        %v1706 = vadd.f32 %v1324, %v1644
        %v1707 = vadd.f32 %v1325, %v1647
        %v1708 = vadd.f32 %v1326, %v1652
        %v1709 = vadd.f32 %v1327, %v1655
        %v1710 = vadd.f32 %v1328, %v1660
        %v1711 = vadd.f32 %v1329, %v1663
        %v1712 = vadd.f32 %v1330, %v1668
        %v1713 = vadd.f32 %v1331, %v1671
        %v1714 = vadd.f32 %v1332, %v1676
        %v1715 = vadd.f32 %v1333, %v1679
        %v1716 = vadd.f32 %v1334, %v1684
        %v1717 = vadd.f32 %v1335, %v1687
        %v1718 = vadd.f32 %v1336, %v1692
        %v1719 = vadd.f32 %v1337, %v1695
        %v1720 = vadd.f32 %v1338, %v1700
        %v1721 = vadd.f32 %v1339, %v1703
        %v1722 = vld [vmem:[%s1141] sm:$0xe]
        %v1723 = vld [vmem:[%s1141 + $0xc] sm:$0xe]
        %v1724 = vld [vmem:[%s1141 + $0x18] sm:$0xe]
        %v1725 = vld [vmem:[%s1141 + $0x24] sm:$0xe]
        %v1726 = vld [vmem:[%s1141 + $0x30] sm:$0xe]
        %v1727 = vld [vmem:[%s1141 + $0x3c] sm:$0xe]
        %v1728 = vld [vmem:[%s1141 + $0x48] sm:$0xe]
        %v1729 = vld [vmem:[%s1141 + $0x54] sm:$0xe]
        %v1754 = vrot.slane %v1722, 5
        %v1755 = vrot.slane %v1754, 4
        %v1756 = vrot.slane %v1341, 5
        %v1757 = vsel %vm915, %v1755, %v1756
        %v1758 = vrot.slane %v1756, 4
        %v1759 = vrot.slane %v1342, 5
        %v1760 = vsel %vm915, %v1758, %v1759
        %v1761 = vrot.slane %v1723, 5
        %v1762 = vrot.slane %v1761, 4
        %v1763 = vrot.slane %v1344, 5
        %v1764 = vsel %vm915, %v1762, %v1763
        %v1765 = vrot.slane %v1763, 4
        %v1766 = vrot.slane %v1345, 5
        %v1767 = vsel %vm915, %v1765, %v1766
        %v1768 = vrot.slane %v1724, 5
        %v1769 = vrot.slane %v1768, 4
        %v1770 = vrot.slane %v1347, 5
        %v1771 = vsel %vm915, %v1769, %v1770
        %v1772 = vrot.slane %v1770, 4
        %v1773 = vrot.slane %v1348, 5
        %v1774 = vsel %vm915, %v1772, %v1773
        %v1775 = vrot.slane %v1725, 5
        %v1776 = vrot.slane %v1775, 4
        %v1777 = vrot.slane %v1350, 5
        %v1778 = vsel %vm915, %v1776, %v1777
        %v1779 = vrot.slane %v1777, 4
        %v1780 = vrot.slane %v1351, 5
        %v1781 = vsel %vm915, %v1779, %v1780
        %v1782 = vrot.slane %v1726, 5
        %v1783 = vrot.slane %v1782, 4
        %v1784 = vrot.slane %v1353, 5
        %v1785 = vsel %vm915, %v1783, %v1784
        %v1786 = vrot.slane %v1784, 4
        %v1787 = vrot.slane %v1354, 5
        %v1788 = vsel %vm915, %v1786, %v1787
        %v1789 = vrot.slane %v1727, 5
        %v1790 = vrot.slane %v1789, 4
        %v1791 = vrot.slane %v1356, 5
        %v1792 = vsel %vm915, %v1790, %v1791
        %v1793 = vrot.slane %v1791, 4
        %v1794 = vrot.slane %v1357, 5
        %v1795 = vsel %vm915, %v1793, %v1794
        %v1796 = vrot.slane %v1728, 5
        %v1797 = vrot.slane %v1796, 4
        %v1798 = vrot.slane %v1359, 5
        %v1799 = vsel %vm915, %v1797, %v1798
        %v1800 = vrot.slane %v1798, 4
        %v1801 = vrot.slane %v1360, 5
        %v1802 = vsel %vm915, %v1800, %v1801
        %v1803 = vrot.slane %v1729, 5
        %v1804 = vrot.slane %v1803, 4
        %v1805 = vrot.slane %v1362, 5
        %v1806 = vsel %vm915, %v1804, %v1805
        %v1807 = vrot.slane %v1805, 4
        %v1808 = vrot.slane %v1363, 5
        %v1809 = vsel %vm915, %v1807, %v1808
        %s1810 = scalar_lea.vmem %s1, 10
        %v1811 = vld [vmem:[%s1810] sm:$0x3]
        %v1812 = vunpack.c.l.b16 %v1757
        %v1813 = vunpack.c.l.b16 %v1760
        %v1814 = vunpack.c.l.b16 %v1764
        %v1815 = vunpack.c.l.b16 %v1767
        %v1816 = vunpack.c.l.b16 %v1771
        %v1817 = vunpack.c.l.b16 %v1774
        %v1818 = vunpack.c.l.b16 %v1778
        %v1819 = vunpack.c.l.b16 %v1781
        %v1820 = vunpack.c.l.b16 %v1785
        %v1821 = vunpack.c.l.b16 %v1788
        %v1822 = vunpack.c.l.b16 %v1792
        %v1823 = vunpack.c.l.b16 %v1795
        %v1824 = vunpack.c.l.b16 %v1799
        %v1825 = vunpack.c.l.b16 %v1802
        %v1826 = vunpack.c.l.b16 %v1806
        %v1827 = vunpack.c.l.b16 %v1809
        %v1828 = vpack.c.b16 %v1813, %v1812
        %v1829 = vpack.c.b16 %v1815, %v1814
        %v1830 = vpack.c.b16 %v1817, %v1816
        %v1831 = vpack.c.b16 %v1819, %v1818
        %v1832 = vpack.c.b16 %v1821, %v1820
        %v1833 = vpack.c.b16 %v1823, %v1822
        %v1834 = vpack.c.b16 %v1825, %v1824
        %v1835 = vpack.c.b16 %v1827, %v1826
        %v1837 = vsel %vm599, %v1828, 0
        %v1840 = vsel %vm599, %v1829, 0
        %v1843 = vsel %vm599, %v1830, 0
        %v1846 = vsel %vm599, %v1831, 0
        %v1849 = vsel %vm599, %v1832, 0
        %v1852 = vsel %vm599, %v1833, 0
        %v1855 = vsel %vm599, %v1834, 0
        %v1858 = vsel %vm599, %v1835, 0
        %v1861 = vsel %vm624, %v1811, 0
        %1863 = vmatprep.subr.bf16.mxu0 0
        %1864 = vmatpush1.bf16.msra.mxu0 %v1861
        %1865 = vmatprep.subr.bf16.mxu0 0
        %1866 = vmatpush1.bf16.msra.mxu0 0
        %1867 = vmatprep.subr.bf16.mxu0 0
        %1868 = vmatpush1.bf16.msra.mxu0 0
        %1869 = vmatprep.subr.bf16.mxu0 0
        %1870 = vmatpush1.bf16.msra.mxu0 0
        %1871 = vmatprep.subr.bf16.mxu0 0
        %1872 = vmatpush1.bf16.msra.mxu0 0
        %1873 = vmatprep.subr.bf16.mxu0 0
        %1874 = vmatpush1.bf16.msra.mxu0 0
        %1875 = vmatprep.subr.bf16.mxu0 0
        %1876 = vmatpush1.bf16.msra.mxu0 0
        %1877 = vmatprep.subr.bf16.mxu0 0
        %1878 = vmatpush1.bf16.msra.mxu0 0
        %1879 = vmatprep.subr.bf16.mxu0 0
        %1880 = vmatpush1.bf16.msra.mxu0 0
        %1881 = vmatprep.subr.bf16.mxu0 0
        %1882 = vmatpush1.bf16.msra.mxu0 0
        %1883 = vmatprep.subr.bf16.mxu0 0
        %1884 = vmatpush1.bf16.msra.mxu0 0
        %1885 = vmatprep.subr.bf16.mxu0 0
        %1886 = vmatpush1.bf16.msra.mxu0 0
        %1887 = vmatprep.subr.bf16.mxu0 0
        %1888 = vmatpush1.bf16.msra.mxu0 0
        %1889 = vmatprep.subr.bf16.mxu0 0
        %1890 = vmatpush1.bf16.msra.mxu0 0
        %1891 = vmatprep.subr.bf16.mxu0 0
        %1892 = vmatpush1.bf16.msra.mxu0 0
        %1893 = vmatprep.subr.bf16.mxu0 0
        %1894 = vmatpush1.bf16.msra.mxu0 0
        %1895 = vmatprep.mubr.bf16.mxu0 0
        %1896 = vmatmul.mubr.bf16.gmra.mrb[0].mxu0 %v1837
        %v1897 = vpop.f32.mrb[0].mxu0
        %v1898 = vadd.f32 0.0, %v1897
        %v1899 = vpop.f32.mrb[0].mxu0
        %v1900 = vpop.f32.mrb[0].mxu0
        %v1901 = vadd.f32 0.0, %v1900
        %v1902 = vpop.f32.mrb[0].mxu0
        %1903 = vmatprep.mubr.bf16.mxu0 0
        %1904 = vmatmul.mubr.bf16.gmra.mrb[0].mxu0 %v1840
        %v1905 = vpop.f32.mrb[0].mxu0
        %v1906 = vadd.f32 0.0, %v1905
        %v1907 = vpop.f32.mrb[0].mxu0
        %v1908 = vpop.f32.mrb[0].mxu0
        %v1909 = vadd.f32 0.0, %v1908
        %v1910 = vpop.f32.mrb[0].mxu0
        %1911 = vmatprep.mubr.bf16.mxu0 0
        %1912 = vmatmul.mubr.bf16.gmra.mrb[0].mxu0 %v1843
        %v1913 = vpop.f32.mrb[0].mxu0
        %v1914 = vadd.f32 0.0, %v1913
        %v1915 = vpop.f32.mrb[0].mxu0
        %v1916 = vpop.f32.mrb[0].mxu0
        %v1917 = vadd.f32 0.0, %v1916
        %v1918 = vpop.f32.mrb[0].mxu0
        %1919 = vmatprep.mubr.bf16.mxu0 0
        %1920 = vmatmul.mubr.bf16.gmra.mrb[0].mxu0 %v1846
        %v1921 = vpop.f32.mrb[0].mxu0
        %v1922 = vadd.f32 0.0, %v1921
        %v1923 = vpop.f32.mrb[0].mxu0
        %v1924 = vpop.f32.mrb[0].mxu0
        %v1925 = vadd.f32 0.0, %v1924
        %v1926 = vpop.f32.mrb[0].mxu0
        %1927 = vmatprep.mubr.bf16.mxu0 0
        %1928 = vmatmul.mubr.bf16.gmra.mrb[0].mxu0 %v1849
        %v1929 = vpop.f32.mrb[0].mxu0
        %v1930 = vadd.f32 0.0, %v1929
        %v1931 = vpop.f32.mrb[0].mxu0
        %v1932 = vpop.f32.mrb[0].mxu0
        %v1933 = vadd.f32 0.0, %v1932
        %v1934 = vpop.f32.mrb[0].mxu0
        %1935 = vmatprep.mubr.bf16.mxu0 0
        %1936 = vmatmul.mubr.bf16.gmra.mrb[0].mxu0 %v1852
        %v1937 = vpop.f32.mrb[0].mxu0
        %v1938 = vadd.f32 0.0, %v1937
        %v1939 = vpop.f32.mrb[0].mxu0
        %v1940 = vpop.f32.mrb[0].mxu0
        %v1941 = vadd.f32 0.0, %v1940
        %v1942 = vpop.f32.mrb[0].mxu0
        %1943 = vmatprep.mubr.bf16.mxu0 0
        %1944 = vmatmul.mubr.bf16.gmra.mrb[0].mxu0 %v1855
        %v1945 = vpop.f32.mrb[0].mxu0
        %v1946 = vadd.f32 0.0, %v1945
        %v1947 = vpop.f32.mrb[0].mxu0
        %v1948 = vpop.f32.mrb[0].mxu0
        %v1949 = vadd.f32 0.0, %v1948
        %v1950 = vpop.f32.mrb[0].mxu0
        %1951 = vmatprep.mubr.bf16.mxu0 0
        %1952 = vmatmul.mubr.bf16.gmra.mrb[0].mxu0 %v1858
        %v1953 = vpop.f32.mrb[0].mxu0
        %v1954 = vadd.f32 0.0, %v1953
        %v1955 = vpop.f32.mrb[0].mxu0
        %v1956 = vpop.f32.mrb[0].mxu0
        %v1957 = vadd.f32 0.0, %v1956
        %v1958 = vpop.f32.mrb[0].mxu0
        %1959 = vdwg.mxu0
        %v1960 = vadd.f32 %v1706, %v1898
        %v1961 = vadd.f32 %v1707, %v1901
        %v1962 = vadd.f32 %v1708, %v1906
        %v1963 = vadd.f32 %v1709, %v1909
        %v1964 = vadd.f32 %v1710, %v1914
        %v1965 = vadd.f32 %v1711, %v1917
        %v1966 = vadd.f32 %v1712, %v1922
        %v1967 = vadd.f32 %v1713, %v1925
        %v1968 = vadd.f32 %v1714, %v1930
        %v1969 = vadd.f32 %v1715, %v1933
        %v1970 = vadd.f32 %v1716, %v1938
        %v1971 = vadd.f32 %v1717, %v1941
        %v1972 = vadd.f32 %v1718, %v1946
        %v1973 = vadd.f32 %v1719, %v1949
        %v1974 = vadd.f32 %v1720, %v1954
        %v1975 = vadd.f32 %v1721, %v1957
        %s1976 = sadd.s32 %s349, 2
        %s1977 = smul.u32 %s1976, 3
        %s1978 = smul.addr %s1977, 4
        %s1979 = scalar_lea.vmem %s341, %s1978
        %v1980 = vld [vmem:[%s1979] sm:$0xf]
        %v1981 = vld [vmem:[%s1979 + $0x4] sm:$0xf]
        %v1982 = vld [vmem:[%s1979 + $0xc] sm:$0xf]
        %v1983 = vld [vmem:[%s1979 + $0x10] sm:$0xf]
        %v1984 = vld [vmem:[%s1979 + $0x18] sm:$0xf]
        %v1985 = vld [vmem:[%s1979 + $0x1c] sm:$0xf]
        %v1986 = vld [vmem:[%s1979 + $0x24] sm:$0xf]
        %v1987 = vld [vmem:[%s1979 + $0x28] sm:$0xf]
        %v1988 = vld [vmem:[%s1979 + $0x30] sm:$0xf]
        %v1989 = vld [vmem:[%s1979 + $0x34] sm:$0xf]
        %v1990 = vld [vmem:[%s1979 + $0x3c] sm:$0xf]
        %v1991 = vld [vmem:[%s1979 + $0x40] sm:$0xf]
        %v1992 = vld [vmem:[%s1979 + $0x48] sm:$0xf]
        %v1993 = vld [vmem:[%s1979 + $0x4c] sm:$0xf]
        %v1994 = vld [vmem:[%s1979 + $0x54] sm:$0xf]
        %v1995 = vld [vmem:[%s1979 + $0x58] sm:$0xf]
        %s1996 = scalar_lea.vmem %s1, 12
        %v1997 = vld [vmem:[%s1996] sm:$0x3]
        %v2014 = vunpack.c.l.b16 %v1980
        %v2015 = vunpack.c.l.b16 %v1981
        %v2016 = vunpack.c.l.b16 %v1982
        %v2017 = vunpack.c.l.b16 %v1983
        %v2018 = vunpack.c.l.b16 %v1984
        %v2019 = vunpack.c.l.b16 %v1985
        %v2020 = vunpack.c.l.b16 %v1986
        %v2021 = vunpack.c.l.b16 %v1987
        %v2022 = vunpack.c.l.b16 %v1988
        %v2023 = vunpack.c.l.b16 %v1989
        %v2024 = vunpack.c.l.b16 %v1990
        %v2025 = vunpack.c.l.b16 %v1991
        %v2026 = vunpack.c.l.b16 %v1992
        %v2027 = vunpack.c.l.b16 %v1993
        %v2028 = vunpack.c.l.b16 %v1994
        %v2029 = vunpack.c.l.b16 %v1995
        %v2030 = vpack.c.b16 %v2015, %v2014
        %v2031 = vpack.c.b16 %v2017, %v2016
        %v2032 = vpack.c.b16 %v2019, %v2018
        %v2033 = vpack.c.b16 %v2021, %v2020
        %v2034 = vpack.c.b16 %v2023, %v2022
        %v2035 = vpack.c.b16 %v2025, %v2024
        %v2036 = vpack.c.b16 %v2027, %v2026
        %v2037 = vpack.c.b16 %v2029, %v2028
        %v2039 = vsel %vm599, %v2030, 0
        %v2042 = vsel %vm599, %v2031, 0
        %v2045 = vsel %vm599, %v2032, 0
        %v2048 = vsel %vm599, %v2033, 0
        %v2051 = vsel %vm599, %v2034, 0
        %v2054 = vsel %vm599, %v2035, 0
        %v2057 = vsel %vm599, %v2036, 0
        %v2060 = vsel %vm599, %v2037, 0
        %v2063 = vsel %vm624, %v1997, 0
        %2065 = vmatprep.subr.bf16.mxu0 0
        %2066 = vmatpush1.bf16.msra.mxu0 %v2063
        %2067 = vmatprep.subr.bf16.mxu0 0
        %2068 = vmatpush1.bf16.msra.mxu0 0
        %2069 = vmatprep.subr.bf16.mxu0 0
        %2070 = vmatpush1.bf16.msra.mxu0 0
        %2071 = vmatprep.subr.bf16.mxu0 0
        %2072 = vmatpush1.bf16.msra.mxu0 0
        %2073 = vmatprep.subr.bf16.mxu0 0
        %2074 = vmatpush1.bf16.msra.mxu0 0
        %2075 = vmatprep.subr.bf16.mxu0 0
        %2076 = vmatpush1.bf16.msra.mxu0 0
        %2077 = vmatprep.subr.bf16.mxu0 0
        %2078 = vmatpush1.bf16.msra.mxu0 0
        %2079 = vmatprep.subr.bf16.mxu0 0
        %2080 = vmatpush1.bf16.msra.mxu0 0
        %2081 = vmatprep.subr.bf16.mxu0 0
        %2082 = vmatpush1.bf16.msra.mxu0 0
        %2083 = vmatprep.subr.bf16.mxu0 0
        %2084 = vmatpush1.bf16.msra.mxu0 0
        %2085 = vmatprep.subr.bf16.mxu0 0
        %2086 = vmatpush1.bf16.msra.mxu0 0
        %2087 = vmatprep.subr.bf16.mxu0 0
        %2088 = vmatpush1.bf16.msra.mxu0 0
        %2089 = vmatprep.subr.bf16.mxu0 0
        %2090 = vmatpush1.bf16.msra.mxu0 0
        %2091 = vmatprep.subr.bf16.mxu0 0
        %2092 = vmatpush1.bf16.msra.mxu0 0
        %2093 = vmatprep.subr.bf16.mxu0 0
        %2094 = vmatpush1.bf16.msra.mxu0 0
        %2095 = vmatprep.subr.bf16.mxu0 0
        %2096 = vmatpush1.bf16.msra.mxu0 0
        %2097 = vmatprep.mubr.bf16.mxu0 0
        %2098 = vmatmul.mubr.bf16.gmra.mrb[0].mxu0 %v2039
        %v2099 = vpop.f32.mrb[0].mxu0
        %v2100 = vadd.f32 0.0, %v2099
        %v2101 = vpop.f32.mrb[0].mxu0
        %v2102 = vpop.f32.mrb[0].mxu0
        %v2103 = vadd.f32 0.0, %v2102
        %v2104 = vpop.f32.mrb[0].mxu0
        %2105 = vmatprep.mubr.bf16.mxu0 0
        %2106 = vmatmul.mubr.bf16.gmra.mrb[0].mxu0 %v2042
        %v2107 = vpop.f32.mrb[0].mxu0
        %v2108 = vadd.f32 0.0, %v2107
        %v2109 = vpop.f32.mrb[0].mxu0
        %v2110 = vpop.f32.mrb[0].mxu0
        %v2111 = vadd.f32 0.0, %v2110
        %v2112 = vpop.f32.mrb[0].mxu0
        %2113 = vmatprep.mubr.bf16.mxu0 0
        %2114 = vmatmul.mubr.bf16.gmra.mrb[0].mxu0 %v2045
        %v2115 = vpop.f32.mrb[0].mxu0
        %v2116 = vadd.f32 0.0, %v2115
        %v2117 = vpop.f32.mrb[0].mxu0
        %v2118 = vpop.f32.mrb[0].mxu0
        %v2119 = vadd.f32 0.0, %v2118
        %v2120 = vpop.f32.mrb[0].mxu0
        %2121 = vmatprep.mubr.bf16.mxu0 0
        %2122 = vmatmul.mubr.bf16.gmra.mrb[0].mxu0 %v2048
        %v2123 = vpop.f32.mrb[0].mxu0
        %v2124 = vadd.f32 0.0, %v2123
        %v2125 = vpop.f32.mrb[0].mxu0
        %v2126 = vpop.f32.mrb[0].mxu0
        %v2127 = vadd.f32 0.0, %v2126
        %v2128 = vpop.f32.mrb[0].mxu0
        %2129 = vmatprep.mubr.bf16.mxu0 0
        %2130 = vmatmul.mubr.bf16.gmra.mrb[0].mxu0 %v2051
        %v2131 = vpop.f32.mrb[0].mxu0
        %v2132 = vadd.f32 0.0, %v2131
        %v2133 = vpop.f32.mrb[0].mxu0
        %v2134 = vpop.f32.mrb[0].mxu0
        %v2135 = vadd.f32 0.0, %v2134
        %v2136 = vpop.f32.mrb[0].mxu0
        %2137 = vmatprep.mubr.bf16.mxu0 0
        %2138 = vmatmul.mubr.bf16.gmra.mrb[0].mxu0 %v2054
        %v2139 = vpop.f32.mrb[0].mxu0
        %v2140 = vadd.f32 0.0, %v2139
        %v2141 = vpop.f32.mrb[0].mxu0
        %v2142 = vpop.f32.mrb[0].mxu0
        %v2143 = vadd.f32 0.0, %v2142
        %v2144 = vpop.f32.mrb[0].mxu0
        %2145 = vmatprep.mubr.bf16.mxu0 0
        %2146 = vmatmul.mubr.bf16.gmra.mrb[0].mxu0 %v2057
        %v2147 = vpop.f32.mrb[0].mxu0
        %v2148 = vadd.f32 0.0, %v2147
        %v2149 = vpop.f32.mrb[0].mxu0
        %v2150 = vpop.f32.mrb[0].mxu0
        %v2151 = vadd.f32 0.0, %v2150
        %v2152 = vpop.f32.mrb[0].mxu0
        %2153 = vmatprep.mubr.bf16.mxu0 0
        %2154 = vmatmul.mubr.bf16.gmra.mrb[0].mxu0 %v2060
        %v2155 = vpop.f32.mrb[0].mxu0
        %v2156 = vadd.f32 0.0, %v2155
        %v2157 = vpop.f32.mrb[0].mxu0
        %v2158 = vpop.f32.mrb[0].mxu0
        %v2159 = vadd.f32 0.0, %v2158
        %v2160 = vpop.f32.mrb[0].mxu0
        %2161 = vdwg.mxu0
        %v2162 = vadd.f32 %v1960, %v2100
        %v2163 = vadd.f32 %v1961, %v2103
        %v2164 = vadd.f32 %v1962, %v2108
        %v2165 = vadd.f32 %v1963, %v2111
        %v2166 = vadd.f32 %v1964, %v2116
        %v2167 = vadd.f32 %v1965, %v2119
        %v2168 = vadd.f32 %v1966, %v2124
        %v2169 = vadd.f32 %v1967, %v2127
        %v2170 = vadd.f32 %v1968, %v2132
        %v2171 = vadd.f32 %v1969, %v2135
        %v2172 = vadd.f32 %v1970, %v2140
        %v2173 = vadd.f32 %v1971, %v2143
        %v2174 = vadd.f32 %v1972, %v2148
        %v2175 = vadd.f32 %v1973, %v2151
        %v2176 = vadd.f32 %v1974, %v2156
        %v2177 = vadd.f32 %v1975, %v2159
        %v2178 = vld [vmem:[%s1979] sm:$0xf]
        %v2179 = vld [vmem:[%s1979 + $0x4] sm:$0xf]
        %v2180 = vld [vmem:[%s1979 + $0x8] sm:$0x1]
        %v2181 = vld [vmem:[%s1979 + $0xc] sm:$0xf]
        %v2182 = vld [vmem:[%s1979 + $0x10] sm:$0xf]
        %v2183 = vld [vmem:[%s1979 + $0x14] sm:$0x1]
        %v2184 = vld [vmem:[%s1979 + $0x18] sm:$0xf]
        %v2185 = vld [vmem:[%s1979 + $0x1c] sm:$0xf]
        %v2186 = vld [vmem:[%s1979 + $0x20] sm:$0x1]
        %v2187 = vld [vmem:[%s1979 + $0x24] sm:$0xf]
        %v2188 = vld [vmem:[%s1979 + $0x28] sm:$0xf]
        %v2189 = vld [vmem:[%s1979 + $0x2c] sm:$0x1]
        %v2190 = vld [vmem:[%s1979 + $0x30] sm:$0xf]
        %v2191 = vld [vmem:[%s1979 + $0x34] sm:$0xf]
        %v2192 = vld [vmem:[%s1979 + $0x38] sm:$0x1]
        %v2193 = vld [vmem:[%s1979 + $0x3c] sm:$0xf]
        %v2194 = vld [vmem:[%s1979 + $0x40] sm:$0xf]
        %v2195 = vld [vmem:[%s1979 + $0x44] sm:$0x1]
        %v2196 = vld [vmem:[%s1979 + $0x48] sm:$0xf]
        %v2197 = vld [vmem:[%s1979 + $0x4c] sm:$0xf]
        %v2198 = vld [vmem:[%s1979 + $0x50] sm:$0x1]
        %v2199 = vld [vmem:[%s1979 + $0x54] sm:$0xf]
        %v2200 = vld [vmem:[%s1979 + $0x58] sm:$0xf]
        %v2201 = vld [vmem:[%s1979 + $0x5c] sm:$0x1]
        %v2203 = vshrl.u32 %v2178, 16
        %v2205 = vrot.slane %v2203, 4
        %v2206 = vshll.u32 %v2178, 16
        %v2208 = vrot.slane %v2206, 5
        %v2209 = vor.u32 %v2205, %v2208
        %v2210 = vrot.slane %v2209, 4
        %v2212 = vshll.u32 %v2179, 16
        %v2214 = vrot.slane %v2212, 5
        %v2215 = vsel %vm380, %v2210, %v2214
        %v2216 = vshrl.u32 %v2179, 16
        %v2218 = vrot.slane %v2216, 4
        %v2219 = vor.u32 %v2218, %v2214
        %v2220 = vrot.slane %v2219, 4
        %v2222 = vshll.u32 %v2180, 16
        %v2224 = vrot.slane %v2222, 5
        %v2225 = vsel %vm380, %v2220, %v2224
        %v2227 = vshrl.u32 %v2181, 16
        %v2229 = vrot.slane %v2227, 4
        %v2230 = vshll.u32 %v2181, 16
        %v2232 = vrot.slane %v2230, 5
        %v2233 = vor.u32 %v2229, %v2232
        %v2234 = vrot.slane %v2233, 4
        %v2236 = vshll.u32 %v2182, 16
        %v2238 = vrot.slane %v2236, 5
        %v2239 = vsel %vm380, %v2234, %v2238
        %v2240 = vshrl.u32 %v2182, 16
        %v2242 = vrot.slane %v2240, 4
        %v2243 = vor.u32 %v2242, %v2238
        %v2244 = vrot.slane %v2243, 4
        %v2246 = vshll.u32 %v2183, 16
        %v2248 = vrot.slane %v2246, 5
        %v2249 = vsel %vm380, %v2244, %v2248
        %v2251 = vshrl.u32 %v2184, 16
        %v2253 = vrot.slane %v2251, 4
        %v2254 = vshll.u32 %v2184, 16
        %v2256 = vrot.slane %v2254, 5
        %v2257 = vor.u32 %v2253, %v2256
        %v2258 = vrot.slane %v2257, 4
        %v2260 = vshll.u32 %v2185, 16
        %v2262 = vrot.slane %v2260, 5
        %v2263 = vsel %vm380, %v2258, %v2262
        %v2264 = vshrl.u32 %v2185, 16
        %v2266 = vrot.slane %v2264, 4
        %v2267 = vor.u32 %v2266, %v2262
        %v2268 = vrot.slane %v2267, 4
        %v2270 = vshll.u32 %v2186, 16
        %v2272 = vrot.slane %v2270, 5
        %v2273 = vsel %vm380, %v2268, %v2272
        %v2275 = vshrl.u32 %v2187, 16
        %v2277 = vrot.slane %v2275, 4
        %v2278 = vshll.u32 %v2187, 16
        %v2280 = vrot.slane %v2278, 5
        %v2281 = vor.u32 %v2277, %v2280
        %v2282 = vrot.slane %v2281, 4
        %v2284 = vshll.u32 %v2188, 16
        %v2286 = vrot.slane %v2284, 5
        %v2287 = vsel %vm380, %v2282, %v2286
        %v2288 = vshrl.u32 %v2188, 16
        %v2290 = vrot.slane %v2288, 4
        %v2291 = vor.u32 %v2290, %v2286
        %v2292 = vrot.slane %v2291, 4
        %v2294 = vshll.u32 %v2189, 16
        %v2296 = vrot.slane %v2294, 5
        %v2297 = vsel %vm380, %v2292, %v2296
        %v2299 = vshrl.u32 %v2190, 16
        %v2301 = vrot.slane %v2299, 4
        %v2302 = vshll.u32 %v2190, 16
        %v2304 = vrot.slane %v2302, 5
        %v2305 = vor.u32 %v2301, %v2304
        %v2306 = vrot.slane %v2305, 4
        %v2308 = vshll.u32 %v2191, 16
        %v2310 = vrot.slane %v2308, 5
        %v2311 = vsel %vm380, %v2306, %v2310
        %v2312 = vshrl.u32 %v2191, 16
        %v2314 = vrot.slane %v2312, 4
        %v2315 = vor.u32 %v2314, %v2310
        %v2316 = vrot.slane %v2315, 4
        %v2318 = vshll.u32 %v2192, 16
        %v2320 = vrot.slane %v2318, 5
        %v2321 = vsel %vm380, %v2316, %v2320
        %v2323 = vshrl.u32 %v2193, 16
        %v2325 = vrot.slane %v2323, 4
        %v2326 = vshll.u32 %v2193, 16
        %v2328 = vrot.slane %v2326, 5
        %v2329 = vor.u32 %v2325, %v2328
        %v2330 = vrot.slane %v2329, 4
        %v2332 = vshll.u32 %v2194, 16
        %v2334 = vrot.slane %v2332, 5
        %v2335 = vsel %vm380, %v2330, %v2334
        %v2336 = vshrl.u32 %v2194, 16
        %v2338 = vrot.slane %v2336, 4
        %v2339 = vor.u32 %v2338, %v2334
        %v2340 = vrot.slane %v2339, 4
        %v2342 = vshll.u32 %v2195, 16
        %v2344 = vrot.slane %v2342, 5
        %v2345 = vsel %vm380, %v2340, %v2344
        %v2347 = vshrl.u32 %v2196, 16
        %v2349 = vrot.slane %v2347, 4
        %v2350 = vshll.u32 %v2196, 16
        %v2352 = vrot.slane %v2350, 5
        %v2353 = vor.u32 %v2349, %v2352
        %v2354 = vrot.slane %v2353, 4
        %v2356 = vshll.u32 %v2197, 16
        %v2358 = vrot.slane %v2356, 5
        %v2359 = vsel %vm380, %v2354, %v2358
        %v2360 = vshrl.u32 %v2197, 16
        %v2362 = vrot.slane %v2360, 4
        %v2363 = vor.u32 %v2362, %v2358
        %v2364 = vrot.slane %v2363, 4
        %v2366 = vshll.u32 %v2198, 16
        %v2368 = vrot.slane %v2366, 5
        %v2369 = vsel %vm380, %v2364, %v2368
        %v2371 = vshrl.u32 %v2199, 16
        %v2373 = vrot.slane %v2371, 4
        %v2374 = vshll.u32 %v2199, 16
        %v2376 = vrot.slane %v2374, 5
        %v2377 = vor.u32 %v2373, %v2376
        %v2378 = vrot.slane %v2377, 4
        %v2380 = vshll.u32 %v2200, 16
        %v2382 = vrot.slane %v2380, 5
        %v2383 = vsel %vm380, %v2378, %v2382
        %v2384 = vshrl.u32 %v2200, 16
        %v2386 = vrot.slane %v2384, 4
        %v2387 = vor.u32 %v2386, %v2382
        %v2388 = vrot.slane %v2387, 4
        %v2390 = vshll.u32 %v2201, 16
        %v2392 = vrot.slane %v2390, 5
        %v2393 = vsel %vm380, %v2388, %v2392
        %s2394 = scalar_lea.vmem %s1, 14
        %v2395 = vld [vmem:[%s2394] sm:$0x3]
        %v2396 = vunpack.c.l.b16 %v2215
        %v2397 = vunpack.c.l.b16 %v2225
        %v2398 = vunpack.c.l.b16 %v2239
        %v2399 = vunpack.c.l.b16 %v2249
        %v2400 = vunpack.c.l.b16 %v2263
        %v2401 = vunpack.c.l.b16 %v2273
        %v2402 = vunpack.c.l.b16 %v2287
        %v2403 = vunpack.c.l.b16 %v2297
        %v2404 = vunpack.c.l.b16 %v2311
        %v2405 = vunpack.c.l.b16 %v2321
        %v2406 = vunpack.c.l.b16 %v2335
        %v2407 = vunpack.c.l.b16 %v2345
        %v2408 = vunpack.c.l.b16 %v2359
        %v2409 = vunpack.c.l.b16 %v2369
        %v2410 = vunpack.c.l.b16 %v2383
        %v2411 = vunpack.c.l.b16 %v2393
        %v2412 = vpack.c.b16 %v2397, %v2396
        %v2413 = vpack.c.b16 %v2399, %v2398
        %v2414 = vpack.c.b16 %v2401, %v2400
        %v2415 = vpack.c.b16 %v2403, %v2402
        %v2416 = vpack.c.b16 %v2405, %v2404
        %v2417 = vpack.c.b16 %v2407, %v2406
        %v2418 = vpack.c.b16 %v2409, %v2408
        %v2419 = vpack.c.b16 %v2411, %v2410
        %v2421 = vsel %vm599, %v2412, 0
        %v2424 = vsel %vm599, %v2413, 0
        %v2427 = vsel %vm599, %v2414, 0
        %v2430 = vsel %vm599, %v2415, 0
        %v2433 = vsel %vm599, %v2416, 0
        %v2436 = vsel %vm599, %v2417, 0
        %v2439 = vsel %vm599, %v2418, 0
        %v2442 = vsel %vm599, %v2419, 0
        %v2445 = vsel %vm624, %v2395, 0
        %2447 = vmatprep.subr.bf16.mxu0 0
        %2448 = vmatpush1.bf16.msra.mxu0 %v2445
        %2449 = vmatprep.subr.bf16.mxu0 0
        %2450 = vmatpush1.bf16.msra.mxu0 0
        %2451 = vmatprep.subr.bf16.mxu0 0
        %2452 = vmatpush1.bf16.msra.mxu0 0
        %2453 = vmatprep.subr.bf16.mxu0 0
        %2454 = vmatpush1.bf16.msra.mxu0 0
        %2455 = vmatprep.subr.bf16.mxu0 0
        %2456 = vmatpush1.bf16.msra.mxu0 0
        %2457 = vmatprep.subr.bf16.mxu0 0
        %2458 = vmatpush1.bf16.msra.mxu0 0
        %2459 = vmatprep.subr.bf16.mxu0 0
        %2460 = vmatpush1.bf16.msra.mxu0 0
        %2461 = vmatprep.subr.bf16.mxu0 0
        %2462 = vmatpush1.bf16.msra.mxu0 0
        %2463 = vmatprep.subr.bf16.mxu0 0
        %2464 = vmatpush1.bf16.msra.mxu0 0
        %2465 = vmatprep.subr.bf16.mxu0 0
        %2466 = vmatpush1.bf16.msra.mxu0 0
        %2467 = vmatprep.subr.bf16.mxu0 0
        %2468 = vmatpush1.bf16.msra.mxu0 0
        %2469 = vmatprep.subr.bf16.mxu0 0
        %2470 = vmatpush1.bf16.msra.mxu0 0
        %2471 = vmatprep.subr.bf16.mxu0 0
        %2472 = vmatpush1.bf16.msra.mxu0 0
        %2473 = vmatprep.subr.bf16.mxu0 0
        %2474 = vmatpush1.bf16.msra.mxu0 0
        %2475 = vmatprep.subr.bf16.mxu0 0
        %2476 = vmatpush1.bf16.msra.mxu0 0
        %2477 = vmatprep.subr.bf16.mxu0 0
        %2478 = vmatpush1.bf16.msra.mxu0 0
        %2479 = vmatprep.mubr.bf16.mxu0 0
        %2480 = vmatmul.mubr.bf16.gmra.mrb[0].mxu0 %v2421
        %v2481 = vpop.f32.mrb[0].mxu0
        %v2482 = vadd.f32 0.0, %v2481
        %v2483 = vpop.f32.mrb[0].mxu0
        %v2484 = vpop.f32.mrb[0].mxu0
        %v2485 = vadd.f32 0.0, %v2484
        %v2486 = vpop.f32.mrb[0].mxu0
        %2487 = vmatprep.mubr.bf16.mxu0 0
        %2488 = vmatmul.mubr.bf16.gmra.mrb[0].mxu0 %v2424
        %v2489 = vpop.f32.mrb[0].mxu0
        %v2490 = vadd.f32 0.0, %v2489
        %v2491 = vpop.f32.mrb[0].mxu0
        %v2492 = vpop.f32.mrb[0].mxu0
        %v2493 = vadd.f32 0.0, %v2492
        %v2494 = vpop.f32.mrb[0].mxu0
        %2495 = vmatprep.mubr.bf16.mxu0 0
        %2496 = vmatmul.mubr.bf16.gmra.mrb[0].mxu0 %v2427
        %v2497 = vpop.f32.mrb[0].mxu0
        %v2498 = vadd.f32 0.0, %v2497
        %v2499 = vpop.f32.mrb[0].mxu0
        %v2500 = vpop.f32.mrb[0].mxu0
        %v2501 = vadd.f32 0.0, %v2500
        %v2502 = vpop.f32.mrb[0].mxu0
        %2503 = vmatprep.mubr.bf16.mxu0 0
        %2504 = vmatmul.mubr.bf16.gmra.mrb[0].mxu0 %v2430
        %v2505 = vpop.f32.mrb[0].mxu0
        %v2506 = vadd.f32 0.0, %v2505
        %v2507 = vpop.f32.mrb[0].mxu0
        %v2508 = vpop.f32.mrb[0].mxu0
        %v2509 = vadd.f32 0.0, %v2508
        %v2510 = vpop.f32.mrb[0].mxu0
        %2511 = vmatprep.mubr.bf16.mxu0 0
        %2512 = vmatmul.mubr.bf16.gmra.mrb[0].mxu0 %v2433
        %v2513 = vpop.f32.mrb[0].mxu0
        %v2514 = vadd.f32 0.0, %v2513
        %v2515 = vpop.f32.mrb[0].mxu0
        %v2516 = vpop.f32.mrb[0].mxu0
        %v2517 = vadd.f32 0.0, %v2516
        %v2518 = vpop.f32.mrb[0].mxu0
        %2519 = vmatprep.mubr.bf16.mxu0 0
        %2520 = vmatmul.mubr.bf16.gmra.mrb[0].mxu0 %v2436
        %v2521 = vpop.f32.mrb[0].mxu0
        %v2522 = vadd.f32 0.0, %v2521
        %v2523 = vpop.f32.mrb[0].mxu0
        %v2524 = vpop.f32.mrb[0].mxu0
        %v2525 = vadd.f32 0.0, %v2524
        %v2526 = vpop.f32.mrb[0].mxu0
        %2527 = vmatprep.mubr.bf16.mxu0 0
        %2528 = vmatmul.mubr.bf16.gmra.mrb[0].mxu0 %v2439
        %v2529 = vpop.f32.mrb[0].mxu0
        %v2530 = vadd.f32 0.0, %v2529
        %v2531 = vpop.f32.mrb[0].mxu0
        %v2532 = vpop.f32.mrb[0].mxu0
        %v2533 = vadd.f32 0.0, %v2532
        %v2534 = vpop.f32.mrb[0].mxu0
        %2535 = vmatprep.mubr.bf16.mxu0 0
        %2536 = vmatmul.mubr.bf16.gmra.mrb[0].mxu0 %v2442
        %v2537 = vpop.f32.mrb[0].mxu0
        %v2538 = vadd.f32 0.0, %v2537
        %v2539 = vpop.f32.mrb[0].mxu0
        %v2540 = vpop.f32.mrb[0].mxu0
        %v2541 = vadd.f32 0.0, %v2540
        %v2542 = vpop.f32.mrb[0].mxu0
        %2543 = vdwg.mxu0
        %v2544 = vadd.f32 %v2162, %v2482
        %v2545 = vadd.f32 %v2163, %v2485
        %v2546 = vadd.f32 %v2164, %v2490
        %v2547 = vadd.f32 %v2165, %v2493
        %v2548 = vadd.f32 %v2166, %v2498
        %v2549 = vadd.f32 %v2167, %v2501
        %v2550 = vadd.f32 %v2168, %v2506
        %v2551 = vadd.f32 %v2169, %v2509
        %v2552 = vadd.f32 %v2170, %v2514
        %v2553 = vadd.f32 %v2171, %v2517
        %v2554 = vadd.f32 %v2172, %v2522
        %v2555 = vadd.f32 %v2173, %v2525
        %v2556 = vadd.f32 %v2174, %v2530
        %v2557 = vadd.f32 %v2175, %v2533
        %v2558 = vadd.f32 %v2176, %v2538
        %v2559 = vadd.f32 %v2177, %v2541
        %v2560 = vld [vmem:[%s1979] sm:$0xe]
        %v2561 = vld [vmem:[%s1979 + $0xc] sm:$0xe]
        %v2562 = vld [vmem:[%s1979 + $0x18] sm:$0xe]
        %v2563 = vld [vmem:[%s1979 + $0x24] sm:$0xe]
        %v2564 = vld [vmem:[%s1979 + $0x30] sm:$0xe]
        %v2565 = vld [vmem:[%s1979 + $0x3c] sm:$0xe]
        %v2566 = vld [vmem:[%s1979 + $0x48] sm:$0xe]
        %v2567 = vld [vmem:[%s1979 + $0x54] sm:$0xe]
        %v2592 = vrot.slane %v2560, 5
        %v2593 = vrot.slane %v2592, 4
        %v2594 = vrot.slane %v2179, 5
        %v2595 = vsel %vm915, %v2593, %v2594
        %v2596 = vrot.slane %v2594, 4
        %v2597 = vrot.slane %v2180, 5
        %v2598 = vsel %vm915, %v2596, %v2597
        %v2599 = vrot.slane %v2561, 5
        %v2600 = vrot.slane %v2599, 4
        %v2601 = vrot.slane %v2182, 5
        %v2602 = vsel %vm915, %v2600, %v2601
        %v2603 = vrot.slane %v2601, 4
        %v2604 = vrot.slane %v2183, 5
        %v2605 = vsel %vm915, %v2603, %v2604
        %v2606 = vrot.slane %v2562, 5
        %v2607 = vrot.slane %v2606, 4
        %v2608 = vrot.slane %v2185, 5
        %v2609 = vsel %vm915, %v2607, %v2608
        %v2610 = vrot.slane %v2608, 4
        %v2611 = vrot.slane %v2186, 5
        %v2612 = vsel %vm915, %v2610, %v2611
        %v2613 = vrot.slane %v2563, 5
        %v2614 = vrot.slane %v2613, 4
        %v2615 = vrot.slane %v2188, 5
        %v2616 = vsel %vm915, %v2614, %v2615
        %v2617 = vrot.slane %v2615, 4
        %v2618 = vrot.slane %v2189, 5
        %v2619 = vsel %vm915, %v2617, %v2618
        %v2620 = vrot.slane %v2564, 5
        %v2621 = vrot.slane %v2620, 4
        %v2622 = vrot.slane %v2191, 5
        %v2623 = vsel %vm915, %v2621, %v2622
        %v2624 = vrot.slane %v2622, 4
        %v2625 = vrot.slane %v2192, 5
        %v2626 = vsel %vm915, %v2624, %v2625
        %v2627 = vrot.slane %v2565, 5
        %v2628 = vrot.slane %v2627, 4
        %v2629 = vrot.slane %v2194, 5
        %v2630 = vsel %vm915, %v2628, %v2629
        %v2631 = vrot.slane %v2629, 4
        %v2632 = vrot.slane %v2195, 5
        %v2633 = vsel %vm915, %v2631, %v2632
        %v2634 = vrot.slane %v2566, 5
        %v2635 = vrot.slane %v2634, 4
        %v2636 = vrot.slane %v2197, 5
        %v2637 = vsel %vm915, %v2635, %v2636
        %v2638 = vrot.slane %v2636, 4
        %v2639 = vrot.slane %v2198, 5
        %v2640 = vsel %vm915, %v2638, %v2639
        %v2641 = vrot.slane %v2567, 5
        %v2642 = vrot.slane %v2641, 4
        %v2643 = vrot.slane %v2200, 5
        %v2644 = vsel %vm915, %v2642, %v2643
        %v2645 = vrot.slane %v2643, 4
        %v2646 = vrot.slane %v2201, 5
        %v2647 = vsel %vm915, %v2645, %v2646
        %s2648 = scalar_lea.vmem %s1, 16
        %v2649 = vld [vmem:[%s2648] sm:$0x3]
        %v2650 = vunpack.c.l.b16 %v2595
        %v2651 = vunpack.c.l.b16 %v2598
        %v2652 = vunpack.c.l.b16 %v2602
        %v2653 = vunpack.c.l.b16 %v2605
        %v2654 = vunpack.c.l.b16 %v2609
        %v2655 = vunpack.c.l.b16 %v2612
        %v2656 = vunpack.c.l.b16 %v2616
        %v2657 = vunpack.c.l.b16 %v2619
        %v2658 = vunpack.c.l.b16 %v2623
        %v2659 = vunpack.c.l.b16 %v2626
        %v2660 = vunpack.c.l.b16 %v2630
        %v2661 = vunpack.c.l.b16 %v2633
        %v2662 = vunpack.c.l.b16 %v2637
        %v2663 = vunpack.c.l.b16 %v2640
        %v2664 = vunpack.c.l.b16 %v2644
        %v2665 = vunpack.c.l.b16 %v2647
        %v2666 = vpack.c.b16 %v2651, %v2650
        %v2667 = vpack.c.b16 %v2653, %v2652
        %v2668 = vpack.c.b16 %v2655, %v2654
        %v2669 = vpack.c.b16 %v2657, %v2656
        %v2670 = vpack.c.b16 %v2659, %v2658
        %v2671 = vpack.c.b16 %v2661, %v2660
        %v2672 = vpack.c.b16 %v2663, %v2662
        %v2673 = vpack.c.b16 %v2665, %v2664
        %v2675 = vsel %vm599, %v2666, 0
        %v2678 = vsel %vm599, %v2667, 0
        %v2681 = vsel %vm599, %v2668, 0
        %v2684 = vsel %vm599, %v2669, 0
        %v2687 = vsel %vm599, %v2670, 0
        %v2690 = vsel %vm599, %v2671, 0
        %v2693 = vsel %vm599, %v2672, 0
        %v2696 = vsel %vm599, %v2673, 0
        %v2699 = vsel %vm624, %v2649, 0
        %2701 = vmatprep.subr.bf16.mxu0 0
        %2702 = vmatpush1.bf16.msra.mxu0 %v2699
        %2703 = vmatprep.subr.bf16.mxu0 0
        %2704 = vmatpush1.bf16.msra.mxu0 0
        %2705 = vmatprep.subr.bf16.mxu0 0
        %2706 = vmatpush1.bf16.msra.mxu0 0
        %2707 = vmatprep.subr.bf16.mxu0 0
        %2708 = vmatpush1.bf16.msra.mxu0 0
        %2709 = vmatprep.subr.bf16.mxu0 0
        %2710 = vmatpush1.bf16.msra.mxu0 0
        %2711 = vmatprep.subr.bf16.mxu0 0
        %2712 = vmatpush1.bf16.msra.mxu0 0
        %2713 = vmatprep.subr.bf16.mxu0 0
        %2714 = vmatpush1.bf16.msra.mxu0 0
        %2715 = vmatprep.subr.bf16.mxu0 0
        %2716 = vmatpush1.bf16.msra.mxu0 0
        %2717 = vmatprep.subr.bf16.mxu0 0
        %2718 = vmatpush1.bf16.msra.mxu0 0
        %2719 = vmatprep.subr.bf16.mxu0 0
        %2720 = vmatpush1.bf16.msra.mxu0 0
        %2721 = vmatprep.subr.bf16.mxu0 0
        %2722 = vmatpush1.bf16.msra.mxu0 0
        %2723 = vmatprep.subr.bf16.mxu0 0
        %2724 = vmatpush1.bf16.msra.mxu0 0
        %2725 = vmatprep.subr.bf16.mxu0 0
        %2726 = vmatpush1.bf16.msra.mxu0 0
        %2727 = vmatprep.subr.bf16.mxu0 0
        %2728 = vmatpush1.bf16.msra.mxu0 0
        %2729 = vmatprep.subr.bf16.mxu0 0
        %2730 = vmatpush1.bf16.msra.mxu0 0
        %2731 = vmatprep.subr.bf16.mxu0 0
        %2732 = vmatpush1.bf16.msra.mxu0 0
        %2733 = vmatprep.mubr.bf16.mxu0 0
        %2734 = vmatmul.mubr.bf16.gmra.mrb[0].mxu0 %v2675
        %v2735 = vpop.f32.mrb[0].mxu0
        %v2736 = vadd.f32 0.0, %v2735
        %v2737 = vpop.f32.mrb[0].mxu0
        %v2738 = vpop.f32.mrb[0].mxu0
        %v2739 = vadd.f32 0.0, %v2738
        %v2740 = vpop.f32.mrb[0].mxu0
        %2741 = vmatprep.mubr.bf16.mxu0 0
        %2742 = vmatmul.mubr.bf16.gmra.mrb[0].mxu0 %v2678
        %v2743 = vpop.f32.mrb[0].mxu0
        %v2744 = vadd.f32 0.0, %v2743
        %v2745 = vpop.f32.mrb[0].mxu0
        %v2746 = vpop.f32.mrb[0].mxu0
        %v2747 = vadd.f32 0.0, %v2746
        %v2748 = vpop.f32.mrb[0].mxu0
        %2749 = vmatprep.mubr.bf16.mxu0 0
        %2750 = vmatmul.mubr.bf16.gmra.mrb[0].mxu0 %v2681
        %v2751 = vpop.f32.mrb[0].mxu0
        %v2752 = vadd.f32 0.0, %v2751
        %v2753 = vpop.f32.mrb[0].mxu0
        %v2754 = vpop.f32.mrb[0].mxu0
        %v2755 = vadd.f32 0.0, %v2754
        %v2756 = vpop.f32.mrb[0].mxu0
        %2757 = vmatprep.mubr.bf16.mxu0 0
        %2758 = vmatmul.mubr.bf16.gmra.mrb[0].mxu0 %v2684
        %v2759 = vpop.f32.mrb[0].mxu0
        %v2760 = vadd.f32 0.0, %v2759
        %v2761 = vpop.f32.mrb[0].mxu0
        %v2762 = vpop.f32.mrb[0].mxu0
        %v2763 = vadd.f32 0.0, %v2762
        %v2764 = vpop.f32.mrb[0].mxu0
        %2765 = vmatprep.mubr.bf16.mxu0 0
        %2766 = vmatmul.mubr.bf16.gmra.mrb[0].mxu0 %v2687
        %v2767 = vpop.f32.mrb[0].mxu0
        %v2768 = vadd.f32 0.0, %v2767
        %v2769 = vpop.f32.mrb[0].mxu0
        %v2770 = vpop.f32.mrb[0].mxu0
        %v2771 = vadd.f32 0.0, %v2770
        %v2772 = vpop.f32.mrb[0].mxu0
        %2773 = vmatprep.mubr.bf16.mxu0 0
        %2774 = vmatmul.mubr.bf16.gmra.mrb[0].mxu0 %v2690
        %v2775 = vpop.f32.mrb[0].mxu0
        %v2776 = vadd.f32 0.0, %v2775
        %v2777 = vpop.f32.mrb[0].mxu0
        %v2778 = vpop.f32.mrb[0].mxu0
        %v2779 = vadd.f32 0.0, %v2778
        %v2780 = vpop.f32.mrb[0].mxu0
        %2781 = vmatprep.mubr.bf16.mxu0 0
        %2782 = vmatmul.mubr.bf16.gmra.mrb[0].mxu0 %v2693
        %v2783 = vpop.f32.mrb[0].mxu0
        %v2784 = vadd.f32 0.0, %v2783
        %v2785 = vpop.f32.mrb[0].mxu0
        %v2786 = vpop.f32.mrb[0].mxu0
        %v2787 = vadd.f32 0.0, %v2786
        %v2788 = vpop.f32.mrb[0].mxu0
        %2789 = vmatprep.mubr.bf16.mxu0 0
        %2790 = vmatmul.mubr.bf16.gmra.mrb[0].mxu0 %v2696
        %v2791 = vpop.f32.mrb[0].mxu0
        %v2792 = vadd.f32 0.0, %v2791
        %v2793 = vpop.f32.mrb[0].mxu0
        %v2794 = vpop.f32.mrb[0].mxu0
        %v2795 = vadd.f32 0.0, %v2794
        %v2796 = vpop.f32.mrb[0].mxu0
        %2797 = vdwg.mxu0
        %v2798 = vadd.f32 %v2544, %v2736
        %v2799 = vadd.f32 %v2545, %v2739
        %v2800 = vadd.f32 %v2546, %v2744
        %v2801 = vadd.f32 %v2547, %v2747
        %v2802 = vadd.f32 %v2548, %v2752
        %v2803 = vadd.f32 %v2549, %v2755
        %v2804 = vadd.f32 %v2550, %v2760
        %v2805 = vadd.f32 %v2551, %v2763
        %v2806 = vadd.f32 %v2552, %v2768
        %v2807 = vadd.f32 %v2553, %v2771
        %v2808 = vadd.f32 %v2554, %v2776
        %v2809 = vadd.f32 %v2555, %v2779
        %v2810 = vadd.f32 %v2556, %v2784
        %v2811 = vadd.f32 %v2557, %v2787
        %v2812 = vadd.f32 %v2558, %v2792
        %v2813 = vadd.f32 %v2559, %v2795
        %v2814 = vld [vmem:[%s2] sm:$0x1]
        %v2816 = vlaneseq
        %v2817 = vshrl.u32 %v2816, 7
        %v2818 = vsub.s32 0, %v2817
        %v2819 = vrot.slane %v2814, %v2818
        %v2821 = vadd.f32 %v2798, %v2819
        %v2822 = vadd.f32 %v2799, %v2819
        %v2823 = vadd.f32 %v2800, %v2819
        %v2824 = vadd.f32 %v2801, %v2819
        %v2825 = vadd.f32 %v2802, %v2819
        %v2826 = vadd.f32 %v2803, %v2819
        %v2827 = vadd.f32 %v2804, %v2819
        %v2828 = vadd.f32 %v2805, %v2819
        %v2829 = vadd.f32 %v2806, %v2819
        %v2830 = vadd.f32 %v2807, %v2819
        %v2831 = vadd.f32 %v2808, %v2819
        %v2832 = vadd.f32 %v2809, %v2819
        %v2833 = vadd.f32 %v2810, %v2819
        %v2834 = vadd.f32 %v2811, %v2819
        %v2835 = vadd.f32 %v2812, %v2819
        %v2836 = vadd.f32 %v2813, %v2819
        %v2837 = vmax.f32 %v2821, 0.0
        %v2838 = vmax.f32 %v2822, 0.0
        %v2839 = vmax.f32 %v2823, 0.0
        %v2840 = vmax.f32 %v2824, 0.0
        %v2841 = vmax.f32 %v2825, 0.0
        %v2842 = vmax.f32 %v2826, 0.0
        %v2843 = vmax.f32 %v2827, 0.0
        %v2844 = vmax.f32 %v2828, 0.0
        %v2845 = vmax.f32 %v2829, 0.0
        %v2846 = vmax.f32 %v2830, 0.0
        %v2847 = vmax.f32 %v2831, 0.0
        %v2848 = vmax.f32 %v2832, 0.0
        %v2849 = vmax.f32 %v2833, 0.0
        %v2850 = vmax.f32 %v2834, 0.0
        %v2851 = vmax.f32 %v2835, 0.0
        %v2852 = vmax.f32 %v2836, 0.0
        %v2853 = vld [vmem:[#allocation2] sm:$0x1]
        %2854 = vmatprep.subr.mxu0 0.0
        %2855 = vmatpush1.msra.mxu0 %v2837
        %2856 = vmatprep.subr.mxu0 0.0
        %2857 = vmatpush1.msra.mxu0 %v2838
        %2858 = vmatprep.subr.mxu0 0.0
        %2859 = vmatpush1.msra.mxu0 %v2839
        %2860 = vmatprep.subr.mxu0 0.0
        %2861 = vmatpush1.msra.mxu0 %v2840
        %2862 = vmatprep.subr.mxu0 0.0
        %2863 = vmatpush1.msra.mxu0 %v2841
        %2864 = vmatprep.subr.mxu0 0.0
        %2865 = vmatpush1.msra.mxu0 %v2842
        %2866 = vmatprep.subr.mxu0 0.0
        %2867 = vmatpush1.msra.mxu0 %v2843
        %2868 = vmatprep.subr.mxu0 0.0
        %2869 = vmatpush1.msra.mxu0 %v2844
        %2870 = vmatprep.subr.mxu0 0.0
        %2871 = vmatpush1.msra.mxu0 %v2845
        %2872 = vmatprep.subr.mxu0 0.0
        %2873 = vmatpush1.msra.mxu0 %v2846
        %2874 = vmatprep.subr.mxu0 0.0
        %2875 = vmatpush1.msra.mxu0 %v2847
        %2876 = vmatprep.subr.mxu0 0.0
        %2877 = vmatpush1.msra.mxu0 %v2848
        %2878 = vmatprep.subr.mxu0 0.0
        %2879 = vmatpush1.msra.mxu0 %v2849
        %2880 = vmatprep.subr.mxu0 0.0
        %2881 = vmatpush1.msra.mxu0 %v2850
        %2882 = vmatprep.subr.mxu0 0.0
        %2883 = vmatpush1.msra.mxu0 %v2851
        %2884 = vmatprep.subr.mxu0 0.0
        %2885 = vmatpush1.msra.mxu0 %v2852
        %2886 = vmatprep.subr.mxu0 0.0
        %2887 = vmatpush1.msra.mxu0 0.0
        %2888 = vmatprep.subr.mxu0 0.0
        %2889 = vmatpush1.msra.mxu0 0.0
        %2890 = vmatprep.subr.mxu0 0.0
        %2891 = vmatpush1.msra.mxu0 0.0
        %2892 = vmatprep.subr.mxu0 0.0
        %2893 = vmatpush1.msra.mxu0 0.0
        %2894 = vmatprep.subr.mxu0 0.0
        %2895 = vmatpush1.msra.mxu0 0.0
        %2896 = vmatprep.subr.mxu0 0.0
        %2897 = vmatpush1.msra.mxu0 0.0
        %2898 = vmatprep.subr.mxu0 0.0
        %2899 = vmatpush1.msra.mxu0 0.0
        %2900 = vmatprep.subr.mxu0 0.0
        %2901 = vmatpush1.msra.mxu0 0.0
        %2902 = vmatprep.subr.mxu0 0.0
        %2903 = vmatpush1.msra.mxu0 0.0
        %2904 = vmatprep.subr.mxu0 0.0
        %2905 = vmatpush1.msra.mxu0 0.0
        %2906 = vmatprep.subr.mxu0 0.0
        %2907 = vmatpush1.msra.mxu0 0.0
        %2908 = vmatprep.subr.mxu0 0.0
        %2909 = vmatpush1.msra.mxu0 0.0
        %2910 = vmatprep.subr.mxu0 0.0
        %2911 = vmatpush1.msra.mxu0 0.0
        %2912 = vmatprep.subr.mxu0 0.0
        %2913 = vmatpush1.msra.mxu0 0.0
        %2914 = vmatprep.subr.mxu0 0.0
        %2915 = vmatpush1.msra.mxu0 0.0
        %2916 = vmatprep.subr.mxu0 0.0
        %2917 = vmatpush1.msra.mxu0 0.0
        %2918 = vmatprep.mubr.f32.mxu0 0.0
        %2919 = vmatmul.mubr.f32.gmra.mrb[0].mxu0 1.0
        %v2920 = vpop.f32.mrb[0].mxu0
        %v2921 = vadd.f32 0.0, %v2920
        %v2922 = vpop.f32.mrb[0].mxu0
        %2923 = vdwg.mxu0
        %v2924 = vadd.f32 %v2853, %v2921
        %vm2925 = vcmask 253952
        %2926 = vst.msk [vmem:[#allocation2] sm:$0x1] %vm2925, %v2924
        %p2927 = scmp.eq.s32.totalorder %s28, 1
        // Predicated region
        $region61: #{cnn_only_forward.1} parent=55 // pred_check
          %p2928 = pneg %p2927
        $region62: #{cnn_only_forward.1} parent=55 // pred_check_branch
          %2930 = sbr.rel (%p2928) target = $region64
        $region63: #{cnn_only_forward.1} parent=55 // pred_region
          %v2931 = vld [vmem:[#allocation2] sm:$0x1]
          %v2932 = vmul.f32 %v2931, 0.00390625
          %v2933 = vpack.c.bf16 %v2932, %v2932
          %v2934 = vld [vmem:[%s3] sm:$0xf]
          %v2935 = vld [vmem:[%s3 + $0x4] sm:$0xf]
          %v2936 = vld [vmem:[%s3 + $0x8] sm:$0xf]
          %v2937 = vld [vmem:[%s3 + $0xc] sm:$0xf]
          %v2938 = vld [vmem:[%s4] sm:$0x1]
          %v2943 = vunpack.c.l.b16 %v2934
          %v2944 = vunpack.c.l.b16 %v2935
          %v2945 = vunpack.c.l.b16 %v2936
          %v2946 = vunpack.c.l.b16 %v2937
          %v2947 = vpack.c.b16 %v2944, %v2943
          %v2948 = vpack.c.b16 %v2946, %v2945
          %vm2951 = vcmask 261120
          %v2953 = vsel %vm2951, %v2933, 0
          %2955 = vmatprep.subr.bf16.mxu0 0
          %2956 = vmatpush1.bf16.msra.mxu0 %v2947
          %2957 = vmatprep.subr.bf16.mxu0 0
          %2958 = vmatpush1.bf16.msra.mxu0 %v2948
          %2959 = vmatprep.subr.bf16.mxu0 0
          %2960 = vmatpush1.bf16.msra.mxu0 0
          %2961 = vmatprep.subr.bf16.mxu0 0
          %2962 = vmatpush1.bf16.msra.mxu0 0
          %2963 = vmatprep.subr.bf16.mxu0 0
          %2964 = vmatpush1.bf16.msra.mxu0 0
          %2965 = vmatprep.subr.bf16.mxu0 0
          %2966 = vmatpush1.bf16.msra.mxu0 0
          %2967 = vmatprep.subr.bf16.mxu0 0
          %2968 = vmatpush1.bf16.msra.mxu0 0
          %2969 = vmatprep.subr.bf16.mxu0 0
          %2970 = vmatpush1.bf16.msra.mxu0 0
          %2971 = vmatprep.subr.bf16.mxu0 0
          %2972 = vmatpush1.bf16.msra.mxu0 0
          %2973 = vmatprep.subr.bf16.mxu0 0
          %2974 = vmatpush1.bf16.msra.mxu0 0
          %2975 = vmatprep.subr.bf16.mxu0 0
          %2976 = vmatpush1.bf16.msra.mxu0 0
          %2977 = vmatprep.subr.bf16.mxu0 0
          %2978 = vmatpush1.bf16.msra.mxu0 0
          %2979 = vmatprep.subr.bf16.mxu0 0
          %2980 = vmatpush1.bf16.msra.mxu0 0
          %2981 = vmatprep.subr.bf16.mxu0 0
          %2982 = vmatpush1.bf16.msra.mxu0 0
          %2983 = vmatprep.subr.bf16.mxu0 0
          %2984 = vmatpush1.bf16.msra.mxu0 0
          %2985 = vmatprep.subr.bf16.mxu0 0
          %2986 = vmatpush1.bf16.msra.mxu0 0
          %2987 = vmatprep.mubr.bf16.mxu0 0
          %2988 = vmatmul.mubr.bf16.gmra.mrb[0].mxu0 %v2953
          %v2989 = vpop.f32.mrb[0].mxu0
          %v2990 = vadd.f32 %v2938, %v2989
          %v2991 = vpop.f32.mrb[0].mxu0
          %v2992 = vpop.f32.mrb[0].mxu0
          %v2993 = vpop.f32.mrb[0].mxu0
          %2994 = vdwg.mxu0
          %vm2995 = vcmp.gt.f32.partialorder %v2990, 0.0
          %v2996 = vmul.f32 %v2990, 0.01
          %v2997 = vsel %vm2995, %v2990, %v2996
          %v2998 = vpack.c.bf16 %v2997, %v2997
          %v2999 = vld [vmem:[%s5] sm:$0xf]
          %v3000 = vld [vmem:[%s5 + $0x4] sm:$0xf]
          %v3001 = vld [vmem:[%s5 + $0x8] sm:$0xf]
          %v3002 = vld [vmem:[%s5 + $0xc] sm:$0xf]
          %v3003 = vld [vmem:[%s5 + $0x10] sm:$0xf]
          %v3004 = vld [vmem:[%s5 + $0x14] sm:$0xf]
          %v3005 = vld [vmem:[%s5 + $0x18] sm:$0xf]
          %v3006 = vld [vmem:[%s5 + $0x1c] sm:$0xf]
          %v3007 = vld [vmem:[%s5 + $0x20] sm:$0xf]
          %v3008 = vld [vmem:[%s5 + $0x24] sm:$0xf]
          %v3009 = vld [vmem:[%s5 + $0x28] sm:$0xf]
          %v3010 = vld [vmem:[%s5 + $0x2c] sm:$0xf]
          %v3011 = vld [vmem:[%s5 + $0x30] sm:$0xf]
          %v3012 = vld [vmem:[%s5 + $0x34] sm:$0xf]
          %v3013 = vld [vmem:[%s5 + $0x38] sm:$0xf]
          %v3014 = vld [vmem:[%s5 + $0x3c] sm:$0xf]
          %v3015 = vld [vmem:[%s6] sm:$0x1]
          %v3032 = vunpack.c.l.b16 %v2999
          %v3033 = vunpack.c.l.b16 %v3000
          %v3034 = vunpack.c.l.b16 %v3001
          %v3035 = vunpack.c.l.b16 %v3002
          %v3036 = vunpack.c.l.b16 %v3003
          %v3037 = vunpack.c.l.b16 %v3004
          %v3038 = vunpack.c.l.b16 %v3005
          %v3039 = vunpack.c.l.b16 %v3006
          %v3040 = vunpack.c.l.b16 %v3007
          %v3041 = vunpack.c.l.b16 %v3008
          %v3042 = vunpack.c.l.b16 %v3009
          %v3043 = vunpack.c.l.b16 %v3010
          %v3044 = vunpack.c.l.b16 %v3011
          %v3045 = vunpack.c.l.b16 %v3012
          %v3046 = vunpack.c.l.b16 %v3013
          %v3047 = vunpack.c.l.b16 %v3014
          %v3048 = vpack.c.b16 %v3033, %v3032
          %v3049 = vpack.c.b16 %v3035, %v3034
          %v3050 = vpack.c.b16 %v3037, %v3036
          %v3051 = vpack.c.b16 %v3039, %v3038
          %v3052 = vpack.c.b16 %v3041, %v3040
          %v3053 = vpack.c.b16 %v3043, %v3042
          %v3054 = vpack.c.b16 %v3045, %v3044
          %v3055 = vpack.c.b16 %v3047, %v3046
          %3064 = vmatprep.subr.bf16.mxu0 0
          %3065 = vmatpush1.bf16.msra.mxu0 %v3048
          %3066 = vmatprep.subr.bf16.mxu0 0
          %3067 = vmatpush1.bf16.msra.mxu0 %v3049
          %3068 = vmatprep.subr.bf16.mxu0 0
          %3069 = vmatpush1.bf16.msra.mxu0 %v3050
          %3070 = vmatprep.subr.bf16.mxu0 0
          %3071 = vmatpush1.bf16.msra.mxu0 %v3051
          %3072 = vmatprep.subr.bf16.mxu0 0
          %3073 = vmatpush1.bf16.msra.mxu0 %v3052
          %3074 = vmatprep.subr.bf16.mxu0 0
          %3075 = vmatpush1.bf16.msra.mxu0 %v3053
          %3076 = vmatprep.subr.bf16.mxu0 0
          %3077 = vmatpush1.bf16.msra.mxu0 %v3054
          %3078 = vmatprep.subr.bf16.mxu0 0
          %3079 = vmatpush1.bf16.msra.mxu0 %v3055
          %3080 = vmatprep.subr.bf16.mxu0 0
          %3081 = vmatpush1.bf16.msra.mxu0 0
          %3082 = vmatprep.subr.bf16.mxu0 0
          %3083 = vmatpush1.bf16.msra.mxu0 0
          %3084 = vmatprep.subr.bf16.mxu0 0
          %3085 = vmatpush1.bf16.msra.mxu0 0
          %3086 = vmatprep.subr.bf16.mxu0 0
          %3087 = vmatpush1.bf16.msra.mxu0 0
          %3088 = vmatprep.subr.bf16.mxu0 0
          %3089 = vmatpush1.bf16.msra.mxu0 0
          %3090 = vmatprep.subr.bf16.mxu0 0
          %3091 = vmatpush1.bf16.msra.mxu0 0
          %3092 = vmatprep.subr.bf16.mxu0 0
          %3093 = vmatpush1.bf16.msra.mxu0 0
          %3094 = vmatprep.subr.bf16.mxu0 0
          %3095 = vmatpush1.bf16.msra.mxu0 0
          %3096 = vmatprep.mubr.bf16.mxu0 0
          %3097 = vmatmul.mubr.bf16.gmra.mrb[0].mxu0 %v2998
          %v3098 = vpop.f32.mrb[0].mxu0
          %v3099 = vadd.f32 %v3015, %v3098
          %v3100 = vpop.f32.mrb[0].mxu0
          %v3101 = vpop.f32.mrb[0].mxu0
          %v3102 = vpop.f32.mrb[0].mxu0
          %3103 = vdwg.mxu0
          %vm3104 = vcmp.gt.f32.partialorder %v3099, 0.0
          %v3105 = vmul.f32 %v3099, 0.01
          %v3106 = vsel %vm3104, %v3099, %v3105
          %v3107 = vpack.c.bf16 %v3106, %v3106
          %v3108 = vld [vmem:[%s7] sm:$0xf]
          %v3109 = vld [vmem:[%s7 + $0x4] sm:$0xf]
          %v3110 = vld [vmem:[%s7 + $0x8] sm:$0xf]
          %v3111 = vld [vmem:[%s7 + $0xc] sm:$0xf]
          %v3112 = vld [vmem:[%s7 + $0x10] sm:$0xf]
          %v3113 = vld [vmem:[%s7 + $0x14] sm:$0xf]
          %v3114 = vld [vmem:[%s7 + $0x18] sm:$0xf]
          %v3115 = vld [vmem:[%s7 + $0x1c] sm:$0xf]
          %v3116 = vld [vmem:[%s8] sm:$0x1]
          %v3125 = vunpack.c.l.b16 %v3108
          %v3126 = vunpack.c.l.b16 %v3109
          %v3127 = vunpack.c.l.b16 %v3110
          %v3128 = vunpack.c.l.b16 %v3111
          %v3129 = vunpack.c.l.b16 %v3112
          %v3130 = vunpack.c.l.b16 %v3113
          %v3131 = vunpack.c.l.b16 %v3114
          %v3132 = vunpack.c.l.b16 %v3115
          %v3133 = vpack.c.b16 %v3126, %v3125
          %v3134 = vpack.c.b16 %v3128, %v3127
          %v3135 = vpack.c.b16 %v3130, %v3129
          %v3136 = vpack.c.b16 %v3132, %v3131
          %vm3141 = vcmask 523264
          %v3143 = vsel %vm3141, %v3107, 0
          %3145 = vmatprep.subr.bf16.mxu0 0
          %3146 = vmatpush1.bf16.msra.mxu0 %v3133
          %3147 = vmatprep.subr.bf16.mxu0 0
          %3148 = vmatpush1.bf16.msra.mxu0 %v3134
          %3149 = vmatprep.subr.bf16.mxu0 0
          %3150 = vmatpush1.bf16.msra.mxu0 %v3135
          %3151 = vmatprep.subr.bf16.mxu0 0
          %3152 = vmatpush1.bf16.msra.mxu0 %v3136
          %3153 = vmatprep.subr.bf16.mxu0 0
          %3154 = vmatpush1.bf16.msra.mxu0 0
          %3155 = vmatprep.subr.bf16.mxu0 0
          %3156 = vmatpush1.bf16.msra.mxu0 0
          %3157 = vmatprep.subr.bf16.mxu0 0
          %3158 = vmatpush1.bf16.msra.mxu0 0
          %3159 = vmatprep.subr.bf16.mxu0 0
          %3160 = vmatpush1.bf16.msra.mxu0 0
          %3161 = vmatprep.subr.bf16.mxu0 0
          %3162 = vmatpush1.bf16.msra.mxu0 0
          %3163 = vmatprep.subr.bf16.mxu0 0
          %3164 = vmatpush1.bf16.msra.mxu0 0
          %3165 = vmatprep.subr.bf16.mxu0 0
          %3166 = vmatpush1.bf16.msra.mxu0 0
          %3167 = vmatprep.subr.bf16.mxu0 0
          %3168 = vmatpush1.bf16.msra.mxu0 0
          %3169 = vmatprep.subr.bf16.mxu0 0
          %3170 = vmatpush1.bf16.msra.mxu0 0
          %3171 = vmatprep.subr.bf16.mxu0 0
          %3172 = vmatpush1.bf16.msra.mxu0 0
          %3173 = vmatprep.subr.bf16.mxu0 0
          %3174 = vmatpush1.bf16.msra.mxu0 0
          %3175 = vmatprep.subr.bf16.mxu0 0
          %3176 = vmatpush1.bf16.msra.mxu0 0
          %3177 = vmatprep.mubr.bf16.mxu0 0
          %3178 = vmatmul.mubr.bf16.gmra.mrb[0].mxu0 %v3143
          %v3179 = vpop.f32.mrb[0].mxu0
          %v3180 = vadd.f32 %v3116, %v3179
          %v3181 = vpop.f32.mrb[0].mxu0
          %v3182 = vpop.f32.mrb[0].mxu0
          %v3183 = vpop.f32.mrb[0].mxu0
          %3184 = vdwg.mxu0
          %3185 = vst [vmem:[%s336] sm:$0x1] %v3180
        $region64: #{cnn_only_forward.1} parent=55 // pred_fallthru
          _
        %s3186 = sand.u32 %s237, 1
        %s3187 = scalar_lea.sflag [#allocation4], %s3186
        %s3188 = sand.u32 %s237, 1
        %s3189 = scalar_lea.vmem [#allocation3], %s3188
        // Predicated region
        $region65: #{cnn_only_forward.1} parent=55 // pred_check
          %p3190 = pneg %p247
        $region66: #{cnn_only_forward.1} parent=55 // pred_check_branch
          %3192 = sbr.rel (%p3190) target = $region68
        $region67: #{cnn_only_forward.1} parent=55 // pred_region
          %s3194 = ssub.s32 16, 16
          %3195 = vsyncadd %s3187, %s3194
          %s3196 = smul.addr %s27, 16
          %s3197 = scalar_lea.hbm %s9, %s3196
          %s3199 = sshll.u32 %s3189, 4
          %s3200 = int_to_ptr.vmem [resolvable:$true] %s3199
          %3202 = dma.vmem_to_hbm [thread:$0]  %s3200, 16, %s3197, %s3187
        $region68: #{cnn_only_forward.1} parent=55 // pred_fallthru
          _
      $region56: #{cnn_only_forward.1} parent=5 // pred_fallthru
        _
      %p3203 = scmp.le.s32.totalorder 2, %s18
      // Predicated region
      $region69: #{cnn_only_forward.1} parent=5 // pred_check
        %p3204 = pneg %p3203
      $region70: #{cnn_only_forward.1} parent=5 // pred_check_branch
        %3206 = sbr.rel (%p3204) target = $region72
      $region71: #{cnn_only_forward.1} parent=5 // pred_region
        %s3207 = ssub.s32 %s18, 2
        // Predicated region
        $region73: #{cnn_only_forward.1} parent=71 // pred_check
          %p3208 = pneg %p253
        $region74: #{cnn_only_forward.1} parent=71 // pred_check_branch
          %3210 = sbr.rel (%p3208) target = $region76
        $region75: #{cnn_only_forward.1} parent=71 // pred_region
          %s3211 = sand.u32 %s238, 1
          %s3212 = scalar_lea.sflag [#allocation4], %s3211
          %s3213 = sand.u32 %s238, 1
          %s3214 = scalar_lea.vmem [#allocation3], %s3213
          %3215 = dma.done %s3212, 16
        $region76: #{cnn_only_forward.1} parent=71 // pred_fallthru
          _
      $region72: #{cnn_only_forward.1} parent=5 // pred_fallthru
        _
    $region6: #{cnn_only_forward.1} parent=1 // loop_footer
      %s22 = sadd.s32 1, %s18
    $region7: #{cnn_only_forward.1} parent=1 // loop_footer_branch
      %17 = sbr.rel target = $region3
    $region8: #{cnn_only_forward.1} parent=1 // loop_exit
      _
    %3216 = vsyncpa [#allocation4], 1
    %s3217 = scalar_lea.sflag [#allocation4], 1
    %3218 = vsyncpa %s3217, 1

</llo_original>
